<compile_context>
chip_gen: v7x
topology: tpu7x:2x2x1
jax: 0.10.0
libtpu: 0.0.40
codegen_flags: <defaults>
</compile_context>

<pallas_src>
import functools
import math

import jax
import jax.numpy as jnp
from jax.experimental import pallas as pl
from jax.experimental.pallas import tpu as pltpu

# ---------------------------------------------------------------------------
# Model dimensions (small, synthetic)
# ---------------------------------------------------------------------------
B = 2                      # batch
T_SAMPLES = 256            # raw waveform length
CONV_K = 4                 # conv kernel == stride (patch conv)
C1 = 32                    # conv layer 1 channels
C2 = 64                    # conv layer 2 channels ("conv_dim")
HIDDEN = 128               # transformer hidden size
NUM_HEADS = 2
HEAD_DIM = HIDDEN // NUM_HEADS
FFN = 256                  # intermediate size
NUM_LAYERS = 2
OUT_DIM = 256              # output_processor width
EPS = 1e-5
SEQ = T_SAMPLES // (CONV_K * CONV_K)          # 16 frames after two stride-4 convs
ATTN_SCALE = 1.0 / math.sqrt(HEAD_DIM)

MM_DTYPE = jnp.bfloat16    # matmul operand dtype (f32 accumulation on the MXU)

WEIGHT_ORDER = ("conv1_w", "conv2_w", "fp_w",
                "wqkv", "wo", "wff1", "wff2",
                "head_w1", "head_w2")


# ---------------------------------------------------------------------------
# Packed "small parameter" slab: all biases + LayerNorm gamma/beta in one
# lane-dense f32 array, sliced at static row offsets inside the kernel.
# ---------------------------------------------------------------------------
def _build_small_layout():
    layout = {}
    row = 0

    def add(name, n_rows, n_cols):
        nonlocal row
        layout[name] = (row, n_rows, n_cols)
        row += n_rows

    add("conv1_b", 1, C1)
    add("conv2_b", 1, C2)
    add("fp_ln", 2, C2)
    add("fp_b", 1, HIDDEN)
    add("enc_ln", 2, HIDDEN)
    for l in range(NUM_LAYERS):
        add(f"bqkv_{l}", 1, 3 * HIDDEN)
        add(f"bo_{l}", 1, HIDDEN)
        add(f"ln1_{l}", 2, HIDDEN)
        add(f"bff1_{l}", 1, FFN)
        add(f"bff2_{l}", 1, HIDDEN)
        add(f"ln2_{l}", 2, HIDDEN)
    add("head_b1", 1, OUT_DIM)
    add("head_ln", 2, OUT_DIM)
    add("head_b2", 1, OUT_DIM)
    rows_padded = ((row + 7) // 8) * 8
    return layout, rows_padded


SMALL_LAYOUT, SMALL_ROWS = _build_small_layout()
SMALL_COLS = 3 * HIDDEN            # widest packed row (bqkv), multiple of 128


# ---------------------------------------------------------------------------
# Fused Pallas kernel: one grid step handles `bb` batch elements end-to-end.
# Activations are stacked on the M dimension: rows ordered (b_local, frame).
# ---------------------------------------------------------------------------
def _hubert_fused_kernel(
        bb,                                               # python int: batch per grid step
        xp_ref,                                           # [1, K*bb*SEQ, K] waveform patches
        small_ref,                                        # [SMALL_ROWS, SMALL_COLS] f32 slab
        conv1_w_ref, conv2_w_ref, fp_w_ref,               # feature extractor / projection
        wqkv_ref, wo_ref, wff1_ref, wff2_ref,             # encoder (stacked on L)
        head_w1_ref, head_w2_ref,                         # output_processor
        o_ref):                                           # [1, bb, OUT_DIM]
    f32 = jnp.float32
    M = bb * SEQ                                          # folded-batch matmul M dim

    def sp(name):
        """Static slice of the packed bias/LN slab -> [n_rows, n_cols] f32."""
        r0, nr, nc = SMALL_LAYOUT[name]
        return small_ref[r0:r0 + nr, 0:nc]

    def ln(x, name):
        """LayerNorm over last axis; slab rows are [gamma; beta]."""
        gb = sp(name)
        g = gb[0:1, :]
        b = gb[1:2, :]
        mu = jnp.mean(x, axis=-1, keepdims=True)
        var = jnp.mean(jnp.square(x - mu), axis=-1, keepdims=True)
        return (x - mu) * jax.lax.rsqrt(var + EPS) * g + b

    def gelu(x):
        # TODO(synk): PyTorch nn.GELU / HF Hubert default is the exact erf GELU;
        # the tanh approximation is used here for a guaranteed Mosaic lowering.
        return jax.nn.gelu(x, approximate=True)

    def mm(x_bf, w_bf):
        """bf16 MXU matmul with f32 accumulation (operands already bf16)."""
        return jnp.dot(x_bf, w_bf, preferred_element_type=f32)

    # ------------- feature extractor: conv1 -> GELU -> conv2 -> GELU --------
    # TODO(synk): GroupNorm after HuBERT's first feature-extractor conv omitted.
    # Rows of x_all are ordered (j, b_local, frame) so conv2 can slice aligned
    # [M, C1] sublane blocks per patch position j.
    x_all = xp_ref[0].astype(MM_DTYPE)                    # [K*M, CONV_K] bf16
    h1 = mm(x_all, conv1_w_ref[...]) + sp("conv1_b")      # [K*M, C1] f32 (single MXU matmul)
    h1 = gelu(h1).astype(MM_DTYPE)                        # bf16 once, reused by conv2

    acc2 = jnp.zeros((M, C2), f32)
    for j in range(CONV_K):                               # accumulated matmul over patch pos
        acc2 = acc2 + mm(h1[j * M:(j + 1) * M, :], conv2_w_ref[j])
    h = gelu(acc2 + sp("conv2_b"))                        # [M, C2] f32

    # ------------- feature projection ----------------------------------------
    h = ln(h, "fp_ln")
    h = mm(h.astype(MM_DTYPE), fp_w_ref[...]) + sp("fp_b")   # [M, HIDDEN] f32
    h = ln(h, "enc_ln")

    # ------------- transformer encoder ---------------------------------------
    # TODO(synk): HuBERT positional conv embedding (grouped conv1d) omitted.
    for l in range(NUM_LAYERS):
        h_bf = h.astype(MM_DTYPE)                         # cast once per LN output
        qkv = mm(h_bf, wqkv_ref[l]) + sp(f"bqkv_{l}")     # [M, 3*HIDDEN] f32

        head_outs = []
        for hh in range(NUM_HEADS):
            lo = hh * HEAD_DIM
            hi = lo + HEAD_DIM
            # bf16 operands for single-pass MXU; leading reshape [M,D]->[bb,SEQ,D]
            # is a trivial sublane-tile regrouping (SEQ is a multiple of 8).
            q = qkv[:, lo:hi].astype(MM_DTYPE).reshape(bb, SEQ, HEAD_DIM)
            k = qkv[:, HIDDEN + lo:HIDDEN + hi].astype(MM_DTYPE).reshape(bb, SEQ, HEAD_DIM)
            v = qkv[:, 2 * HIDDEN + lo:2 * HIDDEN + hi].astype(MM_DTYPE).reshape(bb, SEQ, HEAD_DIM)
            # batched scores over the folded batch dim (one softmax chain per head)
            s = jnp.einsum('bqd,bkd->bqk', q, k,
                           preferred_element_type=f32) * ATTN_SCALE   # [bb, SEQ, SEQ]
            s = s - jnp.max(s, axis=-1, keepdims=True)
            p = jnp.exp(s)
            p = p * pl.reciprocal(jnp.sum(p, axis=-1, keepdims=True), approx=True)
            oh = jnp.einsum('bqk,bkd->bqd', p.astype(MM_DTYPE), v,
                            preferred_element_type=f32)               # [bb, SEQ, HEAD_DIM]
            head_outs.append(oh.reshape(M, HEAD_DIM))

        # merge heads onto lanes, single [M,HIDDEN]x[HIDDEN,HIDDEN] output proj
        attn = jnp.concatenate(head_outs, axis=-1)        # [M, HIDDEN] f32
        attn = mm(attn.astype(MM_DTYPE), wo_ref[l]) + sp(f"bo_{l}")
        h = ln(attn + h, f"ln1_{l}")                      # post-LN (residual)

        # feed-forward
        f = gelu(mm(h.astype(MM_DTYPE), wff1_ref[l]) + sp(f"bff1_{l}"))   # [M, FFN]
        f = mm(f.astype(MM_DTYPE), wff2_ref[l]) + sp(f"bff2_{l}")         # [M, HIDDEN]
        h = ln(f + h, f"ln2_{l}")

    # ------------- mean pool over time + output_processor --------------------
    pooled_rows = []
    for b in range(bb):
        pooled_rows.append(jnp.mean(h[b * SEQ:(b + 1) * SEQ, :], axis=0, keepdims=True))
    pooled = jnp.concatenate(pooled_rows, axis=0) if bb > 1 else pooled_rows[0]   # [bb, HIDDEN]

    y = mm(pooled.astype(MM_DTYPE), head_w1_ref[...]) + sp("head_b1")   # [bb, OUT_DIM]
    y = ln(y, "head_ln")
    y = jnp.maximum(y, 0.0)                               # ReLU
    # Dropout(0.3): eval mode -> identity
    out = mm(y.astype(MM_DTYPE), head_w2_ref[...]) + sp("head_b2")      # [bb, OUT_DIM]
    o_ref[0] = out.astype(o_ref.dtype)


# ---------------------------------------------------------------------------
# Wrapper: one pallas_call for the whole forward pass.
# ---------------------------------------------------------------------------
def _num_groups(batch):
    """Grid size: 1 on single-TC chips (fold whole batch into one step),
    batch/element-per-TC split only where a second TensorCore exists (v7x)."""
    try:
        kind = jax.devices()[0].device_kind.lower()
    except Exception:
        kind = ""
    two_tc = "v7" in kind
    if two_tc and batch % 2 == 0:
        return 2
    return 1


def hubert_module_forward(params, x):
    """x: raw waveform [B, T] (float32). Returns [B, 256]."""
    batch, t = x.shape
    s = t // (CONV_K * CONV_K)
    groups = _num_groups(batch)
    bb = batch // groups

    # Pre-arrange waveform into conv patches so the kernel never reshapes across
    # lane/sublane tiles.  Per group: [K*bb*S, K] with row (j*bb*S + b*S + frame)
    # holding conv1-patch j of conv2 frame `frame` of local batch element b.
    xp = (x.reshape(groups, bb, s, CONV_K, CONV_K)
           .transpose(0, 3, 1, 2, 4)
           .reshape(groups, CONV_K * bb * s, CONV_K))

    kernel = functools.partial(_hubert_fused_kernel, bb)

    in_specs = [pl.BlockSpec((1, CONV_K * bb * s, CONV_K), lambda g: (g, 0, 0)),
                pl.BlockSpec(params["small"].shape, lambda g: (0, 0))]
    args = [xp, params["small"]]
    for name in WEIGHT_ORDER:
        arr = params[name]
        in_specs.append(pl.BlockSpec(arr.shape, lambda g, nd=arr.ndim: (0,) * nd))
        args.append(arr)

    out = pl.pallas_call(
        kernel,
        out_shape=jax.ShapeDtypeStruct((groups, bb, OUT_DIM), jnp.float32),
        grid=(groups,),
        in_specs=in_specs,
        out_specs=pl.BlockSpec((1, bb, OUT_DIM), lambda g: (g, 0, 0)),
        compiler_params=pltpu.CompilerParams(
            dimension_semantics=("parallel",)),   # one group per TensorCore on v7x
    )(*args)
    return out.reshape(batch, OUT_DIM)


# ---------------------------------------------------------------------------
# Parameter init (deterministic, synthetic — no checkpoint)
# ---------------------------------------------------------------------------
def init_params(key):
    keys = iter(jax.random.split(key, 64))

    def dense(shape, scale=0.02):
        w = scale * jax.random.normal(next(keys), shape, dtype=jnp.float32)
        return w.astype(MM_DTYPE)                  # matmul weights stored bf16

    def bias(n, scale=0.02):
        return scale * jax.random.normal(next(keys), (1, n), dtype=jnp.float32)

    def ln_pair(n):
        return jnp.concatenate([jnp.ones((1, n), jnp.float32),
                                jnp.zeros((1, n), jnp.float32)], axis=0)   # [2, n]

    small_vals = {
        "conv1_b": bias(C1),
        "conv2_b": bias(C2),
        "fp_ln": ln_pair(C2),
        "fp_b": bias(HIDDEN),
        "enc_ln": ln_pair(HIDDEN),
        "head_b1": bias(OUT_DIM),
        "head_ln": ln_pair(OUT_DIM),
        "head_b2": bias(OUT_DIM),
    }
    for l in range(NUM_LAYERS):
        small_vals[f"bqkv_{l}"] = bias(3 * HIDDEN)
        small_vals[f"bo_{l}"] = bias(HIDDEN)
        small_vals[f"ln1_{l}"] = ln_pair(HIDDEN)
        small_vals[f"bff1_{l}"] = bias(FFN)
        small_vals[f"bff2_{l}"] = bias(HIDDEN)
        small_vals[f"ln2_{l}"] = ln_pair(HIDDEN)

    small = jnp.zeros((SMALL_ROWS, SMALL_COLS), jnp.float32)
    for name, (r0, nr, nc) in SMALL_LAYOUT.items():
        small = small.at[r0:r0 + nr, 0:nc].set(small_vals[name])

    p = {
        "small": small,
        # feature extractor (conv as patch matmul)
        "conv1_w": dense((CONV_K, C1)),
        "conv2_w": dense((CONV_K, C1, C2)),        # [j, c_in, c_out]
        # feature projection: LayerNorm(C2) -> Linear(C2, HIDDEN)
        "fp_w": dense((C2, HIDDEN)),
        # encoder layers (stacked over NUM_LAYERS)
        "wqkv": dense((NUM_LAYERS, HIDDEN, 3 * HIDDEN)),
        "wo": dense((NUM_LAYERS, HIDDEN, HIDDEN)),
        "wff1": dense((NUM_LAYERS, HIDDEN, FFN)),
        "wff2": dense((NUM_LAYERS, FFN, HIDDEN)),
        # output_processor head
        "head_w1": dense((HIDDEN, OUT_DIM)),
        "head_w2": dense((OUT_DIM, OUT_DIM)),
    }
    return p


# ---------------------------------------------------------------------------
if __name__ == "__main__":
    key = jax.random.PRNGKey(0)
    pkey, xkey = jax.random.split(key)
    params = init_params(pkey)
    x = jax.random.normal(xkey, (B, T_SAMPLES), dtype=jnp.float32)

    out = jax.jit(hubert_module_forward)(params, x)
    out = jax.block_until_ready(out)

    assert out.shape == (B, OUT_DIM), out.shape
    assert bool(jnp.all(jnp.isfinite(out)))
    print("KERNEL_OK")
</pallas_src>

<mosaic_0001>
module attributes {stable_mosaic.version = 11 : i64} {
  func.func @_hubert_fused_kernel(%arg0: i32, %arg1: memref<1x128x4xf32, #tpu.memory_space<vmem>>, %arg2: memref<32x384xf32, #tpu.memory_space<vmem>>, %arg3: memref<4x32xbf16, #tpu.memory_space<vmem>>, %arg4: memref<4x32x64xbf16, #tpu.memory_space<vmem>>, %arg5: memref<64x128xbf16, #tpu.memory_space<vmem>>, %arg6: memref<2x128x384xbf16, #tpu.memory_space<vmem>>, %arg7: memref<2x128x128xbf16, #tpu.memory_space<vmem>>, %arg8: memref<2x128x256xbf16, #tpu.memory_space<vmem>>, %arg9: memref<2x256x128xbf16, #tpu.memory_space<vmem>>, %arg10: memref<128x256xbf16, #tpu.memory_space<vmem>>, %arg11: memref<256x256xbf16, #tpu.memory_space<vmem>>, %arg12: memref<1x2x256xf32, #tpu.memory_space<vmem>>) attributes {dimension_semantics = [#tpu.dimension_semantics<parallel>], iteration_bounds = array<i64: 1>, scalar_prefetch = 0 : i64, scratch_operands = 0 : i64, tpu.core_type = #tpu.core_type<tc>, window_params = [{transform_indices = @transform_0, window_bounds = array<i64: 1, 128, 4>}, {pipeline_mode = #tpu.pipeline_mode<synchronous>, transform_indices = @transform_1, window_bounds = array<i64: 32, 384>}, {pipeline_mode = #tpu.pipeline_mode<synchronous>, transform_indices = @transform_2, window_bounds = array<i64: 4, 32>}, {pipeline_mode = #tpu.pipeline_mode<synchronous>, transform_indices = @transform_3, window_bounds = array<i64: 4, 32, 64>}, {pipeline_mode = #tpu.pipeline_mode<synchronous>, transform_indices = @transform_4, window_bounds = array<i64: 64, 128>}, {pipeline_mode = #tpu.pipeline_mode<synchronous>, transform_indices = @transform_5, window_bounds = array<i64: 2, 128, 384>}, {pipeline_mode = #tpu.pipeline_mode<synchronous>, transform_indices = @transform_6, window_bounds = array<i64: 2, 128, 128>}, {pipeline_mode = #tpu.pipeline_mode<synchronous>, transform_indices = @transform_7, window_bounds = array<i64: 2, 128, 256>}, {pipeline_mode = #tpu.pipeline_mode<synchronous>, transform_indices = @transform_8, window_bounds = array<i64: 2, 256, 128>}, {pipeline_mode = #tpu.pipeline_mode<synchronous>, transform_indices = @transform_9, window_bounds = array<i64: 128, 256>}, {pipeline_mode = #tpu.pipeline_mode<synchronous>, transform_indices = @transform_10, window_bounds = array<i64: 256, 256>}, {transform_indices = @transform_11, window_bounds = array<i64: 1, 2, 256>}]} {
    %c0 = arith.constant 0 : index
    %c0_0 = arith.constant 0 : index
    %c0_1 = arith.constant 0 : index
    %0 = vector.load %arg1[%c0, %c0_0, %c0_1] : memref<1x128x4xf32, #tpu.memory_space<vmem>>, vector<1x128x4xf32>
    %1 = vector.shape_cast %0 : vector<1x128x4xf32> to vector<128x4xf32>
    %2 = arith.truncf %1 : vector<128x4xf32> to vector<128x4xbf16>
    %c0_2 = arith.constant 0 : index
    %c0_3 = arith.constant 0 : index
    %3 = vector.load %arg3[%c0_2, %c0_3] : memref<4x32xbf16, #tpu.memory_space<vmem>>, vector<4x32xbf16>
    %cst = arith.constant dense<0.000000e+00> : vector<128x32xf32>
    %4 = tpu.matmul %2, %3, %cst {dimension_numbers = #tpu.dot_dimension_numbers<[1], [0], [0], [1], [0, 0, 1, 1], [], []>} : vector<128x4xbf16>, vector<4x32xbf16>, vector<128x32xf32> -> vector<128x32xf32>
    %c0_4 = arith.constant 0 : index
    %c0_5 = arith.constant 0 : index
    %5 = vector.load %arg2[%c0_4, %c0_5] : memref<32x384xf32, #tpu.memory_space<vmem>>, vector<1x32xf32>
    %6 = vector.broadcast %5 : vector<1x32xf32> to vector<128x32xf32>
    %7 = arith.addf %4, %6 : vector<128x32xf32>
    %8 = arith.mulf %7, %7 : vector<128x32xf32>
    %9 = arith.mulf %7, %8 : vector<128x32xf32>
    %cst_6 = arith.constant 4.471500e-02 : f32
    %10 = vector.broadcast %cst_6 : f32 to vector<128x32xf32>
    %11 = arith.mulf %10, %9 : vector<128x32xf32>
    %12 = arith.addf %7, %11 : vector<128x32xf32>
    %cst_7 = arith.constant 0.797884583 : f32
    %13 = vector.broadcast %cst_7 : f32 to vector<128x32xf32>
    %14 = arith.mulf %13, %12 : vector<128x32xf32>
    %15 = math.tanh %14 : vector<128x32xf32>
    %cst_8 = arith.constant 1.000000e+00 : f32
    %16 = vector.broadcast %cst_8 : f32 to vector<128x32xf32>
    %17 = arith.addf %16, %15 : vector<128x32xf32>
    %cst_9 = arith.constant 5.000000e-01 : f32
    %18 = vector.broadcast %cst_9 : f32 to vector<128x32xf32>
    %19 = arith.mulf %18, %17 : vector<128x32xf32>
    %20 = arith.mulf %7, %19 : vector<128x32xf32>
    %21 = arith.truncf %20 : vector<128x32xf32> to vector<128x32xbf16>
    %cst_10 = arith.constant 0.000000e+00 : f32
    %22 = vector.broadcast %cst_10 : f32 to vector<32x64xf32>
    %23 = vector.extract_strided_slice %21 {offsets = [0, 0], sizes = [32, 32], strides = [1, 1]} : vector<128x32xbf16> to vector<32x32xbf16>
    %c0_11 = arith.constant 0 : index
    %c0_12 = arith.constant 0 : index
    %c0_13 = arith.constant 0 : index
    %24 = vector.load %arg4[%c0_11, %c0_12, %c0_13] : memref<4x32x64xbf16, #tpu.memory_space<vmem>>, vector<1x32x64xbf16>
    %25 = vector.shape_cast %24 : vector<1x32x64xbf16> to vector<32x64xbf16>
    %cst_14 = arith.constant dense<0.000000e+00> : vector<32x64xf32>
    %26 = tpu.matmul %23, %25, %cst_14 {dimension_numbers = #tpu.dot_dimension_numbers<[1], [0], [0], [1], [0, 0, 1, 1], [], []>} : vector<32x32xbf16>, vector<32x64xbf16>, vector<32x64xf32> -> vector<32x64xf32>
    %27 = arith.addf %22, %26 : vector<32x64xf32>
    %28 = vector.extract_strided_slice %21 {offsets = [32, 0], sizes = [32, 32], strides = [1, 1]} : vector<128x32xbf16> to vector<32x32xbf16>
    %c1 = arith.constant 1 : index
    %c0_15 = arith.constant 0 : index
    %c0_16 = arith.constant 0 : index
    %29 = vector.load %arg4[%c1, %c0_15, %c0_16] : memref<4x32x64xbf16, #tpu.memory_space<vmem>>, vector<1x32x64xbf16>
    %30 = vector.shape_cast %29 : vector<1x32x64xbf16> to vector<32x64xbf16>
    %cst_17 = arith.constant dense<0.000000e+00> : vector<32x64xf32>
    %31 = tpu.matmul %28, %30, %cst_17 {dimension_numbers = #tpu.dot_dimension_numbers<[1], [0], [0], [1], [0, 0, 1, 1], [], []>} : vector<32x32xbf16>, vector<32x64xbf16>, vector<32x64xf32> -> vector<32x64xf32>
    %32 = arith.addf %27, %31 : vector<32x64xf32>
    %33 = vector.extract_strided_slice %21 {offsets = [64, 0], sizes = [32, 32], strides = [1, 1]} : vector<128x32xbf16> to vector<32x32xbf16>
    %c2 = arith.constant 2 : index
    %c0_18 = arith.constant 0 : index
    %c0_19 = arith.constant 0 : index
    %34 = vector.load %arg4[%c2, %c0_18, %c0_19] : memref<4x32x64xbf16, #tpu.memory_space<vmem>>, vector<1x32x64xbf16>
    %35 = vector.shape_cast %34 : vector<1x32x64xbf16> to vector<32x64xbf16>
    %cst_20 = arith.constant dense<0.000000e+00> : vector<32x64xf32>
    %36 = tpu.matmul %33, %35, %cst_20 {dimension_numbers = #tpu.dot_dimension_numbers<[1], [0], [0], [1], [0, 0, 1, 1], [], []>} : vector<32x32xbf16>, vector<32x64xbf16>, vector<32x64xf32> -> vector<32x64xf32>
    %37 = arith.addf %32, %36 : vector<32x64xf32>
    %38 = vector.extract_strided_slice %21 {offsets = [96, 0], sizes = [32, 32], strides = [1, 1]} : vector<128x32xbf16> to vector<32x32xbf16>
    %c3 = arith.constant 3 : index
    %c0_21 = arith.constant 0 : index
    %c0_22 = arith.constant 0 : index
    %39 = vector.load %arg4[%c3, %c0_21, %c0_22] : memref<4x32x64xbf16, #tpu.memory_space<vmem>>, vector<1x32x64xbf16>
    %40 = vector.shape_cast %39 : vector<1x32x64xbf16> to vector<32x64xbf16>
    %cst_23 = arith.constant dense<0.000000e+00> : vector<32x64xf32>
    %41 = tpu.matmul %38, %40, %cst_23 {dimension_numbers = #tpu.dot_dimension_numbers<[1], [0], [0], [1], [0, 0, 1, 1], [], []>} : vector<32x32xbf16>, vector<32x64xbf16>, vector<32x64xf32> -> vector<32x64xf32>
    %42 = arith.addf %37, %41 : vector<32x64xf32>
    %c1_24 = arith.constant 1 : index
    %c0_25 = arith.constant 0 : index
    %43 = vector.load %arg2[%c1_24, %c0_25] : memref<32x384xf32, #tpu.memory_space<vmem>>, vector<1x64xf32>
    %44 = vector.broadcast %43 : vector<1x64xf32> to vector<32x64xf32>
    %45 = arith.addf %42, %44 : vector<32x64xf32>
    %46 = arith.mulf %45, %45 : vector<32x64xf32>
    %47 = arith.mulf %45, %46 : vector<32x64xf32>
    %cst_26 = arith.constant 4.471500e-02 : f32
    %48 = vector.broadcast %cst_26 : f32 to vector<32x64xf32>
    %49 = arith.mulf %48, %47 : vector<32x64xf32>
    %50 = arith.addf %45, %49 : vector<32x64xf32>
    %cst_27 = arith.constant 0.797884583 : f32
    %51 = vector.broadcast %cst_27 : f32 to vector<32x64xf32>
    %52 = arith.mulf %51, %50 : vector<32x64xf32>
    %53 = math.tanh %52 : vector<32x64xf32>
    %cst_28 = arith.constant 1.000000e+00 : f32
    %54 = vector.broadcast %cst_28 : f32 to vector<32x64xf32>
    %55 = arith.addf %54, %53 : vector<32x64xf32>
    %cst_29 = arith.constant 5.000000e-01 : f32
    %56 = vector.broadcast %cst_29 : f32 to vector<32x64xf32>
    %57 = arith.mulf %56, %55 : vector<32x64xf32>
    %58 = arith.mulf %45, %57 : vector<32x64xf32>
    %c2_30 = arith.constant 2 : index
    %c0_31 = arith.constant 0 : index
    %59 = vector.load %arg2[%c2_30, %c0_31] : memref<32x384xf32, #tpu.memory_space<vmem>>, vector<2x64xf32>
    %60 = vector.extract_strided_slice %59 {offsets = [0, 0], sizes = [1, 64], strides = [1, 1]} : vector<2x64xf32> to vector<1x64xf32>
    %61 = vector.extract_strided_slice %59 {offsets = [1, 0], sizes = [1, 64], strides = [1, 1]} : vector<2x64xf32> to vector<1x64xf32>
    %cst_32 = arith.constant dense<0.000000e+00> : vector<32xf32>
    %62 = vector.multi_reduction <add>, %58, %cst_32 [1] : vector<32x64xf32> to vector<32xf32>
    %63 = vector.shape_cast %62 : vector<32xf32> to vector<32x1xf32>
    %cst_33 = arith.constant 6.400000e+01 : f32
    %64 = vector.broadcast %cst_33 : f32 to vector<32x1xf32>
    %65 = arith.divf %63, %64 : vector<32x1xf32>
    %66 = vector.broadcast %65 : vector<32x1xf32> to vector<32x64xf32>
    %67 = arith.subf %58, %66 : vector<32x64xf32>
    %68 = arith.mulf %67, %67 : vector<32x64xf32>
    %cst_34 = arith.constant dense<0.000000e+00> : vector<32xf32>
    %69 = vector.multi_reduction <add>, %68, %cst_34 [1] : vector<32x64xf32> to vector<32xf32>
    %70 = vector.shape_cast %69 : vector<32xf32> to vector<32x1xf32>
    %cst_35 = arith.constant 6.400000e+01 : f32
    %71 = vector.broadcast %cst_35 : f32 to vector<32x1xf32>
    %72 = arith.divf %70, %71 : vector<32x1xf32>
    %73 = vector.broadcast %65 : vector<32x1xf32> to vector<32x64xf32>
    %74 = arith.subf %58, %73 : vector<32x64xf32>
    %cst_36 = arith.constant 9.99999974E-6 : f32
    %75 = vector.broadcast %cst_36 : f32 to vector<32x1xf32>
    %76 = arith.addf %72, %75 : vector<32x1xf32>
    %77 = math.rsqrt %76 : vector<32x1xf32>
    %78 = vector.broadcast %77 : vector<32x1xf32> to vector<32x64xf32>
    %79 = arith.mulf %74, %78 : vector<32x64xf32>
    %80 = vector.broadcast %60 : vector<1x64xf32> to vector<32x64xf32>
    %81 = arith.mulf %79, %80 : vector<32x64xf32>
    %82 = vector.broadcast %61 : vector<1x64xf32> to vector<32x64xf32>
    %83 = arith.addf %81, %82 : vector<32x64xf32>
    %84 = arith.truncf %83 : vector<32x64xf32> to vector<32x64xbf16>
    %c0_37 = arith.constant 0 : index
    %c0_38 = arith.constant 0 : index
    %85 = vector.load %arg5[%c0_37, %c0_38] : memref<64x128xbf16, #tpu.memory_space<vmem>>, vector<64x128xbf16>
    %cst_39 = arith.constant dense<0.000000e+00> : vector<32x128xf32>
    %86 = tpu.matmul %84, %85, %cst_39 {dimension_numbers = #tpu.dot_dimension_numbers<[1], [0], [0], [1], [0, 0, 1, 1], [], []>} : vector<32x64xbf16>, vector<64x128xbf16>, vector<32x128xf32> -> vector<32x128xf32>
    %c4 = arith.constant 4 : index
    %c0_40 = arith.constant 0 : index
    %87 = vector.load %arg2[%c4, %c0_40] : memref<32x384xf32, #tpu.memory_space<vmem>>, vector<1x128xf32>
    %88 = vector.broadcast %87 : vector<1x128xf32> to vector<32x128xf32>
    %89 = arith.addf %86, %88 : vector<32x128xf32>
    %c5 = arith.constant 5 : index
    %c0_41 = arith.constant 0 : index
    %90 = vector.load %arg2[%c5, %c0_41] : memref<32x384xf32, #tpu.memory_space<vmem>>, vector<2x128xf32>
    %91 = vector.extract_strided_slice %90 {offsets = [0, 0], sizes = [1, 128], strides = [1, 1]} : vector<2x128xf32> to vector<1x128xf32>
    %92 = vector.extract_strided_slice %90 {offsets = [1, 0], sizes = [1, 128], strides = [1, 1]} : vector<2x128xf32> to vector<1x128xf32>
    %cst_42 = arith.constant dense<0.000000e+00> : vector<32xf32>
    %93 = vector.multi_reduction <add>, %89, %cst_42 [1] : vector<32x128xf32> to vector<32xf32>
    %94 = vector.shape_cast %93 : vector<32xf32> to vector<32x1xf32>
    %cst_43 = arith.constant 1.280000e+02 : f32
    %95 = vector.broadcast %cst_43 : f32 to vector<32x1xf32>
    %96 = arith.divf %94, %95 : vector<32x1xf32>
    %97 = vector.broadcast %96 : vector<32x1xf32> to vector<32x128xf32>
    %98 = arith.subf %89, %97 : vector<32x128xf32>
    %99 = arith.mulf %98, %98 : vector<32x128xf32>
    %cst_44 = arith.constant dense<0.000000e+00> : vector<32xf32>
    %100 = vector.multi_reduction <add>, %99, %cst_44 [1] : vector<32x128xf32> to vector<32xf32>
    %101 = vector.shape_cast %100 : vector<32xf32> to vector<32x1xf32>
    %cst_45 = arith.constant 1.280000e+02 : f32
    %102 = vector.broadcast %cst_45 : f32 to vector<32x1xf32>
    %103 = arith.divf %101, %102 : vector<32x1xf32>
    %104 = vector.broadcast %96 : vector<32x1xf32> to vector<32x128xf32>
    %105 = arith.subf %89, %104 : vector<32x128xf32>
    %cst_46 = arith.constant 9.99999974E-6 : f32
    %106 = vector.broadcast %cst_46 : f32 to vector<32x1xf32>
    %107 = arith.addf %103, %106 : vector<32x1xf32>
    %108 = math.rsqrt %107 : vector<32x1xf32>
    %109 = vector.broadcast %108 : vector<32x1xf32> to vector<32x128xf32>
    %110 = arith.mulf %105, %109 : vector<32x128xf32>
    %111 = vector.broadcast %91 : vector<1x128xf32> to vector<32x128xf32>
    %112 = arith.mulf %110, %111 : vector<32x128xf32>
    %113 = vector.broadcast %92 : vector<1x128xf32> to vector<32x128xf32>
    %114 = arith.addf %112, %113 : vector<32x128xf32>
    %115 = arith.truncf %114 : vector<32x128xf32> to vector<32x128xbf16>
    %c0_47 = arith.constant 0 : index
    %c0_48 = arith.constant 0 : index
    %c0_49 = arith.constant 0 : index
    %116 = vector.load %arg6[%c0_47, %c0_48, %c0_49] : memref<2x128x384xbf16, #tpu.memory_space<vmem>>, vector<1x128x384xbf16>
    %117 = vector.shape_cast %116 : vector<1x128x384xbf16> to vector<128x384xbf16>
    %cst_50 = arith.constant dense<0.000000e+00> : vector<32x384xf32>
    %118 = tpu.matmul %115, %117, %cst_50 {dimension_numbers = #tpu.dot_dimension_numbers<[1], [0], [0], [1], [0, 0, 1, 1], [], []>} : vector<32x128xbf16>, vector<128x384xbf16>, vector<32x384xf32> -> vector<32x384xf32>
    %c7 = arith.constant 7 : index
    %c0_51 = arith.constant 0 : index
    %119 = vector.load %arg2[%c7, %c0_51] : memref<32x384xf32, #tpu.memory_space<vmem>>, vector<1x384xf32>
    %120 = vector.broadcast %119 : vector<1x384xf32> to vector<32x384xf32>
    %121 = arith.addf %118, %120 : vector<32x384xf32>
    %122 = vector.extract_strided_slice %121 {offsets = [0, 0], sizes = [32, 64], strides = [1, 1]} : vector<32x384xf32> to vector<32x64xf32>
    %123 = arith.truncf %122 : vector<32x64xf32> to vector<32x64xbf16>
    %124 = vector.shape_cast %123 : vector<32x64xbf16> to vector<2x16x64xbf16>
    %125 = vector.extract_strided_slice %121 {offsets = [0, 128], sizes = [32, 64], strides = [1, 1]} : vector<32x384xf32> to vector<32x64xf32>
    %126 = arith.truncf %125 : vector<32x64xf32> to vector<32x64xbf16>
    %127 = vector.shape_cast %126 : vector<32x64xbf16> to vector<2x16x64xbf16>
    %128 = vector.extract_strided_slice %121 {offsets = [0, 256], sizes = [32, 64], strides = [1, 1]} : vector<32x384xf32> to vector<32x64xf32>
    %129 = arith.truncf %128 : vector<32x64xf32> to vector<32x64xbf16>
    %130 = vector.shape_cast %129 : vector<32x64xbf16> to vector<2x16x64xbf16>
    "tpu.trace_start"() <{level = 10 : i32, message = "bqd,bkd->bqk"}> : () -> ()
    %cst_52 = arith.constant dense<0.000000e+00> : vector<2x16x16xf32>
    %131 = tpu.matmul %124, %127, %cst_52 {dimension_numbers = #tpu.dot_dimension_numbers<[2], [2], [1], [1], [0, 0, 0, 1, 1, 1], [0], [0]>} : vector<2x16x64xbf16>, vector<2x16x64xbf16>, vector<2x16x16xf32> -> vector<2x16x16xf32>
    "tpu.trace_stop"() : () -> ()
    %cst_53 = arith.constant 1.250000e-01 : f32
    %132 = vector.broadcast %cst_53 : f32 to vector<2x16x16xf32>
    %133 = arith.mulf %131, %132 : vector<2x16x16xf32>
    %cst_54 = arith.constant dense<0xFF800000> : vector<2x16xf32>
    %134 = vector.multi_reduction <maximumf>, %133, %cst_54 [2] : vector<2x16x16xf32> to vector<2x16xf32>
    %135 = vector.shape_cast %134 : vector<2x16xf32> to vector<2x16x1xf32>
    %136 = vector.broadcast %135 : vector<2x16x1xf32> to vector<2x16x16xf32>
    %137 = arith.subf %133, %136 : vector<2x16x16xf32>
    %138 = math.exp %137 : vector<2x16x16xf32>
    %cst_55 = arith.constant dense<0.000000e+00> : vector<2x16xf32>
    %139 = vector.multi_reduction <add>, %138, %cst_55 [2] : vector<2x16x16xf32> to vector<2x16xf32>
    %140 = vector.shape_cast %139 : vector<2x16xf32> to vector<2x16x1xf32>
    %141 = tpu.reciprocal %140 {approx = true} : vector<2x16x1xf32> -> vector<2x16x1xf32>
    %142 = vector.broadcast %141 : vector<2x16x1xf32> to vector<2x16x16xf32>
    %143 = arith.mulf %138, %142 : vector<2x16x16xf32>
    %144 = arith.truncf %143 : vector<2x16x16xf32> to vector<2x16x16xbf16>
    "tpu.trace_start"() <{level = 10 : i32, message = "bqk,bkd->bqd"}> : () -> ()
    %cst_56 = arith.constant dense<0.000000e+00> : vector<2x16x64xf32>
    %145 = tpu.matmul %144, %130, %cst_56 {dimension_numbers = #tpu.dot_dimension_numbers<[2], [1], [1], [2], [0, 0, 0, 1, 1, 2], [0], [0]>} : vector<2x16x16xbf16>, vector<2x16x64xbf16>, vector<2x16x64xf32> -> vector<2x16x64xf32>
    "tpu.trace_stop"() : () -> ()
    %146 = vector.shape_cast %145 : vector<2x16x64xf32> to vector<32x64xf32>
    %147 = vector.extract_strided_slice %121 {offsets = [0, 64], sizes = [32, 64], strides = [1, 1]} : vector<32x384xf32> to vector<32x64xf32>
    %148 = arith.truncf %147 : vector<32x64xf32> to vector<32x64xbf16>
    %149 = vector.shape_cast %148 : vector<32x64xbf16> to vector<2x16x64xbf16>
    %150 = vector.extract_strided_slice %121 {offsets = [0, 192], sizes = [32, 64], strides = [1, 1]} : vector<32x384xf32> to vector<32x64xf32>
    %151 = arith.truncf %150 : vector<32x64xf32> to vector<32x64xbf16>
    %152 = vector.shape_cast %151 : vector<32x64xbf16> to vector<2x16x64xbf16>
    %153 = vector.extract_strided_slice %121 {offsets = [0, 320], sizes = [32, 64], strides = [1, 1]} : vector<32x384xf32> to vector<32x64xf32>
    %154 = arith.truncf %153 : vector<32x64xf32> to vector<32x64xbf16>
    %155 = vector.shape_cast %154 : vector<32x64xbf16> to vector<2x16x64xbf16>
    "tpu.trace_start"() <{level = 10 : i32, message = "bqd,bkd->bqk"}> : () -> ()
    %cst_57 = arith.constant dense<0.000000e+00> : vector<2x16x16xf32>
    %156 = tpu.matmul %149, %152, %cst_57 {dimension_numbers = #tpu.dot_dimension_numbers<[2], [2], [1], [1], [0, 0, 0, 1, 1, 1], [0], [0]>} : vector<2x16x64xbf16>, vector<2x16x64xbf16>, vector<2x16x16xf32> -> vector<2x16x16xf32>
    "tpu.trace_stop"() : () -> ()
    %cst_58 = arith.constant 1.250000e-01 : f32
    %157 = vector.broadcast %cst_58 : f32 to vector<2x16x16xf32>
    %158 = arith.mulf %156, %157 : vector<2x16x16xf32>
    %cst_59 = arith.constant dense<0xFF800000> : vector<2x16xf32>
    %159 = vector.multi_reduction <maximumf>, %158, %cst_59 [2] : vector<2x16x16xf32> to vector<2x16xf32>
    %160 = vector.shape_cast %159 : vector<2x16xf32> to vector<2x16x1xf32>
    %161 = vector.broadcast %160 : vector<2x16x1xf32> to vector<2x16x16xf32>
    %162 = arith.subf %158, %161 : vector<2x16x16xf32>
    %163 = math.exp %162 : vector<2x16x16xf32>
    %cst_60 = arith.constant dense<0.000000e+00> : vector<2x16xf32>
    %164 = vector.multi_reduction <add>, %163, %cst_60 [2] : vector<2x16x16xf32> to vector<2x16xf32>
    %165 = vector.shape_cast %164 : vector<2x16xf32> to vector<2x16x1xf32>
    %166 = tpu.reciprocal %165 {approx = true} : vector<2x16x1xf32> -> vector<2x16x1xf32>
    %167 = vector.broadcast %166 : vector<2x16x1xf32> to vector<2x16x16xf32>
    %168 = arith.mulf %163, %167 : vector<2x16x16xf32>
    %169 = arith.truncf %168 : vector<2x16x16xf32> to vector<2x16x16xbf16>
    "tpu.trace_start"() <{level = 10 : i32, message = "bqk,bkd->bqd"}> : () -> ()
    %cst_61 = arith.constant dense<0.000000e+00> : vector<2x16x64xf32>
    %170 = tpu.matmul %169, %155, %cst_61 {dimension_numbers = #tpu.dot_dimension_numbers<[2], [1], [1], [2], [0, 0, 0, 1, 1, 2], [0], [0]>} : vector<2x16x16xbf16>, vector<2x16x64xbf16>, vector<2x16x64xf32> -> vector<2x16x64xf32>
    "tpu.trace_stop"() : () -> ()
    %171 = vector.shape_cast %170 : vector<2x16x64xf32> to vector<32x64xf32>
    %172 = tpu.concatenate %146, %171 in 1 : vector<32x64xf32>, vector<32x64xf32> -> vector<32x128xf32>
    %173 = arith.truncf %172 : vector<32x128xf32> to vector<32x128xbf16>
    %c0_62 = arith.constant 0 : index
    %c0_63 = arith.constant 0 : index
    %c0_64 = arith.constant 0 : index
    %174 = vector.load %arg7[%c0_62, %c0_63, %c0_64] : memref<2x128x128xbf16, #tpu.memory_space<vmem>>, vector<1x128x128xbf16>
    %175 = vector.shape_cast %174 : vector<1x128x128xbf16> to vector<128x128xbf16>
    %cst_65 = arith.constant dense<0.000000e+00> : vector<32x128xf32>
    %176 = tpu.matmul %173, %175, %cst_65 {dimension_numbers = #tpu.dot_dimension_numbers<[1], [0], [0], [1], [0, 0, 1, 1], [], []>} : vector<32x128xbf16>, vector<128x128xbf16>, vector<32x128xf32> -> vector<32x128xf32>
    %c8 = arith.constant 8 : index
    %c0_66 = arith.constant 0 : index
    %177 = vector.load %arg2[%c8, %c0_66] : memref<32x384xf32, #tpu.memory_space<vmem>>, vector<1x128xf32>
    %178 = vector.broadcast %177 : vector<1x128xf32> to vector<32x128xf32>
    %179 = arith.addf %176, %178 : vector<32x128xf32>
    %180 = arith.addf %179, %114 : vector<32x128xf32>
    %c9 = arith.constant 9 : index
    %c0_67 = arith.constant 0 : index
    %181 = vector.load %arg2[%c9, %c0_67] : memref<32x384xf32, #tpu.memory_space<vmem>>, vector<2x128xf32>
    %182 = vector.extract_strided_slice %181 {offsets = [0, 0], sizes = [1, 128], strides = [1, 1]} : vector<2x128xf32> to vector<1x128xf32>
    %183 = vector.extract_strided_slice %181 {offsets = [1, 0], sizes = [1, 128], strides = [1, 1]} : vector<2x128xf32> to vector<1x128xf32>
    %cst_68 = arith.constant dense<0.000000e+00> : vector<32xf32>
    %184 = vector.multi_reduction <add>, %180, %cst_68 [1] : vector<32x128xf32> to vector<32xf32>
    %185 = vector.shape_cast %184 : vector<32xf32> to vector<32x1xf32>
    %cst_69 = arith.constant 1.280000e+02 : f32
    %186 = vector.broadcast %cst_69 : f32 to vector<32x1xf32>
    %187 = arith.divf %185, %186 : vector<32x1xf32>
    %188 = vector.broadcast %187 : vector<32x1xf32> to vector<32x128xf32>
    %189 = arith.subf %180, %188 : vector<32x128xf32>
    %190 = arith.mulf %189, %189 : vector<32x128xf32>
    %cst_70 = arith.constant dense<0.000000e+00> : vector<32xf32>
    %191 = vector.multi_reduction <add>, %190, %cst_70 [1] : vector<32x128xf32> to vector<32xf32>
    %192 = vector.shape_cast %191 : vector<32xf32> to vector<32x1xf32>
    %cst_71 = arith.constant 1.280000e+02 : f32
    %193 = vector.broadcast %cst_71 : f32 to vector<32x1xf32>
    %194 = arith.divf %192, %193 : vector<32x1xf32>
    %195 = vector.broadcast %187 : vector<32x1xf32> to vector<32x128xf32>
    %196 = arith.subf %180, %195 : vector<32x128xf32>
    %cst_72 = arith.constant 9.99999974E-6 : f32
    %197 = vector.broadcast %cst_72 : f32 to vector<32x1xf32>
    %198 = arith.addf %194, %197 : vector<32x1xf32>
    %199 = math.rsqrt %198 : vector<32x1xf32>
    %200 = vector.broadcast %199 : vector<32x1xf32> to vector<32x128xf32>
    %201 = arith.mulf %196, %200 : vector<32x128xf32>
    %202 = vector.broadcast %182 : vector<1x128xf32> to vector<32x128xf32>
    %203 = arith.mulf %201, %202 : vector<32x128xf32>
    %204 = vector.broadcast %183 : vector<1x128xf32> to vector<32x128xf32>
    %205 = arith.addf %203, %204 : vector<32x128xf32>
    %206 = arith.truncf %205 : vector<32x128xf32> to vector<32x128xbf16>
    %c0_73 = arith.constant 0 : index
    %c0_74 = arith.constant 0 : index
    %c0_75 = arith.constant 0 : index
    %207 = vector.load %arg8[%c0_73, %c0_74, %c0_75] : memref<2x128x256xbf16, #tpu.memory_space<vmem>>, vector<1x128x256xbf16>
    %208 = vector.shape_cast %207 : vector<1x128x256xbf16> to vector<128x256xbf16>
    %cst_76 = arith.constant dense<0.000000e+00> : vector<32x256xf32>
    %209 = tpu.matmul %206, %208, %cst_76 {dimension_numbers = #tpu.dot_dimension_numbers<[1], [0], [0], [1], [0, 0, 1, 1], [], []>} : vector<32x128xbf16>, vector<128x256xbf16>, vector<32x256xf32> -> vector<32x256xf32>
    %c11 = arith.constant 11 : index
    %c0_77 = arith.constant 0 : index
    %210 = vector.load %arg2[%c11, %c0_77] : memref<32x384xf32, #tpu.memory_space<vmem>>, vector<1x256xf32>
    %211 = vector.broadcast %210 : vector<1x256xf32> to vector<32x256xf32>
    %212 = arith.addf %209, %211 : vector<32x256xf32>
    %213 = arith.mulf %212, %212 : vector<32x256xf32>
    %214 = arith.mulf %212, %213 : vector<32x256xf32>
    %cst_78 = arith.constant 4.471500e-02 : f32
    %215 = vector.broadcast %cst_78 : f32 to vector<32x256xf32>
    %216 = arith.mulf %215, %214 : vector<32x256xf32>
    %217 = arith.addf %212, %216 : vector<32x256xf32>
    %cst_79 = arith.constant 0.797884583 : f32
    %218 = vector.broadcast %cst_79 : f32 to vector<32x256xf32>
    %219 = arith.mulf %218, %217 : vector<32x256xf32>
    %220 = math.tanh %219 : vector<32x256xf32>
    %cst_80 = arith.constant 1.000000e+00 : f32
    %221 = vector.broadcast %cst_80 : f32 to vector<32x256xf32>
    %222 = arith.addf %221, %220 : vector<32x256xf32>
    %cst_81 = arith.constant 5.000000e-01 : f32
    %223 = vector.broadcast %cst_81 : f32 to vector<32x256xf32>
    %224 = arith.mulf %223, %222 : vector<32x256xf32>
    %225 = arith.mulf %212, %224 : vector<32x256xf32>
    %226 = arith.truncf %225 : vector<32x256xf32> to vector<32x256xbf16>
    %c0_82 = arith.constant 0 : index
    %c0_83 = arith.constant 0 : index
    %c0_84 = arith.constant 0 : index
    %227 = vector.load %arg9[%c0_82, %c0_83, %c0_84] : memref<2x256x128xbf16, #tpu.memory_space<vmem>>, vector<1x256x128xbf16>
    %228 = vector.shape_cast %227 : vector<1x256x128xbf16> to vector<256x128xbf16>
    %cst_85 = arith.constant dense<0.000000e+00> : vector<32x128xf32>
    %229 = tpu.matmul %226, %228, %cst_85 {dimension_numbers = #tpu.dot_dimension_numbers<[1], [0], [0], [1], [0, 0, 1, 1], [], []>} : vector<32x256xbf16>, vector<256x128xbf16>, vector<32x128xf32> -> vector<32x128xf32>
    %c12 = arith.constant 12 : index
    %c0_86 = arith.constant 0 : index
    %230 = vector.load %arg2[%c12, %c0_86] : memref<32x384xf32, #tpu.memory_space<vmem>>, vector<1x128xf32>
    %231 = vector.broadcast %230 : vector<1x128xf32> to vector<32x128xf32>
    %232 = arith.addf %229, %231 : vector<32x128xf32>
    %233 = arith.addf %232, %205 : vector<32x128xf32>
    %c13 = arith.constant 13 : index
    %c0_87 = arith.constant 0 : index
    %234 = vector.load %arg2[%c13, %c0_87] : memref<32x384xf32, #tpu.memory_space<vmem>>, vector<2x128xf32>
    %235 = vector.extract_strided_slice %234 {offsets = [0, 0], sizes = [1, 128], strides = [1, 1]} : vector<2x128xf32> to vector<1x128xf32>
    %236 = vector.extract_strided_slice %234 {offsets = [1, 0], sizes = [1, 128], strides = [1, 1]} : vector<2x128xf32> to vector<1x128xf32>
    %cst_88 = arith.constant dense<0.000000e+00> : vector<32xf32>
    %237 = vector.multi_reduction <add>, %233, %cst_88 [1] : vector<32x128xf32> to vector<32xf32>
    %238 = vector.shape_cast %237 : vector<32xf32> to vector<32x1xf32>
    %cst_89 = arith.constant 1.280000e+02 : f32
    %239 = vector.broadcast %cst_89 : f32 to vector<32x1xf32>
    %240 = arith.divf %238, %239 : vector<32x1xf32>
    %241 = vector.broadcast %240 : vector<32x1xf32> to vector<32x128xf32>
    %242 = arith.subf %233, %241 : vector<32x128xf32>
    %243 = arith.mulf %242, %242 : vector<32x128xf32>
    %cst_90 = arith.constant dense<0.000000e+00> : vector<32xf32>
    %244 = vector.multi_reduction <add>, %243, %cst_90 [1] : vector<32x128xf32> to vector<32xf32>
    %245 = vector.shape_cast %244 : vector<32xf32> to vector<32x1xf32>
    %cst_91 = arith.constant 1.280000e+02 : f32
    %246 = vector.broadcast %cst_91 : f32 to vector<32x1xf32>
    %247 = arith.divf %245, %246 : vector<32x1xf32>
    %248 = vector.broadcast %240 : vector<32x1xf32> to vector<32x128xf32>
    %249 = arith.subf %233, %248 : vector<32x128xf32>
    %cst_92 = arith.constant 9.99999974E-6 : f32
    %250 = vector.broadcast %cst_92 : f32 to vector<32x1xf32>
    %251 = arith.addf %247, %250 : vector<32x1xf32>
    %252 = math.rsqrt %251 : vector<32x1xf32>
    %253 = vector.broadcast %252 : vector<32x1xf32> to vector<32x128xf32>
    %254 = arith.mulf %249, %253 : vector<32x128xf32>
    %255 = vector.broadcast %235 : vector<1x128xf32> to vector<32x128xf32>
    %256 = arith.mulf %254, %255 : vector<32x128xf32>
    %257 = vector.broadcast %236 : vector<1x128xf32> to vector<32x128xf32>
    %258 = arith.addf %256, %257 : vector<32x128xf32>
    %259 = arith.truncf %258 : vector<32x128xf32> to vector<32x128xbf16>
    %c1_93 = arith.constant 1 : index
    %c0_94 = arith.constant 0 : index
    %c0_95 = arith.constant 0 : index
    %260 = vector.load %arg6[%c1_93, %c0_94, %c0_95] : memref<2x128x384xbf16, #tpu.memory_space<vmem>>, vector<1x128x384xbf16>
    %261 = vector.shape_cast %260 : vector<1x128x384xbf16> to vector<128x384xbf16>
    %cst_96 = arith.constant dense<0.000000e+00> : vector<32x384xf32>
    %262 = tpu.matmul %259, %261, %cst_96 {dimension_numbers = #tpu.dot_dimension_numbers<[1], [0], [0], [1], [0, 0, 1, 1], [], []>} : vector<32x128xbf16>, vector<128x384xbf16>, vector<32x384xf32> -> vector<32x384xf32>
    %c15 = arith.constant 15 : index
    %c0_97 = arith.constant 0 : index
    %263 = vector.load %arg2[%c15, %c0_97] : memref<32x384xf32, #tpu.memory_space<vmem>>, vector<1x384xf32>
    %264 = vector.broadcast %263 : vector<1x384xf32> to vector<32x384xf32>
    %265 = arith.addf %262, %264 : vector<32x384xf32>
    %266 = vector.extract_strided_slice %265 {offsets = [0, 0], sizes = [32, 64], strides = [1, 1]} : vector<32x384xf32> to vector<32x64xf32>
    %267 = arith.truncf %266 : vector<32x64xf32> to vector<32x64xbf16>
    %268 = vector.shape_cast %267 : vector<32x64xbf16> to vector<2x16x64xbf16>
    %269 = vector.extract_strided_slice %265 {offsets = [0, 128], sizes = [32, 64], strides = [1, 1]} : vector<32x384xf32> to vector<32x64xf32>
    %270 = arith.truncf %269 : vector<32x64xf32> to vector<32x64xbf16>
    %271 = vector.shape_cast %270 : vector<32x64xbf16> to vector<2x16x64xbf16>
    %272 = vector.extract_strided_slice %265 {offsets = [0, 256], sizes = [32, 64], strides = [1, 1]} : vector<32x384xf32> to vector<32x64xf32>
    %273 = arith.truncf %272 : vector<32x64xf32> to vector<32x64xbf16>
    %274 = vector.shape_cast %273 : vector<32x64xbf16> to vector<2x16x64xbf16>
    "tpu.trace_start"() <{level = 10 : i32, message = "bqd,bkd->bqk"}> : () -> ()
    %cst_98 = arith.constant dense<0.000000e+00> : vector<2x16x16xf32>
    %275 = tpu.matmul %268, %271, %cst_98 {dimension_numbers = #tpu.dot_dimension_numbers<[2], [2], [1], [1], [0, 0, 0, 1, 1, 1], [0], [0]>} : vector<2x16x64xbf16>, vector<2x16x64xbf16>, vector<2x16x16xf32> -> vector<2x16x16xf32>
    "tpu.trace_stop"() : () -> ()
    %cst_99 = arith.constant 1.250000e-01 : f32
    %276 = vector.broadcast %cst_99 : f32 to vector<2x16x16xf32>
    %277 = arith.mulf %275, %276 : vector<2x16x16xf32>
    %cst_100 = arith.constant dense<0xFF800000> : vector<2x16xf32>
    %278 = vector.multi_reduction <maximumf>, %277, %cst_100 [2] : vector<2x16x16xf32> to vector<2x16xf32>
    %279 = vector.shape_cast %278 : vector<2x16xf32> to vector<2x16x1xf32>
    %280 = vector.broadcast %279 : vector<2x16x1xf32> to vector<2x16x16xf32>
    %281 = arith.subf %277, %280 : vector<2x16x16xf32>
    %282 = math.exp %281 : vector<2x16x16xf32>
    %cst_101 = arith.constant dense<0.000000e+00> : vector<2x16xf32>
    %283 = vector.multi_reduction <add>, %282, %cst_101 [2] : vector<2x16x16xf32> to vector<2x16xf32>
    %284 = vector.shape_cast %283 : vector<2x16xf32> to vector<2x16x1xf32>
    %285 = tpu.reciprocal %284 {approx = true} : vector<2x16x1xf32> -> vector<2x16x1xf32>
    %286 = vector.broadcast %285 : vector<2x16x1xf32> to vector<2x16x16xf32>
    %287 = arith.mulf %282, %286 : vector<2x16x16xf32>
    %288 = arith.truncf %287 : vector<2x16x16xf32> to vector<2x16x16xbf16>
    "tpu.trace_start"() <{level = 10 : i32, message = "bqk,bkd->bqd"}> : () -> ()
    %cst_102 = arith.constant dense<0.000000e+00> : vector<2x16x64xf32>
    %289 = tpu.matmul %288, %274, %cst_102 {dimension_numbers = #tpu.dot_dimension_numbers<[2], [1], [1], [2], [0, 0, 0, 1, 1, 2], [0], [0]>} : vector<2x16x16xbf16>, vector<2x16x64xbf16>, vector<2x16x64xf32> -> vector<2x16x64xf32>
    "tpu.trace_stop"() : () -> ()
    %290 = vector.shape_cast %289 : vector<2x16x64xf32> to vector<32x64xf32>
    %291 = vector.extract_strided_slice %265 {offsets = [0, 64], sizes = [32, 64], strides = [1, 1]} : vector<32x384xf32> to vector<32x64xf32>
    %292 = arith.truncf %291 : vector<32x64xf32> to vector<32x64xbf16>
    %293 = vector.shape_cast %292 : vector<32x64xbf16> to vector<2x16x64xbf16>
    %294 = vector.extract_strided_slice %265 {offsets = [0, 192], sizes = [32, 64], strides = [1, 1]} : vector<32x384xf32> to vector<32x64xf32>
    %295 = arith.truncf %294 : vector<32x64xf32> to vector<32x64xbf16>
    %296 = vector.shape_cast %295 : vector<32x64xbf16> to vector<2x16x64xbf16>
    %297 = vector.extract_strided_slice %265 {offsets = [0, 320], sizes = [32, 64], strides = [1, 1]} : vector<32x384xf32> to vector<32x64xf32>
    %298 = arith.truncf %297 : vector<32x64xf32> to vector<32x64xbf16>
    %299 = vector.shape_cast %298 : vector<32x64xbf16> to vector<2x16x64xbf16>
    "tpu.trace_start"() <{level = 10 : i32, message = "bqd,bkd->bqk"}> : () -> ()
    %cst_103 = arith.constant dense<0.000000e+00> : vector<2x16x16xf32>
    %300 = tpu.matmul %293, %296, %cst_103 {dimension_numbers = #tpu.dot_dimension_numbers<[2], [2], [1], [1], [0, 0, 0, 1, 1, 1], [0], [0]>} : vector<2x16x64xbf16>, vector<2x16x64xbf16>, vector<2x16x16xf32> -> vector<2x16x16xf32>
    "tpu.trace_stop"() : () -> ()
    %cst_104 = arith.constant 1.250000e-01 : f32
    %301 = vector.broadcast %cst_104 : f32 to vector<2x16x16xf32>
    %302 = arith.mulf %300, %301 : vector<2x16x16xf32>
    %cst_105 = arith.constant dense<0xFF800000> : vector<2x16xf32>
    %303 = vector.multi_reduction <maximumf>, %302, %cst_105 [2] : vector<2x16x16xf32> to vector<2x16xf32>
    %304 = vector.shape_cast %303 : vector<2x16xf32> to vector<2x16x1xf32>
    %305 = vector.broadcast %304 : vector<2x16x1xf32> to vector<2x16x16xf32>
    %306 = arith.subf %302, %305 : vector<2x16x16xf32>
    %307 = math.exp %306 : vector<2x16x16xf32>
    %cst_106 = arith.constant dense<0.000000e+00> : vector<2x16xf32>
    %308 = vector.multi_reduction <add>, %307, %cst_106 [2] : vector<2x16x16xf32> to vector<2x16xf32>
    %309 = vector.shape_cast %308 : vector<2x16xf32> to vector<2x16x1xf32>
    %310 = tpu.reciprocal %309 {approx = true} : vector<2x16x1xf32> -> vector<2x16x1xf32>
    %311 = vector.broadcast %310 : vector<2x16x1xf32> to vector<2x16x16xf32>
    %312 = arith.mulf %307, %311 : vector<2x16x16xf32>
    %313 = arith.truncf %312 : vector<2x16x16xf32> to vector<2x16x16xbf16>
    "tpu.trace_start"() <{level = 10 : i32, message = "bqk,bkd->bqd"}> : () -> ()
    %cst_107 = arith.constant dense<0.000000e+00> : vector<2x16x64xf32>
    %314 = tpu.matmul %313, %299, %cst_107 {dimension_numbers = #tpu.dot_dimension_numbers<[2], [1], [1], [2], [0, 0, 0, 1, 1, 2], [0], [0]>} : vector<2x16x16xbf16>, vector<2x16x64xbf16>, vector<2x16x64xf32> -> vector<2x16x64xf32>
    "tpu.trace_stop"() : () -> ()
    %315 = vector.shape_cast %314 : vector<2x16x64xf32> to vector<32x64xf32>
    %316 = tpu.concatenate %290, %315 in 1 : vector<32x64xf32>, vector<32x64xf32> -> vector<32x128xf32>
    %317 = arith.truncf %316 : vector<32x128xf32> to vector<32x128xbf16>
    %c1_108 = arith.constant 1 : index
    %c0_109 = arith.constant 0 : index
    %c0_110 = arith.constant 0 : index
    %318 = vector.load %arg7[%c1_108, %c0_109, %c0_110] : memref<2x128x128xbf16, #tpu.memory_space<vmem>>, vector<1x128x128xbf16>
    %319 = vector.shape_cast %318 : vector<1x128x128xbf16> to vector<128x128xbf16>
    %cst_111 = arith.constant dense<0.000000e+00> : vector<32x128xf32>
    %320 = tpu.matmul %317, %319, %cst_111 {dimension_numbers = #tpu.dot_dimension_numbers<[1], [0], [0], [1], [0, 0, 1, 1], [], []>} : vector<32x128xbf16>, vector<128x128xbf16>, vector<32x128xf32> -> vector<32x128xf32>
    %c16 = arith.constant 16 : index
    %c0_112 = arith.constant 0 : index
    %321 = vector.load %arg2[%c16, %c0_112] : memref<32x384xf32, #tpu.memory_space<vmem>>, vector<1x128xf32>
    %322 = vector.broadcast %321 : vector<1x128xf32> to vector<32x128xf32>
    %323 = arith.addf %320, %322 : vector<32x128xf32>
    %324 = arith.addf %323, %258 : vector<32x128xf32>
    %c17 = arith.constant 17 : index
    %c0_113 = arith.constant 0 : index
    %325 = vector.load %arg2[%c17, %c0_113] : memref<32x384xf32, #tpu.memory_space<vmem>>, vector<2x128xf32>
    %326 = vector.extract_strided_slice %325 {offsets = [0, 0], sizes = [1, 128], strides = [1, 1]} : vector<2x128xf32> to vector<1x128xf32>
    %327 = vector.extract_strided_slice %325 {offsets = [1, 0], sizes = [1, 128], strides = [1, 1]} : vector<2x128xf32> to vector<1x128xf32>
    %cst_114 = arith.constant dense<0.000000e+00> : vector<32xf32>
    %328 = vector.multi_reduction <add>, %324, %cst_114 [1] : vector<32x128xf32> to vector<32xf32>
    %329 = vector.shape_cast %328 : vector<32xf32> to vector<32x1xf32>
    %cst_115 = arith.constant 1.280000e+02 : f32
    %330 = vector.broadcast %cst_115 : f32 to vector<32x1xf32>
    %331 = arith.divf %329, %330 : vector<32x1xf32>
    %332 = vector.broadcast %331 : vector<32x1xf32> to vector<32x128xf32>
    %333 = arith.subf %324, %332 : vector<32x128xf32>
    %334 = arith.mulf %333, %333 : vector<32x128xf32>
    %cst_116 = arith.constant dense<0.000000e+00> : vector<32xf32>
    %335 = vector.multi_reduction <add>, %334, %cst_116 [1] : vector<32x128xf32> to vector<32xf32>
    %336 = vector.shape_cast %335 : vector<32xf32> to vector<32x1xf32>
    %cst_117 = arith.constant 1.280000e+02 : f32
    %337 = vector.broadcast %cst_117 : f32 to vector<32x1xf32>
    %338 = arith.divf %336, %337 : vector<32x1xf32>
    %339 = vector.broadcast %331 : vector<32x1xf32> to vector<32x128xf32>
    %340 = arith.subf %324, %339 : vector<32x128xf32>
    %cst_118 = arith.constant 9.99999974E-6 : f32
    %341 = vector.broadcast %cst_118 : f32 to vector<32x1xf32>
    %342 = arith.addf %338, %341 : vector<32x1xf32>
    %343 = math.rsqrt %342 : vector<32x1xf32>
    %344 = vector.broadcast %343 : vector<32x1xf32> to vector<32x128xf32>
    %345 = arith.mulf %340, %344 : vector<32x128xf32>
    %346 = vector.broadcast %326 : vector<1x128xf32> to vector<32x128xf32>
    %347 = arith.mulf %345, %346 : vector<32x128xf32>
    %348 = vector.broadcast %327 : vector<1x128xf32> to vector<32x128xf32>
    %349 = arith.addf %347, %348 : vector<32x128xf32>
    %350 = arith.truncf %349 : vector<32x128xf32> to vector<32x128xbf16>
    %c1_119 = arith.constant 1 : index
    %c0_120 = arith.constant 0 : index
    %c0_121 = arith.constant 0 : index
    %351 = vector.load %arg8[%c1_119, %c0_120, %c0_121] : memref<2x128x256xbf16, #tpu.memory_space<vmem>>, vector<1x128x256xbf16>
    %352 = vector.shape_cast %351 : vector<1x128x256xbf16> to vector<128x256xbf16>
    %cst_122 = arith.constant dense<0.000000e+00> : vector<32x256xf32>
    %353 = tpu.matmul %350, %352, %cst_122 {dimension_numbers = #tpu.dot_dimension_numbers<[1], [0], [0], [1], [0, 0, 1, 1], [], []>} : vector<32x128xbf16>, vector<128x256xbf16>, vector<32x256xf32> -> vector<32x256xf32>
    %c19 = arith.constant 19 : index
    %c0_123 = arith.constant 0 : index
    %354 = vector.load %arg2[%c19, %c0_123] : memref<32x384xf32, #tpu.memory_space<vmem>>, vector<1x256xf32>
    %355 = vector.broadcast %354 : vector<1x256xf32> to vector<32x256xf32>
    %356 = arith.addf %353, %355 : vector<32x256xf32>
    %357 = arith.mulf %356, %356 : vector<32x256xf32>
    %358 = arith.mulf %356, %357 : vector<32x256xf32>
    %cst_124 = arith.constant 4.471500e-02 : f32
    %359 = vector.broadcast %cst_124 : f32 to vector<32x256xf32>
    %360 = arith.mulf %359, %358 : vector<32x256xf32>
    %361 = arith.addf %356, %360 : vector<32x256xf32>
    %cst_125 = arith.constant 0.797884583 : f32
    %362 = vector.broadcast %cst_125 : f32 to vector<32x256xf32>
    %363 = arith.mulf %362, %361 : vector<32x256xf32>
    %364 = math.tanh %363 : vector<32x256xf32>
    %cst_126 = arith.constant 1.000000e+00 : f32
    %365 = vector.broadcast %cst_126 : f32 to vector<32x256xf32>
    %366 = arith.addf %365, %364 : vector<32x256xf32>
    %cst_127 = arith.constant 5.000000e-01 : f32
    %367 = vector.broadcast %cst_127 : f32 to vector<32x256xf32>
    %368 = arith.mulf %367, %366 : vector<32x256xf32>
    %369 = arith.mulf %356, %368 : vector<32x256xf32>
    %370 = arith.truncf %369 : vector<32x256xf32> to vector<32x256xbf16>
    %c1_128 = arith.constant 1 : index
    %c0_129 = arith.constant 0 : index
    %c0_130 = arith.constant 0 : index
    %371 = vector.load %arg9[%c1_128, %c0_129, %c0_130] : memref<2x256x128xbf16, #tpu.memory_space<vmem>>, vector<1x256x128xbf16>
    %372 = vector.shape_cast %371 : vector<1x256x128xbf16> to vector<256x128xbf16>
    %cst_131 = arith.constant dense<0.000000e+00> : vector<32x128xf32>
    %373 = tpu.matmul %370, %372, %cst_131 {dimension_numbers = #tpu.dot_dimension_numbers<[1], [0], [0], [1], [0, 0, 1, 1], [], []>} : vector<32x256xbf16>, vector<256x128xbf16>, vector<32x128xf32> -> vector<32x128xf32>
    %c20 = arith.constant 20 : index
    %c0_132 = arith.constant 0 : index
    %374 = vector.load %arg2[%c20, %c0_132] : memref<32x384xf32, #tpu.memory_space<vmem>>, vector<1x128xf32>
    %375 = vector.broadcast %374 : vector<1x128xf32> to vector<32x128xf32>
    %376 = arith.addf %373, %375 : vector<32x128xf32>
    %377 = arith.addf %376, %349 : vector<32x128xf32>
    %c21 = arith.constant 21 : index
    %c0_133 = arith.constant 0 : index
    %378 = vector.load %arg2[%c21, %c0_133] : memref<32x384xf32, #tpu.memory_space<vmem>>, vector<2x128xf32>
    %379 = vector.extract_strided_slice %378 {offsets = [0, 0], sizes = [1, 128], strides = [1, 1]} : vector<2x128xf32> to vector<1x128xf32>
    %380 = vector.extract_strided_slice %378 {offsets = [1, 0], sizes = [1, 128], strides = [1, 1]} : vector<2x128xf32> to vector<1x128xf32>
    %cst_134 = arith.constant dense<0.000000e+00> : vector<32xf32>
    %381 = vector.multi_reduction <add>, %377, %cst_134 [1] : vector<32x128xf32> to vector<32xf32>
    %382 = vector.shape_cast %381 : vector<32xf32> to vector<32x1xf32>
    %cst_135 = arith.constant 1.280000e+02 : f32
    %383 = vector.broadcast %cst_135 : f32 to vector<32x1xf32>
    %384 = arith.divf %382, %383 : vector<32x1xf32>
    %385 = vector.broadcast %384 : vector<32x1xf32> to vector<32x128xf32>
    %386 = arith.subf %377, %385 : vector<32x128xf32>
    %387 = arith.mulf %386, %386 : vector<32x128xf32>
    %cst_136 = arith.constant dense<0.000000e+00> : vector<32xf32>
    %388 = vector.multi_reduction <add>, %387, %cst_136 [1] : vector<32x128xf32> to vector<32xf32>
    %389 = vector.shape_cast %388 : vector<32xf32> to vector<32x1xf32>
    %cst_137 = arith.constant 1.280000e+02 : f32
    %390 = vector.broadcast %cst_137 : f32 to vector<32x1xf32>
    %391 = arith.divf %389, %390 : vector<32x1xf32>
    %392 = vector.broadcast %384 : vector<32x1xf32> to vector<32x128xf32>
    %393 = arith.subf %377, %392 : vector<32x128xf32>
    %cst_138 = arith.constant 9.99999974E-6 : f32
    %394 = vector.broadcast %cst_138 : f32 to vector<32x1xf32>
    %395 = arith.addf %391, %394 : vector<32x1xf32>
    %396 = math.rsqrt %395 : vector<32x1xf32>
    %397 = vector.broadcast %396 : vector<32x1xf32> to vector<32x128xf32>
    %398 = arith.mulf %393, %397 : vector<32x128xf32>
    %399 = vector.broadcast %379 : vector<1x128xf32> to vector<32x128xf32>
    %400 = arith.mulf %398, %399 : vector<32x128xf32>
    %401 = vector.broadcast %380 : vector<1x128xf32> to vector<32x128xf32>
    %402 = arith.addf %400, %401 : vector<32x128xf32>
    %403 = vector.extract_strided_slice %402 {offsets = [0, 0], sizes = [16, 128], strides = [1, 1]} : vector<32x128xf32> to vector<16x128xf32>
    %cst_139 = arith.constant dense<0.000000e+00> : vector<128xf32>
    %404 = vector.multi_reduction <add>, %403, %cst_139 [0] : vector<16x128xf32> to vector<128xf32>
    %405 = vector.shape_cast %404 : vector<128xf32> to vector<1x128xf32>
    %cst_140 = arith.constant 1.600000e+01 : f32
    %406 = vector.broadcast %cst_140 : f32 to vector<1x128xf32>
    %407 = arith.divf %405, %406 : vector<1x128xf32>
    %408 = vector.extract_strided_slice %402 {offsets = [16, 0], sizes = [16, 128], strides = [1, 1]} : vector<32x128xf32> to vector<16x128xf32>
    %cst_141 = arith.constant dense<0.000000e+00> : vector<128xf32>
    %409 = vector.multi_reduction <add>, %408, %cst_141 [0] : vector<16x128xf32> to vector<128xf32>
    %410 = vector.shape_cast %409 : vector<128xf32> to vector<1x128xf32>
    %cst_142 = arith.constant 1.600000e+01 : f32
    %411 = vector.broadcast %cst_142 : f32 to vector<1x128xf32>
    %412 = arith.divf %410, %411 : vector<1x128xf32>
    %413 = tpu.concatenate %407, %412 in 0 : vector<1x128xf32>, vector<1x128xf32> -> vector<2x128xf32>
    %414 = arith.truncf %413 : vector<2x128xf32> to vector<2x128xbf16>
    %c0_143 = arith.constant 0 : index
    %c0_144 = arith.constant 0 : index
    %415 = vector.load %arg10[%c0_143, %c0_144] : memref<128x256xbf16, #tpu.memory_space<vmem>>, vector<128x256xbf16>
    %cst_145 = arith.constant dense<0.000000e+00> : vector<2x256xf32>
    %416 = tpu.matmul %414, %415, %cst_145 {dimension_numbers = #tpu.dot_dimension_numbers<[1], [0], [0], [1], [0, 0, 1, 1], [], []>} : vector<2x128xbf16>, vector<128x256xbf16>, vector<2x256xf32> -> vector<2x256xf32>
    %c23 = arith.constant 23 : index
    %c0_146 = arith.constant 0 : index
    %417 = vector.load %arg2[%c23, %c0_146] : memref<32x384xf32, #tpu.memory_space<vmem>>, vector<1x256xf32>
    %418 = vector.broadcast %417 : vector<1x256xf32> to vector<2x256xf32>
    %419 = arith.addf %416, %418 : vector<2x256xf32>
    %c24 = arith.constant 24 : index
    %c0_147 = arith.constant 0 : index
    %420 = vector.load %arg2[%c24, %c0_147] : memref<32x384xf32, #tpu.memory_space<vmem>>, vector<2x256xf32>
    %421 = vector.extract_strided_slice %420 {offsets = [0, 0], sizes = [1, 256], strides = [1, 1]} : vector<2x256xf32> to vector<1x256xf32>
    %422 = vector.extract_strided_slice %420 {offsets = [1, 0], sizes = [1, 256], strides = [1, 1]} : vector<2x256xf32> to vector<1x256xf32>
    %cst_148 = arith.constant dense<0.000000e+00> : vector<2xf32>
    %423 = vector.multi_reduction <add>, %419, %cst_148 [1] : vector<2x256xf32> to vector<2xf32>
    %424 = vector.shape_cast %423 : vector<2xf32> to vector<2x1xf32>
    %cst_149 = arith.constant 2.560000e+02 : f32
    %425 = vector.broadcast %cst_149 : f32 to vector<2x1xf32>
    %426 = arith.divf %424, %425 : vector<2x1xf32>
    %427 = vector.broadcast %426 : vector<2x1xf32> to vector<2x256xf32>
    %428 = arith.subf %419, %427 : vector<2x256xf32>
    %429 = arith.mulf %428, %428 : vector<2x256xf32>
    %cst_150 = arith.constant dense<0.000000e+00> : vector<2xf32>
    %430 = vector.multi_reduction <add>, %429, %cst_150 [1] : vector<2x256xf32> to vector<2xf32>
    %431 = vector.shape_cast %430 : vector<2xf32> to vector<2x1xf32>
    %cst_151 = arith.constant 2.560000e+02 : f32
    %432 = vector.broadcast %cst_151 : f32 to vector<2x1xf32>
    %433 = arith.divf %431, %432 : vector<2x1xf32>
    %434 = vector.broadcast %426 : vector<2x1xf32> to vector<2x256xf32>
    %435 = arith.subf %419, %434 : vector<2x256xf32>
    %cst_152 = arith.constant 9.99999974E-6 : f32
    %436 = vector.broadcast %cst_152 : f32 to vector<2x1xf32>
    %437 = arith.addf %433, %436 : vector<2x1xf32>
    %438 = math.rsqrt %437 : vector<2x1xf32>
    %439 = vector.broadcast %438 : vector<2x1xf32> to vector<2x256xf32>
    %440 = arith.mulf %435, %439 : vector<2x256xf32>
    %441 = vector.broadcast %421 : vector<1x256xf32> to vector<2x256xf32>
    %442 = arith.mulf %440, %441 : vector<2x256xf32>
    %443 = vector.broadcast %422 : vector<1x256xf32> to vector<2x256xf32>
    %444 = arith.addf %442, %443 : vector<2x256xf32>
    %cst_153 = arith.constant 0.000000e+00 : f32
    %445 = vector.broadcast %cst_153 : f32 to vector<2x256xf32>
    %446 = arith.maximumf %444, %445 : vector<2x256xf32>
    %447 = arith.truncf %446 : vector<2x256xf32> to vector<2x256xbf16>
    %c0_154 = arith.constant 0 : index
    %c0_155 = arith.constant 0 : index
    %448 = vector.load %arg11[%c0_154, %c0_155] : memref<256x256xbf16, #tpu.memory_space<vmem>>, vector<256x256xbf16>
    %cst_156 = arith.constant dense<0.000000e+00> : vector<2x256xf32>
    %449 = tpu.matmul %447, %448, %cst_156 {dimension_numbers = #tpu.dot_dimension_numbers<[1], [0], [0], [1], [0, 0, 1, 1], [], []>} : vector<2x256xbf16>, vector<256x256xbf16>, vector<2x256xf32> -> vector<2x256xf32>
    %c26 = arith.constant 26 : index
    %c0_157 = arith.constant 0 : index
    %450 = vector.load %arg2[%c26, %c0_157] : memref<32x384xf32, #tpu.memory_space<vmem>>, vector<1x256xf32>
    %451 = vector.broadcast %450 : vector<1x256xf32> to vector<2x256xf32>
    %452 = arith.addf %449, %451 : vector<2x256xf32>
    %c0_158 = arith.constant 0 : index
    %c0_159 = arith.constant 0 : index
    %c0_160 = arith.constant 0 : index
    %453 = vector.load %arg12[%c0_158, %c0_159, %c0_160] : memref<1x2x256xf32, #tpu.memory_space<vmem>>, vector<1x2x256xf32>
    %454 = vector.shape_cast %453 : vector<1x2x256xf32> to vector<2x256xf32>
    %455 = vector.shape_cast %452 : vector<2x256xf32> to vector<1x2x256xf32>
    tpu.vector_store %arg12[%c0_158, %c0_159, %c0_160], %455 {strides = array<i32>} : memref<1x2x256xf32, #tpu.memory_space<vmem>>, vector<1x2x256xf32>,
    return
  }
  func.func @transform_0(%arg0: i32) -> (i32, i32, i32) {
    %c0_i32 = arith.constant 0 : i32
    %c0_i32_0 = arith.constant 0 : i32
    %c0_i32_1 = arith.constant 0 : i32
    return %arg0, %c0_i32, %c0_i32_0 : i32, i32, i32
  }
  func.func @transform_1(%arg0: i32) -> (i32, i32) {
    %c0_i32 = arith.constant 0 : i32
    %c0_i32_0 = arith.constant 0 : i32
    %c0_i32_1 = arith.constant 0 : i32
    return %c0_i32, %c0_i32_0 : i32, i32
  }
  func.func @transform_2(%arg0: i32) -> (i32, i32) {
    %c0_i32 = arith.constant 0 : i32
    %c0_i32_0 = arith.constant 0 : i32
    %c0_i32_1 = arith.constant 0 : i32
    return %c0_i32, %c0_i32_0 : i32, i32
  }
  func.func @transform_3(%arg0: i32) -> (i32, i32, i32) {
    %c0_i32 = arith.constant 0 : i32
    %c0_i32_0 = arith.constant 0 : i32
    %c0_i32_1 = arith.constant 0 : i32
    %c0_i32_2 = arith.constant 0 : i32
    return %c0_i32, %c0_i32_0, %c0_i32_1 : i32, i32, i32
  }
  func.func @transform_4(%arg0: i32) -> (i32, i32) {
    %c0_i32 = arith.constant 0 : i32
    %c0_i32_0 = arith.constant 0 : i32
    %c0_i32_1 = arith.constant 0 : i32
    return %c0_i32, %c0_i32_0 : i32, i32
  }
  func.func @transform_5(%arg0: i32) -> (i32, i32, i32) {
    %c0_i32 = arith.constant 0 : i32
    %c0_i32_0 = arith.constant 0 : i32
    %c0_i32_1 = arith.constant 0 : i32
    %c0_i32_2 = arith.constant 0 : i32
    return %c0_i32, %c0_i32_0, %c0_i32_1 : i32, i32, i32
  }
  func.func @transform_6(%arg0: i32) -> (i32, i32, i32) {
    %c0_i32 = arith.constant 0 : i32
    %c0_i32_0 = arith.constant 0 : i32
    %c0_i32_1 = arith.constant 0 : i32
    %c0_i32_2 = arith.constant 0 : i32
    return %c0_i32, %c0_i32_0, %c0_i32_1 : i32, i32, i32
  }
  func.func @transform_7(%arg0: i32) -> (i32, i32, i32) {
    %c0_i32 = arith.constant 0 : i32
    %c0_i32_0 = arith.constant 0 : i32
    %c0_i32_1 = arith.constant 0 : i32
    %c0_i32_2 = arith.constant 0 : i32
    return %c0_i32, %c0_i32_0, %c0_i32_1 : i32, i32, i32
  }
  func.func @transform_8(%arg0: i32) -> (i32, i32, i32) {
    %c0_i32 = arith.constant 0 : i32
    %c0_i32_0 = arith.constant 0 : i32
    %c0_i32_1 = arith.constant 0 : i32
    %c0_i32_2 = arith.constant 0 : i32
    return %c0_i32, %c0_i32_0, %c0_i32_1 : i32, i32, i32
  }
  func.func @transform_9(%arg0: i32) -> (i32, i32) {
    %c0_i32 = arith.constant 0 : i32
    %c0_i32_0 = arith.constant 0 : i32
    %c0_i32_1 = arith.constant 0 : i32
    return %c0_i32, %c0_i32_0 : i32, i32
  }
  func.func @transform_10(%arg0: i32) -> (i32, i32) {
    %c0_i32 = arith.constant 0 : i32
    %c0_i32_0 = arith.constant 0 : i32
    %c0_i32_1 = arith.constant 0 : i32
    return %c0_i32, %c0_i32_0 : i32, i32
  }
  func.func @transform_11(%arg0: i32) -> (i32, i32, i32) {
    %c0_i32 = arith.constant 0 : i32
    %c0_i32_0 = arith.constant 0 : i32
    %c0_i32_1 = arith.constant 0 : i32
    return %arg0, %c0_i32, %c0_i32_0 : i32, i32, i32
  }
}

</mosaic_0001>

<llo_original>
// kernel: hubert_module_forward.1
$region0: #{hubert_module_forward.1}
  #allocation0 [shape = 'u32[]', space=smem, size = 0x4, offset = 0x4, fixed_abs, tag = 'smem constant byte address 0x4 - core index']
  #allocation1 [shape = 'u32[144,128]{1,0:T(1,128)}', space=vmem, size = 0x12000, scoped, tag = 'internal scratch']
  %s0 = inlined_call_operand.vmem [shape: f32[1,128,4], index: 0, kind: input, shape index: {}]
  %s1 = inlined_call_operand.hbm [shape: f32[32,384], index: 1, kind: input, shape index: {}]
  %s2 = inlined_call_operand.vmem [shape: bf16[4,32], index: 2, kind: input, shape index: {}]
  %s3 = inlined_call_operand.hbm [shape: bf16[4,32,64], index: 3, kind: input, shape index: {}]
  %s4 = inlined_call_operand.vmem [shape: bf16[64,128], index: 4, kind: input, shape index: {}]
  %s5 = inlined_call_operand.vmem [shape: bf16[2,128,384], index: 5, kind: input, shape index: {}]
  %s6 = inlined_call_operand.hbm [shape: bf16[2,128,128], index: 6, kind: input, shape index: {}]
  %s7 = inlined_call_operand.hbm [shape: bf16[2,128,256], index: 7, kind: input, shape index: {}]
  %s8 = inlined_call_operand.hbm [shape: bf16[2,256,128], index: 8, kind: input, shape index: {}]
  %s9 = inlined_call_operand.hbm [shape: bf16[128,256], index: 9, kind: input, shape index: {}]
  %s10 = inlined_call_operand.hbm [shape: bf16[256,256], index: 10, kind: input, shape index: {}]
  %s11 = inlined_call_operand.hbm [shape: f32[1,2,256], index: 11, kind: output, shape index: {}]
  %s12 = sld [smem:[#allocation0]]
  $region82: #{hubert_module_forward.1} parent=0
    _
  %s14 = ssub.s32 1, %s12
  %s15 = scalar_select 0, %s14, %s12
  $region1: #{hubert_module_forward.1} parent=0
    #allocation2 [shape = 'u8[49152]{0}', space=vmem, size = 0xc000, scoped, tag = 'input window, operand 1, single buffered']
    #allocation3 [shape = 's32[1]{0}', space=sflag, size = 0x4, scoped, tag = 'scoped memory for hubert_module_forward.1']
    #allocation4 [shape = 's32[1]{0}', space=sflag, size = 0x4, scoped, tag = 'scoped memory for hubert_module_forward.1']
    #allocation5 [shape = 'u8[32768]{0}', space=vmem, size = 0x8000, scoped, tag = 'input window, operand 3, single buffered']
    #allocation6 [shape = 's32[1]{0}', space=sflag, size = 0x4, scoped, tag = 'scoped memory for hubert_module_forward.1']
    #allocation7 [shape = 'u8[65536]{0}', space=vmem, size = 0x10000, scoped, tag = 'input window, operand 6, single buffered']
    #allocation8 [shape = 'u8[131072]{0}', space=vmem, size = 0x20000, scoped, tag = 'input window, operand 7, single buffered']
    #allocation9 [shape = 's32[1]{0}', space=sflag, size = 0x4, scoped, tag = 'scoped memory for hubert_module_forward.1']
    #allocation10 [shape = 'u8[131072]{0}', space=vmem, size = 0x20000, scoped, tag = 'input window, operand 8, single buffered']
    #allocation11 [shape = 'u8[65536]{0}', space=vmem, size = 0x10000, scoped, tag = 'input window, operand 9, single buffered']
    #allocation12 [shape = 's32[1]{0}', space=sflag, size = 0x4, scoped, tag = 'scoped memory for hubert_module_forward.1']
    #allocation13 [shape = 'u8[131072]{0}', space=vmem, size = 0x20000, scoped, tag = 'input window, operand 10, single buffered']
    #allocation14 [shape = 'u8[2048]{0}', space=vmem, size = 0x800, scoped, tag = 'output window, operand 0, single buffered']
    %16 = vsyncpa [#allocation3], 0
    %17 = vsyncpa [#allocation6], 0
    %18 = vsyncpa [#allocation9], 0
    %19 = vsyncpa [#allocation12], 0
    %20 = vsyncpa [#allocation4], 0
    // Predicated region
    $region2: #{hubert_module_forward.1} parent=1 // pred_check
      _
    $region3: #{hubert_module_forward.1} parent=1 // pred_check_branch
      %22 = sbr.rel (0) target = $region5
    $region4: #{hubert_module_forward.1} parent=1 // pred_region
      _
    $region5: #{hubert_module_forward.1} parent=1 // pred_fallthru
      _
    // Predicated region
    $region6: #{hubert_module_forward.1} parent=1 // pred_check
      _
    $region7: #{hubert_module_forward.1} parent=1 // pred_check_branch
      %24 = sbr.rel (0) target = $region9
    $region8: #{hubert_module_forward.1} parent=1 // pred_region
      %s26 = ssub.s32 1536, 1536
      %27 = vsyncadd [#allocation3], %s26
      %s28 = sshll.u32 [#allocation2], 4
      %s29 = int_to_ptr.vmem [resolvable:$true] %s28
      %34 = dma.hbm_to_vmem [thread:$0]  %s1, 1536, %s29, [#allocation3], 384, 384, 24
    $region9: #{hubert_module_forward.1} parent=1 // pred_fallthru
      _
    // Predicated region
    $region10: #{hubert_module_forward.1} parent=1 // pred_check
      _
    $region11: #{hubert_module_forward.1} parent=1 // pred_check_branch
      %36 = sbr.rel (0) target = $region13
    $region12: #{hubert_module_forward.1} parent=1 // pred_region
      _
    $region13: #{hubert_module_forward.1} parent=1 // pred_fallthru
      _
    // Predicated region
    $region14: #{hubert_module_forward.1} parent=1 // pred_check
      _
    $region15: #{hubert_module_forward.1} parent=1 // pred_check_branch
      %38 = sbr.rel (0) target = $region17
    $region16: #{hubert_module_forward.1} parent=1 // pred_region
      %s40 = ssub.s32 1024, 1024
      %41 = vsyncadd [#allocation6], %s40
      %s42 = sshll.u32 [#allocation5], 4
      %s43 = int_to_ptr.vmem [resolvable:$true] %s42
      %48 = dma.hbm_to_vmem [thread:$0]  %s3, 1024, %s43, [#allocation6], 64, 64, 4
    $region17: #{hubert_module_forward.1} parent=1 // pred_fallthru
      _
    // Predicated region
    $region18: #{hubert_module_forward.1} parent=1 // pred_check
      _
    $region19: #{hubert_module_forward.1} parent=1 // pred_check_branch
      %50 = sbr.rel (0) target = $region21
    $region20: #{hubert_module_forward.1} parent=1 // pred_region
      _
    $region21: #{hubert_module_forward.1} parent=1 // pred_fallthru
      _
    // Predicated region
    $region22: #{hubert_module_forward.1} parent=1 // pred_check
      _
    $region23: #{hubert_module_forward.1} parent=1 // pred_check_branch
      %52 = sbr.rel (0) target = $region25
    $region24: #{hubert_module_forward.1} parent=1 // pred_region
      _
    $region25: #{hubert_module_forward.1} parent=1 // pred_fallthru
      _
    // Predicated region
    $region26: #{hubert_module_forward.1} parent=1 // pred_check
      _
    $region27: #{hubert_module_forward.1} parent=1 // pred_check_branch
      %54 = sbr.rel (0) target = $region29
    $region28: #{hubert_module_forward.1} parent=1 // pred_region
      %s56 = ssub.s32 2048, 2048
      %57 = vsyncadd [#allocation6], %s56
      %s58 = sshll.u32 [#allocation7], 4
      %s59 = int_to_ptr.vmem [resolvable:$true] %s58
      %64 = dma.hbm_to_vmem [thread:$0]  %s6, 2048, %s59, [#allocation6], 64, 64, 4
    $region29: #{hubert_module_forward.1} parent=1 // pred_fallthru
      _
    // Predicated region
    $region30: #{hubert_module_forward.1} parent=1 // pred_check
      _
    $region31: #{hubert_module_forward.1} parent=1 // pred_check_branch
      %66 = sbr.rel (0) target = $region33
    $region32: #{hubert_module_forward.1} parent=1 // pred_region
      %s68 = ssub.s32 4096, 4096
      %69 = vsyncadd [#allocation9], %s68
      %s70 = sshll.u32 [#allocation8], 4
      %s71 = int_to_ptr.vmem [resolvable:$true] %s70
      %76 = dma.hbm_to_vmem [thread:$0]  %s7, 4096, %s71, [#allocation9], 128, 128, 8
    $region33: #{hubert_module_forward.1} parent=1 // pred_fallthru
      _
    // Predicated region
    $region34: #{hubert_module_forward.1} parent=1 // pred_check
      _
    $region35: #{hubert_module_forward.1} parent=1 // pred_check_branch
      %78 = sbr.rel (0) target = $region37
    $region36: #{hubert_module_forward.1} parent=1 // pred_region
      %s80 = ssub.s32 4096, 4096
      %81 = vsyncadd [#allocation9], %s80
      %s82 = sshll.u32 [#allocation10], 4
      %s83 = int_to_ptr.vmem [resolvable:$true] %s82
      %88 = dma.hbm_to_vmem [thread:$0]  %s8, 4096, %s83, [#allocation9], 64, 64, 4
    $region37: #{hubert_module_forward.1} parent=1 // pred_fallthru
      _
    // Predicated region
    $region38: #{hubert_module_forward.1} parent=1 // pred_check
      _
    $region39: #{hubert_module_forward.1} parent=1 // pred_check_branch
      %90 = sbr.rel (0) target = $region41
    $region40: #{hubert_module_forward.1} parent=1 // pred_region
      %s92 = ssub.s32 2048, 2048
      %93 = vsyncadd [#allocation12], %s92
      %s94 = sshll.u32 [#allocation11], 4
      %s95 = int_to_ptr.vmem [resolvable:$true] %s94
      %100 = dma.hbm_to_vmem [thread:$0]  %s9, 2048, %s95, [#allocation12], 128, 128, 8
    $region41: #{hubert_module_forward.1} parent=1 // pred_fallthru
      _
    // Predicated region
    $region42: #{hubert_module_forward.1} parent=1 // pred_check
      _
    $region43: #{hubert_module_forward.1} parent=1 // pred_check_branch
      %102 = sbr.rel (0) target = $region45
    $region44: #{hubert_module_forward.1} parent=1 // pred_region
      %s104 = ssub.s32 4096, 4096
      %105 = vsyncadd [#allocation12], %s104
      %s106 = sshll.u32 [#allocation13], 4
      %s107 = int_to_ptr.vmem [resolvable:$true] %s106
      %112 = dma.hbm_to_vmem [thread:$0]  %s10, 4096, %s107, [#allocation12], 128, 128, 8
    $region45: #{hubert_module_forward.1} parent=1 // pred_fallthru
      _
    // Predicated region
    $region46: #{hubert_module_forward.1} parent=1 // pred_check
      _
    $region47: #{hubert_module_forward.1} parent=1 // pred_check_branch
      %114 = sbr.rel (0) target = $region49
    $region48: #{hubert_module_forward.1} parent=1 // pred_region
      %115 = dma.done [#allocation3], 1536
    $region49: #{hubert_module_forward.1} parent=1 // pred_fallthru
      _
    // Predicated region
    $region50: #{hubert_module_forward.1} parent=1 // pred_check
      _
    $region51: #{hubert_module_forward.1} parent=1 // pred_check_branch
      %117 = sbr.rel (0) target = $region53
    $region52: #{hubert_module_forward.1} parent=1 // pred_region
      %118 = dma.done [#allocation6], 1024
    $region53: #{hubert_module_forward.1} parent=1 // pred_fallthru
      _
    // Predicated region
    $region54: #{hubert_module_forward.1} parent=1 // pred_check
      _
    $region55: #{hubert_module_forward.1} parent=1 // pred_check_branch
      %120 = sbr.rel (0) target = $region57
    $region56: #{hubert_module_forward.1} parent=1 // pred_region
      %121 = dma.done [#allocation6], 2048
    $region57: #{hubert_module_forward.1} parent=1 // pred_fallthru
      _
    // Predicated region
    $region58: #{hubert_module_forward.1} parent=1 // pred_check
      _
    $region59: #{hubert_module_forward.1} parent=1 // pred_check_branch
      %123 = sbr.rel (0) target = $region61
    $region60: #{hubert_module_forward.1} parent=1 // pred_region
      %124 = dma.done [#allocation9], 4096
    $region61: #{hubert_module_forward.1} parent=1 // pred_fallthru
      _
    // Predicated region
    $region62: #{hubert_module_forward.1} parent=1 // pred_check
      _
    $region63: #{hubert_module_forward.1} parent=1 // pred_check_branch
      %126 = sbr.rel (0) target = $region65
    $region64: #{hubert_module_forward.1} parent=1 // pred_region
      %127 = dma.done [#allocation9], 4096
    $region65: #{hubert_module_forward.1} parent=1 // pred_fallthru
      _
    // Predicated region
    $region66: #{hubert_module_forward.1} parent=1 // pred_check
      _
    $region67: #{hubert_module_forward.1} parent=1 // pred_check_branch
      %129 = sbr.rel (0) target = $region69
    $region68: #{hubert_module_forward.1} parent=1 // pred_region
      %130 = dma.done [#allocation12], 2048
    $region69: #{hubert_module_forward.1} parent=1 // pred_fallthru
      _
    // Predicated region
    $region70: #{hubert_module_forward.1} parent=1 // pred_check
      _
    $region71: #{hubert_module_forward.1} parent=1 // pred_check_branch
      %132 = sbr.rel (0) target = $region73
    $region72: #{hubert_module_forward.1} parent=1 // pred_region
      %133 = dma.done [#allocation12], 4096
    $region73: #{hubert_module_forward.1} parent=1 // pred_fallthru
      _
    %v135 = vld [vmem:[%s0] sm:$0xff]
    %v136 = vld [vmem:[%s0 + $0x8] sm:$0xff]
    %v137 = vld [vmem:[%s0 + $0x10] sm:$0xff]
    %v138 = vld [vmem:[%s0 + $0x18] sm:$0xff]
    %v139 = vld [vmem:[%s0 + $0x20] sm:$0xff]
    %v140 = vld [vmem:[%s0 + $0x28] sm:$0xff]
    %v141 = vld [vmem:[%s0 + $0x30] sm:$0xff]
    %v142 = vld [vmem:[%s0 + $0x38] sm:$0xff]
    %v143 = vld [vmem:[%s0 + $0x40] sm:$0xff]
    %v144 = vld [vmem:[%s0 + $0x48] sm:$0xff]
    %v145 = vld [vmem:[%s0 + $0x50] sm:$0xff]
    %v146 = vld [vmem:[%s0 + $0x58] sm:$0xff]
    %v147 = vld [vmem:[%s0 + $0x60] sm:$0xff]
    %v148 = vld [vmem:[%s0 + $0x68] sm:$0xff]
    %v149 = vld [vmem:[%s0 + $0x70] sm:$0xff]
    %v150 = vld [vmem:[%s0 + $0x78] sm:$0xff]
    %v151 = vpack.c.bf16 %v136, %v135
    %v152 = vpack.c.bf16 %v138, %v137
    %v153 = vpack.c.bf16 %v140, %v139
    %v154 = vpack.c.bf16 %v142, %v141
    %v155 = vpack.c.bf16 %v144, %v143
    %v156 = vpack.c.bf16 %v146, %v145
    %v157 = vpack.c.bf16 %v148, %v147
    %v158 = vpack.c.bf16 %v150, %v149
    %v159 = vld [vmem:[%s2] sm:$0x3]
    %v160 = vld [vmem:[#allocation2] ss:$0 sm:$0xff]
    %vm161 = vcmask 31744
    %v163 = vsel %vm161, %v151, 0
    %v166 = vsel %vm161, %v152, 0
    %v169 = vsel %vm161, %v153, 0
    %v172 = vsel %vm161, %v154, 0
    %v175 = vsel %vm161, %v155, 0
    %v178 = vsel %vm161, %v156, 0
    %v181 = vsel %vm161, %v157, 0
    %v184 = vsel %vm161, %v158, 0
    %vm186 = vcmask 1041408
    %v188 = vsel %vm186, %v159, 0
    %190 = vmatprep.subr.bf16.mxu0 0
    %191 = vmatpush1.bf16.msra.mxu0 %v188
    %192 = vmatprep.subr.bf16.mxu0 0
    %193 = vmatpush1.bf16.msra.mxu0 0
    %194 = vmatprep.subr.bf16.mxu0 0
    %195 = vmatpush1.bf16.msra.mxu0 0
    %196 = vmatprep.subr.bf16.mxu0 0
    %197 = vmatpush1.bf16.msra.mxu0 0
    %198 = vmatprep.subr.bf16.mxu0 0
    %199 = vmatpush1.bf16.msra.mxu0 0
    %200 = vmatprep.subr.bf16.mxu0 0
    %201 = vmatpush1.bf16.msra.mxu0 0
    %202 = vmatprep.subr.bf16.mxu0 0
    %203 = vmatpush1.bf16.msra.mxu0 0
    %204 = vmatprep.subr.bf16.mxu0 0
    %205 = vmatpush1.bf16.msra.mxu0 0
    %206 = vmatprep.subr.bf16.mxu0 0
    %207 = vmatpush1.bf16.msra.mxu0 0
    %208 = vmatprep.subr.bf16.mxu0 0
    %209 = vmatpush1.bf16.msra.mxu0 0
    %210 = vmatprep.subr.bf16.mxu0 0
    %211 = vmatpush1.bf16.msra.mxu0 0
    %212 = vmatprep.subr.bf16.mxu0 0
    %213 = vmatpush1.bf16.msra.mxu0 0
    %214 = vmatprep.subr.bf16.mxu0 0
    %215 = vmatpush1.bf16.msra.mxu0 0
    %216 = vmatprep.subr.bf16.mxu0 0
    %217 = vmatpush1.bf16.msra.mxu0 0
    %218 = vmatprep.subr.bf16.mxu0 0
    %219 = vmatpush1.bf16.msra.mxu0 0
    %220 = vmatprep.subr.bf16.mxu0 0
    %221 = vmatpush1.bf16.msra.mxu0 0
    %222 = vmatprep.mubr.bf16.mxu0 0
    %223 = vmatmul.mubr.bf16.gmra.mrb[0].mxu0 %v163
    %v224 = vpop.f32.mrb[0].mxu0
    %v225 = vadd.f32 %v160, %v224
    %v226 = vpop.f32.mrb[0].mxu0
    %v227 = vpop.f32.mrb[0].mxu0
    %v228 = vadd.f32 %v160, %v227
    %v229 = vpop.f32.mrb[0].mxu0
    %230 = vmatprep.mubr.bf16.mxu0 0
    %231 = vmatmul.mubr.bf16.gmra.mrb[0].mxu0 %v166
    %v232 = vpop.f32.mrb[0].mxu0
    %v233 = vadd.f32 %v160, %v232
    %v234 = vpop.f32.mrb[0].mxu0
    %v235 = vpop.f32.mrb[0].mxu0
    %v236 = vadd.f32 %v160, %v235
    %v237 = vpop.f32.mrb[0].mxu0
    %238 = vmatprep.mubr.bf16.mxu0 0
    %239 = vmatmul.mubr.bf16.gmra.mrb[0].mxu0 %v169
    %v240 = vpop.f32.mrb[0].mxu0
    %v241 = vadd.f32 %v160, %v240
    %v242 = vpop.f32.mrb[0].mxu0
    %v243 = vpop.f32.mrb[0].mxu0
    %v244 = vadd.f32 %v160, %v243
    %v245 = vpop.f32.mrb[0].mxu0
    %246 = vmatprep.mubr.bf16.mxu0 0
    %247 = vmatmul.mubr.bf16.gmra.mrb[0].mxu0 %v172
    %v248 = vpop.f32.mrb[0].mxu0
    %v249 = vadd.f32 %v160, %v248
    %v250 = vpop.f32.mrb[0].mxu0
    %v251 = vpop.f32.mrb[0].mxu0
    %v252 = vadd.f32 %v160, %v251
    %v253 = vpop.f32.mrb[0].mxu0
    %254 = vmatprep.mubr.bf16.mxu0 0
    %255 = vmatmul.mubr.bf16.gmra.mrb[0].mxu0 %v175
    %v256 = vpop.f32.mrb[0].mxu0
    %v257 = vadd.f32 %v160, %v256
    %v258 = vpop.f32.mrb[0].mxu0
    %v259 = vpop.f32.mrb[0].mxu0
    %v260 = vadd.f32 %v160, %v259
    %v261 = vpop.f32.mrb[0].mxu0
    %262 = vmatprep.mubr.bf16.mxu0 0
    %263 = vmatmul.mubr.bf16.gmra.mrb[0].mxu0 %v178
    %v264 = vpop.f32.mrb[0].mxu0
    %v265 = vadd.f32 %v160, %v264
    %v266 = vpop.f32.mrb[0].mxu0
    %v267 = vpop.f32.mrb[0].mxu0
    %v268 = vadd.f32 %v160, %v267
    %v269 = vpop.f32.mrb[0].mxu0
    %270 = vmatprep.mubr.bf16.mxu0 0
    %271 = vmatmul.mubr.bf16.gmra.mrb[0].mxu0 %v181
    %v272 = vpop.f32.mrb[0].mxu0
    %v273 = vadd.f32 %v160, %v272
    %v274 = vpop.f32.mrb[0].mxu0
    %v275 = vpop.f32.mrb[0].mxu0
    %v276 = vadd.f32 %v160, %v275
    %v277 = vpop.f32.mrb[0].mxu0
    %278 = vmatprep.mubr.bf16.mxu0 0
    %279 = vmatmul.mubr.bf16.gmra.mrb[0].mxu0 %v184
    %v280 = vpop.f32.mrb[0].mxu0
    %v281 = vadd.f32 %v160, %v280
    %v282 = vpop.f32.mrb[0].mxu0
    %v283 = vpop.f32.mrb[0].mxu0
    %v284 = vadd.f32 %v160, %v283
    %v285 = vpop.f32.mrb[0].mxu0
    %286 = vdwg.mxu0
    %v287 = vmul.f32 %v225, %v225
    %v288 = vmul.f32 %v228, %v228
    %v289 = vmul.f32 %v233, %v233
    %v290 = vmul.f32 %v236, %v236
    %v291 = vmul.f32 %v241, %v241
    %v292 = vmul.f32 %v244, %v244
    %v293 = vmul.f32 %v249, %v249
    %v294 = vmul.f32 %v252, %v252
    %v295 = vmul.f32 %v257, %v257
    %v296 = vmul.f32 %v260, %v260
    %v297 = vmul.f32 %v265, %v265
    %v298 = vmul.f32 %v268, %v268
    %v299 = vmul.f32 %v273, %v273
    %v300 = vmul.f32 %v276, %v276
    %v301 = vmul.f32 %v281, %v281
    %v302 = vmul.f32 %v284, %v284
    %v303 = vmul.f32 %v225, %v287
    %v304 = vmul.f32 %v228, %v288
    %v305 = vmul.f32 %v233, %v289
    %v306 = vmul.f32 %v236, %v290
    %v307 = vmul.f32 %v241, %v291
    %v308 = vmul.f32 %v244, %v292
    %v309 = vmul.f32 %v249, %v293
    %v310 = vmul.f32 %v252, %v294
    %v311 = vmul.f32 %v257, %v295
    %v312 = vmul.f32 %v260, %v296
    %v313 = vmul.f32 %v265, %v297
    %v314 = vmul.f32 %v268, %v298
    %v315 = vmul.f32 %v273, %v299
    %v316 = vmul.f32 %v276, %v300
    %v317 = vmul.f32 %v281, %v301
    %v318 = vmul.f32 %v284, %v302
    %v319 = vmul.f32 %v303, 0.044715
    %v320 = vmul.f32 %v304, 0.044715
    %v321 = vmul.f32 %v305, 0.044715
    %v322 = vmul.f32 %v306, 0.044715
    %v323 = vmul.f32 %v307, 0.044715
    %v324 = vmul.f32 %v308, 0.044715
    %v325 = vmul.f32 %v309, 0.044715
    %v326 = vmul.f32 %v310, 0.044715
    %v327 = vmul.f32 %v311, 0.044715
    %v328 = vmul.f32 %v312, 0.044715
    %v329 = vmul.f32 %v313, 0.044715
    %v330 = vmul.f32 %v314, 0.044715
    %v331 = vmul.f32 %v315, 0.044715
    %v332 = vmul.f32 %v316, 0.044715
    %v333 = vmul.f32 %v317, 0.044715
    %v334 = vmul.f32 %v318, 0.044715
    %v335 = vadd.f32 %v225, %v319
    %v336 = vadd.f32 %v228, %v320
    %v337 = vadd.f32 %v233, %v321
    %v338 = vadd.f32 %v236, %v322
    %v339 = vadd.f32 %v241, %v323
    %v340 = vadd.f32 %v244, %v324
    %v341 = vadd.f32 %v249, %v325
    %v342 = vadd.f32 %v252, %v326
    %v343 = vadd.f32 %v257, %v327
    %v344 = vadd.f32 %v260, %v328
    %v345 = vadd.f32 %v265, %v329
    %v346 = vadd.f32 %v268, %v330
    %v347 = vadd.f32 %v273, %v331
    %v348 = vadd.f32 %v276, %v332
    %v349 = vadd.f32 %v281, %v333
    %v350 = vadd.f32 %v284, %v334
    %v351 = vmul.f32 %v335, 0.7978846
    %v352 = vmul.f32 %v336, 0.7978846
    %v353 = vmul.f32 %v337, 0.7978846
    %v354 = vmul.f32 %v338, 0.7978846
    %v355 = vmul.f32 %v339, 0.7978846
    %v356 = vmul.f32 %v340, 0.7978846
    %v357 = vmul.f32 %v341, 0.7978846
    %v358 = vmul.f32 %v342, 0.7978846
    %v359 = vmul.f32 %v343, 0.7978846
    %v360 = vmul.f32 %v344, 0.7978846
    %v361 = vmul.f32 %v345, 0.7978846
    %v362 = vmul.f32 %v346, 0.7978846
    %v363 = vmul.f32 %v347, 0.7978846
    %v364 = vmul.f32 %v348, 0.7978846
    %v365 = vmul.f32 %v349, 0.7978846
    %v366 = vmul.f32 %v350, 0.7978846
    %v367 = vtanh.pop %v351
    %v368 = vtanh.pop %v352
    %v369 = vtanh.pop %v353
    %v370 = vtanh.pop %v354
    %v371 = vtanh.pop %v355
    %v372 = vtanh.pop %v356
    %v373 = vtanh.pop %v357
    %v374 = vtanh.pop %v358
    %v375 = vtanh.pop %v359
    %v376 = vtanh.pop %v360
    %v377 = vtanh.pop %v361
    %v378 = vtanh.pop %v362
    %v379 = vtanh.pop %v363
    %v380 = vtanh.pop %v364
    %v381 = vtanh.pop %v365
    %v382 = vtanh.pop %v366
    %v383 = vadd.f32 %v367, 1.0
    %v384 = vadd.f32 %v368, 1.0
    %v385 = vadd.f32 %v369, 1.0
    %v386 = vadd.f32 %v370, 1.0
    %v387 = vadd.f32 %v371, 1.0
    %v388 = vadd.f32 %v372, 1.0
    %v389 = vadd.f32 %v373, 1.0
    %v390 = vadd.f32 %v374, 1.0
    %v391 = vadd.f32 %v375, 1.0
    %v392 = vadd.f32 %v376, 1.0
    %v393 = vadd.f32 %v377, 1.0
    %v394 = vadd.f32 %v378, 1.0
    %v395 = vadd.f32 %v379, 1.0
    %v396 = vadd.f32 %v380, 1.0
    %v397 = vadd.f32 %v381, 1.0
    %v398 = vadd.f32 %v382, 1.0
    %v399 = vmul.f32 %v383, 0.5
    %v400 = vmul.f32 %v384, 0.5
    %v401 = vmul.f32 %v385, 0.5
    %v402 = vmul.f32 %v386, 0.5
    %v403 = vmul.f32 %v387, 0.5
    %v404 = vmul.f32 %v388, 0.5
    %v405 = vmul.f32 %v389, 0.5
    %v406 = vmul.f32 %v390, 0.5
    %v407 = vmul.f32 %v391, 0.5
    %v408 = vmul.f32 %v392, 0.5
    %v409 = vmul.f32 %v393, 0.5
    %v410 = vmul.f32 %v394, 0.5
    %v411 = vmul.f32 %v395, 0.5
    %v412 = vmul.f32 %v396, 0.5
    %v413 = vmul.f32 %v397, 0.5
    %v414 = vmul.f32 %v398, 0.5
    %v415 = vmul.f32 %v225, %v399
    %v416 = vmul.f32 %v228, %v400
    %v417 = vmul.f32 %v233, %v401
    %v418 = vmul.f32 %v236, %v402
    %v419 = vmul.f32 %v241, %v403
    %v420 = vmul.f32 %v244, %v404
    %v421 = vmul.f32 %v249, %v405
    %v422 = vmul.f32 %v252, %v406
    %v423 = vmul.f32 %v257, %v407
    %v424 = vmul.f32 %v260, %v408
    %v425 = vmul.f32 %v265, %v409
    %v426 = vmul.f32 %v268, %v410
    %v427 = vmul.f32 %v273, %v411
    %v428 = vmul.f32 %v276, %v412
    %v429 = vmul.f32 %v281, %v413
    %v430 = vmul.f32 %v284, %v414
    %v431 = vpack.c.bf16 %v416, %v415
    %v432 = vpack.c.bf16 %v418, %v417
    %v433 = vpack.c.bf16 %v420, %v419
    %v434 = vpack.c.bf16 %v422, %v421
    %v435 = vpack.c.bf16 %v424, %v423
    %v436 = vpack.c.bf16 %v426, %v425
    %v437 = vpack.c.bf16 %v428, %v427
    %v438 = vpack.c.bf16 %v430, %v429
    %v439 = vld [vmem:[#allocation5] sm:$0xf]
    %v440 = vld [vmem:[#allocation5 + $0x4] sm:$0xf]
    %v441 = vld [vmem:[#allocation5 + $0x8] sm:$0xf]
    %v442 = vld [vmem:[#allocation5 + $0xc] sm:$0xf]
    %s443 = scalar_lea.vmem [#allocation5], 16
    %v444 = vld [vmem:[%s443] sm:$0xf]
    %v445 = vld [vmem:[%s443 + $0x4] sm:$0xf]
    %v446 = vld [vmem:[%s443 + $0x8] sm:$0xf]
    %v447 = vld [vmem:[%s443 + $0xc] sm:$0xf]
    %v452 = vunpack.c.l.b16 %v444
    %v453 = vunpack.c.l.b16 %v445
    %v454 = vunpack.c.l.b16 %v446
    %v455 = vunpack.c.l.b16 %v447
    %v456 = vpack.c.b16 %v453, %v452
    %v457 = vpack.c.b16 %v455, %v454
    %vm460 = vcmask 261120
    %v462 = vsel %vm460, %v433, 0
    %v465 = vsel %vm460, %v434, 0
    %467 = vmatprep.subr.bf16.mxu0 0
    %468 = vmatpush1.bf16.msra.mxu0 %v456
    %469 = vmatprep.subr.bf16.mxu0 0
    %470 = vmatpush1.bf16.msra.mxu0 %v457
    %471 = vmatprep.subr.bf16.mxu0 0
    %472 = vmatpush1.bf16.msra.mxu0 0
    %473 = vmatprep.subr.bf16.mxu0 0
    %474 = vmatpush1.bf16.msra.mxu0 0
    %475 = vmatprep.subr.bf16.mxu0 0
    %476 = vmatpush1.bf16.msra.mxu0 0
    %477 = vmatprep.subr.bf16.mxu0 0
    %478 = vmatpush1.bf16.msra.mxu0 0
    %479 = vmatprep.subr.bf16.mxu0 0
    %480 = vmatpush1.bf16.msra.mxu0 0
    %481 = vmatprep.subr.bf16.mxu0 0
    %482 = vmatpush1.bf16.msra.mxu0 0
    %483 = vmatprep.subr.bf16.mxu0 0
    %484 = vmatpush1.bf16.msra.mxu0 0
    %485 = vmatprep.subr.bf16.mxu0 0
    %486 = vmatpush1.bf16.msra.mxu0 0
    %487 = vmatprep.subr.bf16.mxu0 0
    %488 = vmatpush1.bf16.msra.mxu0 0
    %489 = vmatprep.subr.bf16.mxu0 0
    %490 = vmatpush1.bf16.msra.mxu0 0
    %491 = vmatprep.subr.bf16.mxu0 0
    %492 = vmatpush1.bf16.msra.mxu0 0
    %493 = vmatprep.subr.bf16.mxu0 0
    %494 = vmatpush1.bf16.msra.mxu0 0
    %495 = vmatprep.subr.bf16.mxu0 0
    %496 = vmatpush1.bf16.msra.mxu0 0
    %497 = vmatprep.subr.bf16.mxu0 0
    %498 = vmatpush1.bf16.msra.mxu0 0
    %499 = vmatprep.mubr.bf16.mxu0 0
    %500 = vmatmul.mubr.bf16.gmra.mrb[0].mxu0 %v462
    %v501 = vpop.f32.mrb[0].mxu0
    %v502 = vadd.f32 0.0, %v501
    %v503 = vpop.f32.mrb[0].mxu0
    %v504 = vpop.f32.mrb[0].mxu0
    %v505 = vadd.f32 0.0, %v504
    %v506 = vpop.f32.mrb[0].mxu0
    %507 = vmatprep.mubr.bf16.mxu0 0
    %508 = vmatmul.mubr.bf16.gmra.mrb[0].mxu0 %v465
    %v509 = vpop.f32.mrb[0].mxu0
    %v510 = vadd.f32 0.0, %v509
    %v511 = vpop.f32.mrb[0].mxu0
    %v512 = vpop.f32.mrb[0].mxu0
    %v513 = vadd.f32 0.0, %v512
    %v514 = vpop.f32.mrb[0].mxu0
    %515 = vdwg.mxu0
    %v520 = vunpack.c.l.b16 %v439
    %v521 = vunpack.c.l.b16 %v440
    %v522 = vunpack.c.l.b16 %v441
    %v523 = vunpack.c.l.b16 %v442
    %v524 = vpack.c.b16 %v521, %v520
    %v525 = vpack.c.b16 %v523, %v522
    %v529 = vsel %vm460, %v431, 0
    %v532 = vsel %vm460, %v432, 0
    %534 = vmatprep.subr.bf16.mxu0 0
    %535 = vmatpush1.bf16.msra.mxu0 %v524
    %536 = vmatprep.subr.bf16.mxu0 0
    %537 = vmatpush1.bf16.msra.mxu0 %v525
    %538 = vmatprep.subr.bf16.mxu0 0
    %539 = vmatpush1.bf16.msra.mxu0 0
    %540 = vmatprep.subr.bf16.mxu0 0
    %541 = vmatpush1.bf16.msra.mxu0 0
    %542 = vmatprep.subr.bf16.mxu0 0
    %543 = vmatpush1.bf16.msra.mxu0 0
    %544 = vmatprep.subr.bf16.mxu0 0
    %545 = vmatpush1.bf16.msra.mxu0 0
    %546 = vmatprep.subr.bf16.mxu0 0
    %547 = vmatpush1.bf16.msra.mxu0 0
    %548 = vmatprep.subr.bf16.mxu0 0
    %549 = vmatpush1.bf16.msra.mxu0 0
    %550 = vmatprep.subr.bf16.mxu0 0
    %551 = vmatpush1.bf16.msra.mxu0 0
    %552 = vmatprep.subr.bf16.mxu0 0
    %553 = vmatpush1.bf16.msra.mxu0 0
    %554 = vmatprep.subr.bf16.mxu0 0
    %555 = vmatpush1.bf16.msra.mxu0 0
    %556 = vmatprep.subr.bf16.mxu0 0
    %557 = vmatpush1.bf16.msra.mxu0 0
    %558 = vmatprep.subr.bf16.mxu0 0
    %559 = vmatpush1.bf16.msra.mxu0 0
    %560 = vmatprep.subr.bf16.mxu0 0
    %561 = vmatpush1.bf16.msra.mxu0 0
    %562 = vmatprep.subr.bf16.mxu0 0
    %563 = vmatpush1.bf16.msra.mxu0 0
    %564 = vmatprep.subr.bf16.mxu0 0
    %565 = vmatpush1.bf16.msra.mxu0 0
    %566 = vmatprep.mubr.bf16.mxu0 0
    %567 = vmatmul.mubr.bf16.gmra.mrb[0].mxu0 %v529
    %v568 = vpop.f32.mrb[0].mxu0
    %v569 = vadd.f32 %v502, %v568
    %v570 = vpop.f32.mrb[0].mxu0
    %v571 = vpop.f32.mrb[0].mxu0
    %v572 = vadd.f32 %v505, %v571
    %v573 = vpop.f32.mrb[0].mxu0
    %574 = vmatprep.mubr.bf16.mxu0 0
    %575 = vmatmul.mubr.bf16.gmra.mrb[0].mxu0 %v532
    %v576 = vpop.f32.mrb[0].mxu0
    %v577 = vadd.f32 %v510, %v576
    %v578 = vpop.f32.mrb[0].mxu0
    %v579 = vpop.f32.mrb[0].mxu0
    %v580 = vadd.f32 %v513, %v579
    %v581 = vpop.f32.mrb[0].mxu0
    %582 = vdwg.mxu0
    %s583 = scalar_lea.vmem [#allocation5], 32
    %v584 = vld [vmem:[%s583] sm:$0xf]
    %v585 = vld [vmem:[%s583 + $0x4] sm:$0xf]
    %v586 = vld [vmem:[%s583 + $0x8] sm:$0xf]
    %v587 = vld [vmem:[%s583 + $0xc] sm:$0xf]
    %v592 = vunpack.c.l.b16 %v584
    %v593 = vunpack.c.l.b16 %v585
    %v594 = vunpack.c.l.b16 %v586
    %v595 = vunpack.c.l.b16 %v587
    %v596 = vpack.c.b16 %v593, %v592
    %v597 = vpack.c.b16 %v595, %v594
    %v601 = vsel %vm460, %v435, 0
    %v604 = vsel %vm460, %v436, 0
    %606 = vmatprep.subr.bf16.mxu0 0
    %607 = vmatpush1.bf16.msra.mxu0 %v596
    %608 = vmatprep.subr.bf16.mxu0 0
    %609 = vmatpush1.bf16.msra.mxu0 %v597
    %610 = vmatprep.subr.bf16.mxu0 0
    %611 = vmatpush1.bf16.msra.mxu0 0
    %612 = vmatprep.subr.bf16.mxu0 0
    %613 = vmatpush1.bf16.msra.mxu0 0
    %614 = vmatprep.subr.bf16.mxu0 0
    %615 = vmatpush1.bf16.msra.mxu0 0
    %616 = vmatprep.subr.bf16.mxu0 0
    %617 = vmatpush1.bf16.msra.mxu0 0
    %618 = vmatprep.subr.bf16.mxu0 0
    %619 = vmatpush1.bf16.msra.mxu0 0
    %620 = vmatprep.subr.bf16.mxu0 0
    %621 = vmatpush1.bf16.msra.mxu0 0
    %622 = vmatprep.subr.bf16.mxu0 0
    %623 = vmatpush1.bf16.msra.mxu0 0
    %624 = vmatprep.subr.bf16.mxu0 0
    %625 = vmatpush1.bf16.msra.mxu0 0
    %626 = vmatprep.subr.bf16.mxu0 0
    %627 = vmatpush1.bf16.msra.mxu0 0
    %628 = vmatprep.subr.bf16.mxu0 0
    %629 = vmatpush1.bf16.msra.mxu0 0
    %630 = vmatprep.subr.bf16.mxu0 0
    %631 = vmatpush1.bf16.msra.mxu0 0
    %632 = vmatprep.subr.bf16.mxu0 0
    %633 = vmatpush1.bf16.msra.mxu0 0
    %634 = vmatprep.subr.bf16.mxu0 0
    %635 = vmatpush1.bf16.msra.mxu0 0
    %636 = vmatprep.subr.bf16.mxu0 0
    %637 = vmatpush1.bf16.msra.mxu0 0
    %638 = vmatprep.mubr.bf16.mxu0 0
    %639 = vmatmul.mubr.bf16.gmra.mrb[0].mxu0 %v601
    %v640 = vpop.f32.mrb[0].mxu0
    %v641 = vadd.f32 0.0, %v640
    %v642 = vpop.f32.mrb[0].mxu0
    %v643 = vpop.f32.mrb[0].mxu0
    %v644 = vadd.f32 0.0, %v643
    %v645 = vpop.f32.mrb[0].mxu0
    %646 = vmatprep.mubr.bf16.mxu0 0
    %647 = vmatmul.mubr.bf16.gmra.mrb[0].mxu0 %v604
    %v648 = vpop.f32.mrb[0].mxu0
    %v649 = vadd.f32 0.0, %v648
    %v650 = vpop.f32.mrb[0].mxu0
    %v651 = vpop.f32.mrb[0].mxu0
    %v652 = vadd.f32 0.0, %v651
    %v653 = vpop.f32.mrb[0].mxu0
    %654 = vdwg.mxu0
    %v655 = vadd.f32 %v569, %v641
    %v656 = vadd.f32 %v572, %v644
    %v657 = vadd.f32 %v577, %v649
    %v658 = vadd.f32 %v580, %v652
    %s659 = scalar_lea.vmem [#allocation5], 48
    %v660 = vld [vmem:[%s659] sm:$0xf]
    %v661 = vld [vmem:[%s659 + $0x4] sm:$0xf]
    %v662 = vld [vmem:[%s659 + $0x8] sm:$0xf]
    %v663 = vld [vmem:[%s659 + $0xc] sm:$0xf]
    %v668 = vunpack.c.l.b16 %v660
    %v669 = vunpack.c.l.b16 %v661
    %v670 = vunpack.c.l.b16 %v662
    %v671 = vunpack.c.l.b16 %v663
    %v672 = vpack.c.b16 %v669, %v668
    %v673 = vpack.c.b16 %v671, %v670
    %v677 = vsel %vm460, %v437, 0
    %v680 = vsel %vm460, %v438, 0
    %682 = vmatprep.subr.bf16.mxu0 0
    %683 = vmatpush1.bf16.msra.mxu0 %v672
    %684 = vmatprep.subr.bf16.mxu0 0
    %685 = vmatpush1.bf16.msra.mxu0 %v673
    %686 = vmatprep.subr.bf16.mxu0 0
    %687 = vmatpush1.bf16.msra.mxu0 0
    %688 = vmatprep.subr.bf16.mxu0 0
    %689 = vmatpush1.bf16.msra.mxu0 0
    %690 = vmatprep.subr.bf16.mxu0 0
    %691 = vmatpush1.bf16.msra.mxu0 0
    %692 = vmatprep.subr.bf16.mxu0 0
    %693 = vmatpush1.bf16.msra.mxu0 0
    %694 = vmatprep.subr.bf16.mxu0 0
    %695 = vmatpush1.bf16.msra.mxu0 0
    %696 = vmatprep.subr.bf16.mxu0 0
    %697 = vmatpush1.bf16.msra.mxu0 0
    %698 = vmatprep.subr.bf16.mxu0 0
    %699 = vmatpush1.bf16.msra.mxu0 0
    %700 = vmatprep.subr.bf16.mxu0 0
    %701 = vmatpush1.bf16.msra.mxu0 0
    %702 = vmatprep.subr.bf16.mxu0 0
    %703 = vmatpush1.bf16.msra.mxu0 0
    %704 = vmatprep.subr.bf16.mxu0 0
    %705 = vmatpush1.bf16.msra.mxu0 0
    %706 = vmatprep.subr.bf16.mxu0 0
    %707 = vmatpush1.bf16.msra.mxu0 0
    %708 = vmatprep.subr.bf16.mxu0 0
    %709 = vmatpush1.bf16.msra.mxu0 0
    %710 = vmatprep.subr.bf16.mxu0 0
    %711 = vmatpush1.bf16.msra.mxu0 0
    %712 = vmatprep.subr.bf16.mxu0 0
    %713 = vmatpush1.bf16.msra.mxu0 0
    %714 = vmatprep.mubr.bf16.mxu0 0
    %715 = vmatmul.mubr.bf16.gmra.mrb[0].mxu0 %v677
    %v716 = vpop.f32.mrb[0].mxu0
    %v717 = vadd.f32 0.0, %v716
    %v718 = vpop.f32.mrb[0].mxu0
    %v719 = vpop.f32.mrb[0].mxu0
    %v720 = vadd.f32 0.0, %v719
    %v721 = vpop.f32.mrb[0].mxu0
    %722 = vmatprep.mubr.bf16.mxu0 0
    %723 = vmatmul.mubr.bf16.gmra.mrb[0].mxu0 %v680
    %v724 = vpop.f32.mrb[0].mxu0
    %v725 = vadd.f32 0.0, %v724
    %v726 = vpop.f32.mrb[0].mxu0
    %v727 = vpop.f32.mrb[0].mxu0
    %v728 = vadd.f32 0.0, %v727
    %v729 = vpop.f32.mrb[0].mxu0
    %730 = vdwg.mxu0
    %v731 = vadd.f32 %v655, %v717
    %v732 = vadd.f32 %v656, %v720
    %v733 = vadd.f32 %v657, %v725
    %v734 = vadd.f32 %v658, %v728
    %v735 = vld [vmem:[#allocation2 + $0x1] ss:$0 sm:$0xff]
    %v736 = vadd.f32 %v731, %v735
    %v737 = vadd.f32 %v732, %v735
    %v738 = vadd.f32 %v733, %v735
    %v739 = vadd.f32 %v734, %v735
    %v740 = vmul.f32 %v736, %v736
    %v741 = vmul.f32 %v737, %v737
    %v742 = vmul.f32 %v738, %v738
    %v743 = vmul.f32 %v739, %v739
    %v744 = vmul.f32 %v736, %v740
    %v745 = vmul.f32 %v737, %v741
    %v746 = vmul.f32 %v738, %v742
    %v747 = vmul.f32 %v739, %v743
    %v748 = vmul.f32 %v744, 0.044715
    %v749 = vmul.f32 %v745, 0.044715
    %v750 = vmul.f32 %v746, 0.044715
    %v751 = vmul.f32 %v747, 0.044715
    %v752 = vadd.f32 %v736, %v748
    %v753 = vadd.f32 %v737, %v749
    %v754 = vadd.f32 %v738, %v750
    %v755 = vadd.f32 %v739, %v751
    %v756 = vmul.f32 %v752, 0.7978846
    %v757 = vmul.f32 %v753, 0.7978846
    %v758 = vmul.f32 %v754, 0.7978846
    %v759 = vmul.f32 %v755, 0.7978846
    %v760 = vtanh.pop %v756
    %v761 = vtanh.pop %v757
    %v762 = vtanh.pop %v758
    %v763 = vtanh.pop %v759
    %v764 = vadd.f32 %v760, 1.0
    %v765 = vadd.f32 %v761, 1.0
    %v766 = vadd.f32 %v762, 1.0
    %v767 = vadd.f32 %v763, 1.0
    %v768 = vmul.f32 %v764, 0.5
    %v769 = vmul.f32 %v765, 0.5
    %v770 = vmul.f32 %v766, 0.5
    %v771 = vmul.f32 %v767, 0.5
    %v772 = vmul.f32 %v736, %v768
    %v773 = vmul.f32 %v737, %v769
    %v774 = vmul.f32 %v738, %v770
    %v775 = vmul.f32 %v739, %v771
    %v776 = vld [vmem:[#allocation2] sm:$0xc]
    %vm777 = vcmask 523264
    %v778 = vsel %vm777, %v772, 0.0
    %779 = vadd.xlane.f32.xlu0 %v778
    %v780 = vpop.xlane.xlu0 %779
    %v781 = vsel %vm777, %v773, 0.0
    %782 = vadd.xlane.f32.xlu0 %v781
    %v783 = vpop.xlane.xlu0 %782
    %v784 = vsel %vm777, %v774, 0.0
    %785 = vadd.xlane.f32.xlu0 %v784
    %v786 = vpop.xlane.xlu0 %785
    %v787 = vsel %vm777, %v775, 0.0
    %788 = vadd.xlane.f32.xlu0 %v787
    %v789 = vpop.xlane.xlu0 %788
    %v790 = vrcp.pop 64.0
    %v791 = vmul.f32 %v780, %v790
    %v792 = vmul.f32 %v783, %v790
    %v793 = vmul.f32 %v786, %v790
    %v794 = vmul.f32 %v789, %v790
    %v795 = vsub.f32 %v772, %v791
    %v796 = vsub.f32 %v773, %v792
    %v797 = vsub.f32 %v774, %v793
    %v798 = vsub.f32 %v775, %v794
    %v799 = vmul.f32 %v795, %v795
    %v800 = vmul.f32 %v796, %v796
    %v801 = vmul.f32 %v797, %v797
    %v802 = vmul.f32 %v798, %v798
    %v803 = vsel %vm777, %v799, 0.0
    %804 = vadd.xlane.f32.xlu0 %v803
    %v805 = vpop.xlane.xlu0 %804
    %v806 = vsel %vm777, %v800, 0.0
    %807 = vadd.xlane.f32.xlu0 %v806
    %v808 = vpop.xlane.xlu0 %807
    %v809 = vsel %vm777, %v801, 0.0
    %810 = vadd.xlane.f32.xlu0 %v809
    %v811 = vpop.xlane.xlu0 %810
    %v812 = vsel %vm777, %v802, 0.0
    %813 = vadd.xlane.f32.xlu0 %v812
    %v814 = vpop.xlane.xlu0 %813
    %v815 = vmul.f32 %v805, %v790
    %v816 = vmul.f32 %v808, %v790
    %v817 = vmul.f32 %v811, %v790
    %v818 = vmul.f32 %v814, %v790
    %v819 = vadd.f32 %v815, 1e-05
    %v820 = vadd.f32 %v816, 1e-05
    %v821 = vadd.f32 %v817, 1e-05
    %v822 = vadd.f32 %v818, 1e-05
    %v823 = vrsqrt.pop %v819
    %v824 = vrsqrt.pop %v820
    %v825 = vrsqrt.pop %v821
    %v826 = vrsqrt.pop %v822
    %v827 = vmul.f32 %v795, %v823
    %v828 = vmul.f32 %v796, %v824
    %v829 = vmul.f32 %v797, %v825
    %v830 = vmul.f32 %v798, %v826
    %v831 = vlaneseq
    %v832 = vshrl.u32 %v831, 7
    %v833 = vsub.s32 2, %v832
    %v834 = vrot.slane %v776, %v833
    %v835 = vmul.f32 %v827, %v834
    %v836 = vmul.f32 %v828, %v834
    %v837 = vmul.f32 %v829, %v834
    %v838 = vmul.f32 %v830, %v834
    %v839 = vlaneseq
    %v840 = vshrl.u32 %v839, 7
    %v841 = vsub.s32 3, %v840
    %v842 = vrot.slane %v776, %v841
    %v843 = vadd.f32 %v835, %v842
    %v844 = vadd.f32 %v836, %v842
    %v845 = vadd.f32 %v837, %v842
    %v846 = vadd.f32 %v838, %v842
    %v847 = vpack.c.bf16 %v844, %v843
    %v848 = vpack.c.bf16 %v846, %v845
    %v849 = vld [vmem:[%s4] sm:$0xf]
    %v850 = vld [vmem:[%s4 + $0x4] sm:$0xf]
    %v851 = vld [vmem:[%s4 + $0x8] sm:$0xf]
    %v852 = vld [vmem:[%s4 + $0xc] sm:$0xf]
    %v853 = vld [vmem:[%s4 + $0x10] sm:$0xf]
    %v854 = vld [vmem:[%s4 + $0x14] sm:$0xf]
    %v855 = vld [vmem:[%s4 + $0x18] sm:$0xf]
    %v856 = vld [vmem:[%s4 + $0x1c] sm:$0xf]
    %v857 = vld [vmem:[#allocation2 + $0x4] ss:$0 sm:$0xff]
    %v866 = vunpack.c.l.b16 %v849
    %v867 = vunpack.c.l.b16 %v850
    %v868 = vunpack.c.l.b16 %v851
    %v869 = vunpack.c.l.b16 %v852
    %v870 = vunpack.c.l.b16 %v853
    %v871 = vunpack.c.l.b16 %v854
    %v872 = vunpack.c.l.b16 %v855
    %v873 = vunpack.c.l.b16 %v856
    %v874 = vpack.c.b16 %v867, %v866
    %v875 = vpack.c.b16 %v869, %v868
    %v876 = vpack.c.b16 %v871, %v870
    %v877 = vpack.c.b16 %v873, %v872
    %v883 = vsel %vm777, %v847, 0
    %v886 = vsel %vm777, %v848, 0
    %888 = vmatprep.subr.bf16.mxu0 0
    %889 = vmatpush1.bf16.msra.mxu0 %v874
    %890 = vmatprep.subr.bf16.mxu0 0
    %891 = vmatpush1.bf16.msra.mxu0 %v875
    %892 = vmatprep.subr.bf16.mxu0 0
    %893 = vmatpush1.bf16.msra.mxu0 %v876
    %894 = vmatprep.subr.bf16.mxu0 0
    %895 = vmatpush1.bf16.msra.mxu0 %v877
    %896 = vmatprep.subr.bf16.mxu0 0
    %897 = vmatpush1.bf16.msra.mxu0 0
    %898 = vmatprep.subr.bf16.mxu0 0
    %899 = vmatpush1.bf16.msra.mxu0 0
    %900 = vmatprep.subr.bf16.mxu0 0
    %901 = vmatpush1.bf16.msra.mxu0 0
    %902 = vmatprep.subr.bf16.mxu0 0
    %903 = vmatpush1.bf16.msra.mxu0 0
    %904 = vmatprep.subr.bf16.mxu0 0
    %905 = vmatpush1.bf16.msra.mxu0 0
    %906 = vmatprep.subr.bf16.mxu0 0
    %907 = vmatpush1.bf16.msra.mxu0 0
    %908 = vmatprep.subr.bf16.mxu0 0
    %909 = vmatpush1.bf16.msra.mxu0 0
    %910 = vmatprep.subr.bf16.mxu0 0
    %911 = vmatpush1.bf16.msra.mxu0 0
    %912 = vmatprep.subr.bf16.mxu0 0
    %913 = vmatpush1.bf16.msra.mxu0 0
    %914 = vmatprep.subr.bf16.mxu0 0
    %915 = vmatpush1.bf16.msra.mxu0 0
    %916 = vmatprep.subr.bf16.mxu0 0
    %917 = vmatpush1.bf16.msra.mxu0 0
    %918 = vmatprep.subr.bf16.mxu0 0
    %919 = vmatpush1.bf16.msra.mxu0 0
    %920 = vmatprep.mubr.bf16.mxu0 0
    %921 = vmatmul.mubr.bf16.gmra.mrb[0].mxu0 %v883
    %v922 = vpop.f32.mrb[0].mxu0
    %v923 = vadd.f32 %v857, %v922
    %v924 = vpop.f32.mrb[0].mxu0
    %v925 = vpop.f32.mrb[0].mxu0
    %v926 = vadd.f32 %v857, %v925
    %v927 = vpop.f32.mrb[0].mxu0
    %928 = vmatprep.mubr.bf16.mxu0 0
    %929 = vmatmul.mubr.bf16.gmra.mrb[0].mxu0 %v886
    %v930 = vpop.f32.mrb[0].mxu0
    %v931 = vadd.f32 %v857, %v930
    %v932 = vpop.f32.mrb[0].mxu0
    %v933 = vpop.f32.mrb[0].mxu0
    %v934 = vadd.f32 %v857, %v933
    %v935 = vpop.f32.mrb[0].mxu0
    %936 = vdwg.mxu0
    %v937 = vld [vmem:[#allocation2] sm:$0x60]
    %938 = vadd.xlane.f32.xlu0 %v923
    %v939 = vpop.xlane.xlu0 %938
    %940 = vadd.xlane.f32.xlu0 %v926
    %v941 = vpop.xlane.xlu0 %940
    %942 = vadd.xlane.f32.xlu0 %v931
    %v943 = vpop.xlane.xlu0 %942
    %944 = vadd.xlane.f32.xlu0 %v934
    %v945 = vpop.xlane.xlu0 %944
    %v946 = vrcp.pop 128.0
    %v947 = vmul.f32 %v939, %v946
    %v948 = vmul.f32 %v941, %v946
    %v949 = vmul.f32 %v943, %v946
    %v950 = vmul.f32 %v945, %v946
    %v951 = vsub.f32 %v923, %v947
    %v952 = vsub.f32 %v926, %v948
    %v953 = vsub.f32 %v931, %v949
    %v954 = vsub.f32 %v934, %v950
    %v955 = vmul.f32 %v951, %v951
    %v956 = vmul.f32 %v952, %v952
    %v957 = vmul.f32 %v953, %v953
    %v958 = vmul.f32 %v954, %v954
    %959 = vadd.xlane.f32.xlu0 %v955
    %v960 = vpop.xlane.xlu0 %959
    %961 = vadd.xlane.f32.xlu0 %v956
    %v962 = vpop.xlane.xlu0 %961
    %963 = vadd.xlane.f32.xlu0 %v957
    %v964 = vpop.xlane.xlu0 %963
    %965 = vadd.xlane.f32.xlu0 %v958
    %v966 = vpop.xlane.xlu0 %965
    %v967 = vmul.f32 %v960, %v946
    %v968 = vmul.f32 %v962, %v946
    %v969 = vmul.f32 %v964, %v946
    %v970 = vmul.f32 %v966, %v946
    %v971 = vadd.f32 %v967, 1e-05
    %v972 = vadd.f32 %v968, 1e-05
    %v973 = vadd.f32 %v969, 1e-05
    %v974 = vadd.f32 %v970, 1e-05
    %v975 = vrsqrt.pop %v971
    %v976 = vrsqrt.pop %v972
    %v977 = vrsqrt.pop %v973
    %v978 = vrsqrt.pop %v974
    %v979 = vmul.f32 %v951, %v975
    %v980 = vmul.f32 %v952, %v976
    %v981 = vmul.f32 %v953, %v977
    %v982 = vmul.f32 %v954, %v978
    %v983 = vlaneseq
    %v984 = vshrl.u32 %v983, 7
    %v985 = vsub.s32 5, %v984
    %v986 = vrot.slane %v937, %v985
    %v987 = vmul.f32 %v979, %v986
    %v988 = vmul.f32 %v980, %v986
    %v989 = vmul.f32 %v981, %v986
    %v990 = vmul.f32 %v982, %v986
    %v991 = vlaneseq
    %v992 = vshrl.u32 %v991, 7
    %v993 = vsub.s32 6, %v992
    %v994 = vrot.slane %v937, %v993
    %v995 = vadd.f32 %v987, %v994
    %v996 = vadd.f32 %v988, %v994
    %v997 = vadd.f32 %v989, %v994
    %v998 = vadd.f32 %v990, %v994
    %v999 = vpack.c.bf16 %v996, %v995
    %v1000 = vpack.c.bf16 %v998, %v997
    %v1001 = vld [vmem:[%s5] sm:$0xff]
    %v1002 = vld [vmem:[%s5 + $0x8] sm:$0xf]
    %v1003 = vld [vmem:[%s5 + $0xc] sm:$0xff]
    %v1004 = vld [vmem:[%s5 + $0x14] sm:$0xf]
    %v1005 = vld [vmem:[%s5 + $0x18] sm:$0xff]
    %v1006 = vld [vmem:[%s5 + $0x20] sm:$0xf]
    %v1007 = vld [vmem:[%s5 + $0x24] sm:$0xff]
    %v1008 = vld [vmem:[%s5 + $0x2c] sm:$0xf]
    %v1009 = vld [vmem:[%s5 + $0x30] sm:$0xff]
    %v1010 = vld [vmem:[%s5 + $0x38] sm:$0xf]
    %v1011 = vld [vmem:[%s5 + $0x3c] sm:$0xff]
    %v1012 = vld [vmem:[%s5 + $0x44] sm:$0xf]
    %v1013 = vld [vmem:[%s5 + $0x48] sm:$0xff]
    %v1014 = vld [vmem:[%s5 + $0x50] sm:$0xf]
    %v1015 = vld [vmem:[%s5 + $0x54] sm:$0xff]
    %v1016 = vld [vmem:[%s5 + $0x5c] sm:$0xf]
    %v1017 = vld [vmem:[%s5 + $0x60] sm:$0xff]
    %v1018 = vld [vmem:[%s5 + $0x68] sm:$0xf]
    %v1019 = vld [vmem:[%s5 + $0x6c] sm:$0xff]
    %v1020 = vld [vmem:[%s5 + $0x74] sm:$0xf]
    %v1021 = vld [vmem:[%s5 + $0x78] sm:$0xff]
    %v1022 = vld [vmem:[%s5 + $0x80] sm:$0xf]
    %v1023 = vld [vmem:[%s5 + $0x84] sm:$0xff]
    %v1024 = vld [vmem:[%s5 + $0x8c] sm:$0xf]
    %v1025 = vld [vmem:[%s5 + $0x90] sm:$0xff]
    %v1026 = vld [vmem:[%s5 + $0x98] sm:$0xf]
    %v1027 = vld [vmem:[%s5 + $0x9c] sm:$0xff]
    %v1028 = vld [vmem:[%s5 + $0xa4] sm:$0xf]
    %v1029 = vld [vmem:[%s5 + $0xa8] sm:$0xff]
    %v1030 = vld [vmem:[%s5 + $0xb0] sm:$0xf]
    %v1031 = vld [vmem:[%s5 + $0xb4] sm:$0xff]
    %v1032 = vld [vmem:[%s5 + $0xbc] sm:$0xf]
    %s1033 = scalar_lea.vmem [#allocation2], 7
    %v1034 = vld [vmem:[%s1033] ss:$8 sm:$0x7]
    %v1036 = vlaneseq
    %v1037 = vshrl.u32 %v1036, 7
    %v1038 = vsub.s32 0, %v1037
    %v1039 = vrot.slane %v1034, %v1038
    %v1040 = vlaneseq
    %v1041 = vshrl.u32 %v1040, 7
    %v1042 = vsub.s32 1, %v1041
    %v1043 = vrot.slane %v1034, %v1042
    %v1044 = vlaneseq
    %v1045 = vshrl.u32 %v1044, 7
    %v1046 = vsub.s32 2, %v1045
    %v1047 = vrot.slane %v1034, %v1046
    %v1083 = vunpack.c.l.b16 %v1001
    %v1084 = vunpack.c.h.b16 %v1001
    %v1085 = vunpack.c.l.b16 %v1002
    %v1086 = vunpack.c.l.b16 %v1003
    %v1087 = vunpack.c.h.b16 %v1003
    %v1088 = vunpack.c.l.b16 %v1004
    %v1089 = vunpack.c.l.b16 %v1005
    %v1090 = vunpack.c.h.b16 %v1005
    %v1091 = vunpack.c.l.b16 %v1006
    %v1092 = vunpack.c.l.b16 %v1007
    %v1093 = vunpack.c.h.b16 %v1007
    %v1094 = vunpack.c.l.b16 %v1008
    %v1095 = vunpack.c.l.b16 %v1009
    %v1096 = vunpack.c.h.b16 %v1009
    %v1097 = vunpack.c.l.b16 %v1010
    %v1098 = vunpack.c.l.b16 %v1011
    %v1099 = vunpack.c.h.b16 %v1011
    %v1100 = vunpack.c.l.b16 %v1012
    %v1101 = vunpack.c.l.b16 %v1013
    %v1102 = vunpack.c.h.b16 %v1013
    %v1103 = vunpack.c.l.b16 %v1014
    %v1104 = vunpack.c.l.b16 %v1015
    %v1105 = vunpack.c.h.b16 %v1015
    %v1106 = vunpack.c.l.b16 %v1016
    %v1107 = vunpack.c.l.b16 %v1017
    %v1108 = vunpack.c.h.b16 %v1017
    %v1109 = vunpack.c.l.b16 %v1018
    %v1110 = vunpack.c.l.b16 %v1019
    %v1111 = vunpack.c.h.b16 %v1019
    %v1112 = vunpack.c.l.b16 %v1020
    %v1113 = vunpack.c.l.b16 %v1021
    %v1114 = vunpack.c.h.b16 %v1021
    %v1115 = vunpack.c.l.b16 %v1022
    %v1116 = vunpack.c.l.b16 %v1023
    %v1117 = vunpack.c.h.b16 %v1023
    %v1118 = vunpack.c.l.b16 %v1024
    %v1119 = vunpack.c.l.b16 %v1025
    %v1120 = vunpack.c.h.b16 %v1025
    %v1121 = vunpack.c.l.b16 %v1026
    %v1122 = vunpack.c.l.b16 %v1027
    %v1123 = vunpack.c.h.b16 %v1027
    %v1124 = vunpack.c.l.b16 %v1028
    %v1125 = vunpack.c.l.b16 %v1029
    %v1126 = vunpack.c.h.b16 %v1029
    %v1127 = vunpack.c.l.b16 %v1030
    %v1128 = vunpack.c.l.b16 %v1031
    %v1129 = vunpack.c.h.b16 %v1031
    %v1130 = vunpack.c.l.b16 %v1032
    %v1131 = vpack.c.b16 %v1086, %v1083
    %v1132 = vpack.c.b16 %v1087, %v1084
    %v1133 = vpack.c.b16 %v1088, %v1085
    %v1134 = vpack.c.b16 %v1092, %v1089
    %v1135 = vpack.c.b16 %v1093, %v1090
    %v1136 = vpack.c.b16 %v1094, %v1091
    %v1137 = vpack.c.b16 %v1098, %v1095
    %v1138 = vpack.c.b16 %v1099, %v1096
    %v1139 = vpack.c.b16 %v1100, %v1097
    %v1140 = vpack.c.b16 %v1104, %v1101
    %v1141 = vpack.c.b16 %v1105, %v1102
    %v1142 = vpack.c.b16 %v1106, %v1103
    %v1143 = vpack.c.b16 %v1110, %v1107
    %v1144 = vpack.c.b16 %v1111, %v1108
    %v1145 = vpack.c.b16 %v1112, %v1109
    %v1146 = vpack.c.b16 %v1116, %v1113
    %v1147 = vpack.c.b16 %v1117, %v1114
    %v1148 = vpack.c.b16 %v1118, %v1115
    %v1149 = vpack.c.b16 %v1122, %v1119
    %v1150 = vpack.c.b16 %v1123, %v1120
    %v1151 = vpack.c.b16 %v1124, %v1121
    %v1152 = vpack.c.b16 %v1128, %v1125
    %v1153 = vpack.c.b16 %v1129, %v1126
    %v1154 = vpack.c.b16 %v1130, %v1127
    %1179 = vmatprep.subr.bf16.mxu0 %v1132
    %1180 = vmatpush1.bf16.msra.mxu0 %v1131
    %1181 = vmatprep.subr.bf16.mxu0 %v1135
    %1182 = vmatpush1.bf16.msra.mxu0 %v1134
    %1183 = vmatprep.subr.bf16.mxu0 %v1138
    %1184 = vmatpush1.bf16.msra.mxu0 %v1137
    %1185 = vmatprep.subr.bf16.mxu0 %v1141
    %1186 = vmatpush1.bf16.msra.mxu0 %v1140
    %1187 = vmatprep.subr.bf16.mxu0 %v1144
    %1188 = vmatpush1.bf16.msra.mxu0 %v1143
    %1189 = vmatprep.subr.bf16.mxu0 %v1147
    %1190 = vmatpush1.bf16.msra.mxu0 %v1146
    %1191 = vmatprep.subr.bf16.mxu0 %v1150
    %1192 = vmatpush1.bf16.msra.mxu0 %v1149
    %1193 = vmatprep.subr.bf16.mxu0 %v1153
    %1194 = vmatpush1.bf16.msra.mxu0 %v1152
    %1195 = vmatprep.subr.bf16.mxu0 0
    %1196 = vmatpush1.bf16.msra.mxu0 0
    %1197 = vmatprep.subr.bf16.mxu0 0
    %1198 = vmatpush1.bf16.msra.mxu0 0
    %1199 = vmatprep.subr.bf16.mxu0 0
    %1200 = vmatpush1.bf16.msra.mxu0 0
    %1201 = vmatprep.subr.bf16.mxu0 0
    %1202 = vmatpush1.bf16.msra.mxu0 0
    %1203 = vmatprep.subr.bf16.mxu0 0
    %1204 = vmatpush1.bf16.msra.mxu0 0
    %1205 = vmatprep.subr.bf16.mxu0 0
    %1206 = vmatpush1.bf16.msra.mxu0 0
    %1207 = vmatprep.subr.bf16.mxu0 0
    %1208 = vmatpush1.bf16.msra.mxu0 0
    %1209 = vmatprep.subr.bf16.mxu0 0
    %1210 = vmatpush1.bf16.msra.mxu0 0
    %1211 = vmatprep.mubr.bf16.mxu0 0
    %1212 = vmatmul.mubr.bf16.gmra.mrb[0].mxu0 %v999
    %v1213 = vpop.f32.mrb[0].mxu0
    %v1214 = vadd.f32 %v1039, %v1213
    %v1215 = vpop.f32.mrb[0].mxu0
    %v1216 = vadd.f32 %v1043, %v1215
    %v1217 = vpop.f32.mrb[0].mxu0
    %v1218 = vadd.f32 %v1039, %v1217
    %v1219 = vpop.f32.mrb[0].mxu0
    %v1220 = vadd.f32 %v1043, %v1219
    %1221 = vmatprep.mubr.bf16.mxu0 0
    %1222 = vmatmul.mubr.bf16.gmra.mrb[0].mxu0 %v1000
    %v1223 = vpop.f32.mrb[0].mxu0
    %v1224 = vadd.f32 %v1039, %v1223
    %v1225 = vpop.f32.mrb[0].mxu0
    %v1226 = vadd.f32 %v1043, %v1225
    %v1227 = vpop.f32.mrb[0].mxu0
    %v1228 = vadd.f32 %v1039, %v1227
    %v1229 = vpop.f32.mrb[0].mxu0
    %v1230 = vadd.f32 %v1043, %v1229
    %1231 = vdwg.mxu0
    %1232 = vmatprep.subr.bf16.mxu0 0
    %1233 = vmatpush1.bf16.msra.mxu0 %v1133
    %1234 = vmatprep.subr.bf16.mxu0 0
    %1235 = vmatpush1.bf16.msra.mxu0 %v1136
    %1236 = vmatprep.subr.bf16.mxu0 0
    %1237 = vmatpush1.bf16.msra.mxu0 %v1139
    %1238 = vmatprep.subr.bf16.mxu0 0
    %1239 = vmatpush1.bf16.msra.mxu0 %v1142
    %1240 = vmatprep.subr.bf16.mxu0 0
    %1241 = vmatpush1.bf16.msra.mxu0 %v1145
    %1242 = vmatprep.subr.bf16.mxu0 0
    %1243 = vmatpush1.bf16.msra.mxu0 %v1148
    %1244 = vmatprep.subr.bf16.mxu0 0
    %1245 = vmatpush1.bf16.msra.mxu0 %v1151
    %1246 = vmatprep.subr.bf16.mxu0 0
    %1247 = vmatpush1.bf16.msra.mxu0 %v1154
    %1248 = vmatprep.subr.bf16.mxu0 0
    %1249 = vmatpush1.bf16.msra.mxu0 0
    %1250 = vmatprep.subr.bf16.mxu0 0
    %1251 = vmatpush1.bf16.msra.mxu0 0
    %1252 = vmatprep.subr.bf16.mxu0 0
    %1253 = vmatpush1.bf16.msra.mxu0 0
    %1254 = vmatprep.subr.bf16.mxu0 0
    %1255 = vmatpush1.bf16.msra.mxu0 0
    %1256 = vmatprep.subr.bf16.mxu0 0
    %1257 = vmatpush1.bf16.msra.mxu0 0
    %1258 = vmatprep.subr.bf16.mxu0 0
    %1259 = vmatpush1.bf16.msra.mxu0 0
    %1260 = vmatprep.subr.bf16.mxu0 0
    %1261 = vmatpush1.bf16.msra.mxu0 0
    %1262 = vmatprep.subr.bf16.mxu0 0
    %1263 = vmatpush1.bf16.msra.mxu0 0
    %1264 = vmatprep.mubr.bf16.mxu0 0
    %1265 = vmatmul.mubr.bf16.gmra.mrb[0].mxu0 %v999
    %v1266 = vpop.f32.mrb[0].mxu0
    %v1267 = vadd.f32 %v1047, %v1266
    %v1268 = vpop.f32.mrb[0].mxu0
    %v1269 = vpop.f32.mrb[0].mxu0
    %v1270 = vadd.f32 %v1047, %v1269
    %v1271 = vpop.f32.mrb[0].mxu0
    %1272 = vmatprep.mubr.bf16.mxu0 0
    %1273 = vmatmul.mubr.bf16.gmra.mrb[0].mxu0 %v1000
    %v1274 = vpop.f32.mrb[0].mxu0
    %v1275 = vadd.f32 %v1047, %v1274
    %v1276 = vpop.f32.mrb[0].mxu0
    %v1277 = vpop.f32.mrb[0].mxu0
    %v1278 = vadd.f32 %v1047, %v1277
    %v1279 = vpop.f32.mrb[0].mxu0
    %1280 = vdwg.mxu0
    %v1281 = vpack.c.bf16 %v1218, %v1214
    %v1282 = vpack.c.bf16 %v1228, %v1224
    %v1283 = vpack.c.bf16 %v1220, %v1216
    %v1284 = vpack.c.bf16 %v1230, %v1226
    %v1285 = vpack.c.bf16 %v1270, %v1267
    %v1286 = vpack.c.bf16 %v1278, %v1275
    %v1288 = vsel %vm777, %v1281, 0
    %v1291 = vsel %vm777, %v1283, 0
    %1293 = vmatprep.subr.bf16.mxu0 0
    %1294 = vmatpush1.bf16.xpose.msra.mxu0 %v1291
    %1295 = vmatprep.subr.bf16.mxu0 0
    %1296 = vmatpush1.bf16.xpose.msra.mxu0 0
    %1297 = vmatprep.subr.bf16.mxu0 0
    %1298 = vmatpush1.bf16.xpose.msra.mxu0 0
    %1299 = vmatprep.subr.bf16.mxu0 0
    %1300 = vmatpush1.bf16.xpose.msra.mxu0 0
    %1301 = vmatprep.subr.bf16.mxu0 0
    %1302 = vmatpush1.bf16.xpose.msra.mxu0 0
    %1303 = vmatprep.subr.bf16.mxu0 0
    %1304 = vmatpush1.bf16.xpose.msra.mxu0 0
    %1305 = vmatprep.subr.bf16.mxu0 0
    %1306 = vmatpush1.bf16.xpose.msra.mxu0 0
    %1307 = vmatprep.subr.bf16.mxu0 0
    %1308 = vmatpush1.bf16.xpose.msra.mxu0 0
    %1309 = vmatprep.subr.bf16.mxu0 0
    %1310 = vmatpush1.bf16.xpose.msra.mxu0 0
    %1311 = vmatprep.subr.bf16.mxu0 0
    %1312 = vmatpush1.bf16.xpose.msra.mxu0 0
    %1313 = vmatprep.subr.bf16.mxu0 0
    %1314 = vmatpush1.bf16.xpose.msra.mxu0 0
    %1315 = vmatprep.subr.bf16.mxu0 0
    %1316 = vmatpush1.bf16.xpose.msra.mxu0 0
    %1317 = vmatprep.subr.bf16.mxu0 0
    %1318 = vmatpush1.bf16.xpose.msra.mxu0 0
    %1319 = vmatprep.subr.bf16.mxu0 0
    %1320 = vmatpush1.bf16.xpose.msra.mxu0 0
    %1321 = vmatprep.subr.bf16.mxu0 0
    %1322 = vmatpush1.bf16.xpose.msra.mxu0 0
    %1323 = vmatprep.subr.bf16.mxu0 0
    %1324 = vmatpush1.bf16.xpose.msra.mxu0 0
    %1325 = vmatprep.mubr.bf16.mxu0 0
    %1326 = vmatmul.mubr.bf16.gmra.mrb[0].mxu0 %v1288
    %v1327 = vpop.f32.mrb[0].mxu0
    %v1328 = vadd.f32 0.0, %v1327
    %v1329 = vpop.f32.mrb[0].mxu0
    %v1330 = vpop.f32.mrb[0].mxu0
    %v1331 = vadd.f32 0.0, %v1330
    %v1332 = vpop.f32.mrb[0].mxu0
    %1333 = vdwg.mxu0
    %v1335 = vsel %vm777, %v1282, 0
    %v1338 = vsel %vm777, %v1284, 0
    %1340 = vmatprep.subr.bf16.mxu0 0
    %1341 = vmatpush1.bf16.xpose.msra.mxu0 %v1338
    %1342 = vmatprep.subr.bf16.mxu0 0
    %1343 = vmatpush1.bf16.xpose.msra.mxu0 0
    %1344 = vmatprep.subr.bf16.mxu0 0
    %1345 = vmatpush1.bf16.xpose.msra.mxu0 0
    %1346 = vmatprep.subr.bf16.mxu0 0
    %1347 = vmatpush1.bf16.xpose.msra.mxu0 0
    %1348 = vmatprep.subr.bf16.mxu0 0
    %1349 = vmatpush1.bf16.xpose.msra.mxu0 0
    %1350 = vmatprep.subr.bf16.mxu0 0
    %1351 = vmatpush1.bf16.xpose.msra.mxu0 0
    %1352 = vmatprep.subr.bf16.mxu0 0
    %1353 = vmatpush1.bf16.xpose.msra.mxu0 0
    %1354 = vmatprep.subr.bf16.mxu0 0
    %1355 = vmatpush1.bf16.xpose.msra.mxu0 0
    %1356 = vmatprep.subr.bf16.mxu0 0
    %1357 = vmatpush1.bf16.xpose.msra.mxu0 0
    %1358 = vmatprep.subr.bf16.mxu0 0
    %1359 = vmatpush1.bf16.xpose.msra.mxu0 0
    %1360 = vmatprep.subr.bf16.mxu0 0
    %1361 = vmatpush1.bf16.xpose.msra.mxu0 0
    %1362 = vmatprep.subr.bf16.mxu0 0
    %1363 = vmatpush1.bf16.xpose.msra.mxu0 0
    %1364 = vmatprep.subr.bf16.mxu0 0
    %1365 = vmatpush1.bf16.xpose.msra.mxu0 0
    %1366 = vmatprep.subr.bf16.mxu0 0
    %1367 = vmatpush1.bf16.xpose.msra.mxu0 0
    %1368 = vmatprep.subr.bf16.mxu0 0
    %1369 = vmatpush1.bf16.xpose.msra.mxu0 0
    %1370 = vmatprep.subr.bf16.mxu0 0
    %1371 = vmatpush1.bf16.xpose.msra.mxu0 0
    %1372 = vmatprep.mubr.bf16.mxu0 0
    %1373 = vmatmul.mubr.bf16.gmra.mrb[0].mxu0 %v1335
    %v1374 = vpop.f32.mrb[0].mxu0
    %v1375 = vadd.f32 0.0, %v1374
    %v1376 = vpop.f32.mrb[0].mxu0
    %v1377 = vpop.f32.mrb[0].mxu0
    %v1378 = vadd.f32 0.0, %v1377
    %v1379 = vpop.f32.mrb[0].mxu0
    %1380 = vdwg.mxu0
    %v1381 = vmul.f32 %v1328, 0.125
    %v1382 = vmul.f32 %v1331, 0.125
    %v1383 = vmul.f32 %v1375, 0.125
    %v1384 = vmul.f32 %v1378, 0.125
    %vm1385 = vcmask 130048
    %v1386 = vsel %vm1385, %v1381, -inf
    %1387 = vmax.xlane.f32.xlu0 %v1386
    %v1388 = vpop.xlane.xlu0 %1387
    %v1389 = vsel %vm1385, %v1382, -inf
    %1390 = vmax.xlane.f32.xlu0 %v1389
    %v1391 = vpop.xlane.xlu0 %1390
    %v1392 = vsel %vm1385, %v1383, -inf
    %1393 = vmax.xlane.f32.xlu0 %v1392
    %v1394 = vpop.xlane.xlu0 %1393
    %v1395 = vsel %vm1385, %v1384, -inf
    %1396 = vmax.xlane.f32.xlu0 %v1395
    %v1397 = vpop.xlane.xlu0 %1396
    %v1398 = vsub.f32 %v1381, %v1388
    %v1399 = vsub.f32 %v1382, %v1391
    %v1400 = vsub.f32 %v1383, %v1394
    %v1401 = vsub.f32 %v1384, %v1397
    %v1402 = vmul.f32 %v1398, 1.442695
    %v1403 = vpow.pop %v1402
    %v1404 = vmul.f32 %v1399, 1.442695
    %v1405 = vpow.pop %v1404
    %v1406 = vmul.f32 %v1400, 1.442695
    %v1407 = vpow.pop %v1406
    %v1408 = vmul.f32 %v1401, 1.442695
    %v1409 = vpow.pop %v1408
    %v1410 = vsel %vm1385, %v1403, 0.0
    %1411 = vadd.xlane.f32.xlu0 %v1410
    %v1412 = vpop.xlane.xlu0 %1411
    %v1413 = vsel %vm1385, %v1405, 0.0
    %1414 = vadd.xlane.f32.xlu0 %v1413
    %v1415 = vpop.xlane.xlu0 %1414
    %v1416 = vsel %vm1385, %v1407, 0.0
    %1417 = vadd.xlane.f32.xlu0 %v1416
    %v1418 = vpop.xlane.xlu0 %1417
    %v1419 = vsel %vm1385, %v1409, 0.0
    %1420 = vadd.xlane.f32.xlu0 %v1419
    %v1421 = vpop.xlane.xlu0 %1420
    %v1422 = vrcp.pop %v1412
    %v1423 = vrcp.pop %v1415
    %v1424 = vrcp.pop %v1418
    %v1425 = vrcp.pop %v1421
    %v1426 = vmul.f32 %v1403, %v1422
    %v1427 = vmul.f32 %v1405, %v1423
    %v1428 = vmul.f32 %v1407, %v1424
    %v1429 = vmul.f32 %v1409, %v1425
    %v1430 = vpack.c.bf16 %v1427, %v1426
    %v1431 = vpack.c.bf16 %v1429, %v1428
    %v1433 = vsel %vm1385, %v1430, 0
    %1435 = vmatprep.subr.bf16.mxu0 0
    %1436 = vmatpush1.bf16.msra.mxu0 %v1285
    %1437 = vmatprep.subr.bf16.mxu0 0
    %1438 = vmatpush1.bf16.msra.mxu0 0
    %1439 = vmatprep.subr.bf16.mxu0 0
    %1440 = vmatpush1.bf16.msra.mxu0 0
    %1441 = vmatprep.subr.bf16.mxu0 0
    %1442 = vmatpush1.bf16.msra.mxu0 0
    %1443 = vmatprep.subr.bf16.mxu0 0
    %1444 = vmatpush1.bf16.msra.mxu0 0
    %1445 = vmatprep.subr.bf16.mxu0 0
    %1446 = vmatpush1.bf16.msra.mxu0 0
    %1447 = vmatprep.subr.bf16.mxu0 0
    %1448 = vmatpush1.bf16.msra.mxu0 0
    %1449 = vmatprep.subr.bf16.mxu0 0
    %1450 = vmatpush1.bf16.msra.mxu0 0
    %1451 = vmatprep.subr.bf16.mxu0 0
    %1452 = vmatpush1.bf16.msra.mxu0 0
    %1453 = vmatprep.subr.bf16.mxu0 0
    %1454 = vmatpush1.bf16.msra.mxu0 0
    %1455 = vmatprep.subr.bf16.mxu0 0
    %1456 = vmatpush1.bf16.msra.mxu0 0
    %1457 = vmatprep.subr.bf16.mxu0 0
    %1458 = vmatpush1.bf16.msra.mxu0 0
    %1459 = vmatprep.subr.bf16.mxu0 0
    %1460 = vmatpush1.bf16.msra.mxu0 0
    %1461 = vmatprep.subr.bf16.mxu0 0
    %1462 = vmatpush1.bf16.msra.mxu0 0
    %1463 = vmatprep.subr.bf16.mxu0 0
    %1464 = vmatpush1.bf16.msra.mxu0 0
    %1465 = vmatprep.subr.bf16.mxu0 0
    %1466 = vmatpush1.bf16.msra.mxu0 0
    %1467 = vmatprep.mubr.bf16.mxu0 0
    %1468 = vmatmul.mubr.bf16.gmra.mrb[0].mxu0 %v1433
    %v1469 = vpop.f32.mrb[0].mxu0
    %v1470 = vadd.f32 0.0, %v1469
    %v1471 = vpop.f32.mrb[0].mxu0
    %v1472 = vpop.f32.mrb[0].mxu0
    %v1473 = vadd.f32 0.0, %v1472
    %v1474 = vpop.f32.mrb[0].mxu0
    %1475 = vdwg.mxu0
    %v1477 = vsel %vm1385, %v1431, 0
    %1479 = vmatprep.subr.bf16.mxu0 0
    %1480 = vmatpush1.bf16.msra.mxu0 %v1286
    %1481 = vmatprep.subr.bf16.mxu0 0
    %1482 = vmatpush1.bf16.msra.mxu0 0
    %1483 = vmatprep.subr.bf16.mxu0 0
    %1484 = vmatpush1.bf16.msra.mxu0 0
    %1485 = vmatprep.subr.bf16.mxu0 0
    %1486 = vmatpush1.bf16.msra.mxu0 0
    %1487 = vmatprep.subr.bf16.mxu0 0
    %1488 = vmatpush1.bf16.msra.mxu0 0
    %1489 = vmatprep.subr.bf16.mxu0 0
    %1490 = vmatpush1.bf16.msra.mxu0 0
    %1491 = vmatprep.subr.bf16.mxu0 0
    %1492 = vmatpush1.bf16.msra.mxu0 0
    %1493 = vmatprep.subr.bf16.mxu0 0
    %1494 = vmatpush1.bf16.msra.mxu0 0
    %1495 = vmatprep.subr.bf16.mxu0 0
    %1496 = vmatpush1.bf16.msra.mxu0 0
    %1497 = vmatprep.subr.bf16.mxu0 0
    %1498 = vmatpush1.bf16.msra.mxu0 0
    %1499 = vmatprep.subr.bf16.mxu0 0
    %1500 = vmatpush1.bf16.msra.mxu0 0
    %1501 = vmatprep.subr.bf16.mxu0 0
    %1502 = vmatpush1.bf16.msra.mxu0 0
    %1503 = vmatprep.subr.bf16.mxu0 0
    %1504 = vmatpush1.bf16.msra.mxu0 0
    %1505 = vmatprep.subr.bf16.mxu0 0
    %1506 = vmatpush1.bf16.msra.mxu0 0
    %1507 = vmatprep.subr.bf16.mxu0 0
    %1508 = vmatpush1.bf16.msra.mxu0 0
    %1509 = vmatprep.subr.bf16.mxu0 0
    %1510 = vmatpush1.bf16.msra.mxu0 0
    %1511 = vmatprep.mubr.bf16.mxu0 0
    %1512 = vmatmul.mubr.bf16.gmra.mrb[0].mxu0 %v1477
    %v1513 = vpop.f32.mrb[0].mxu0
    %v1514 = vadd.f32 0.0, %v1513
    %v1515 = vpop.f32.mrb[0].mxu0
    %v1516 = vpop.f32.mrb[0].mxu0
    %v1517 = vadd.f32 0.0, %v1516
    %v1518 = vpop.f32.mrb[0].mxu0
    %1519 = vdwg.mxu0
    %1521 = vrot.lane.b32.xlu0 %v1281, 64
    %v1522 = vpop.permute.xlu0 %1521
    %1524 = vrot.lane.b32.xlu0 %v1283, 64
    %v1525 = vpop.permute.xlu0 %1524
    %v1527 = vsel %vm777, %v1522, 0
    %v1530 = vsel %vm777, %v1525, 0
    %1532 = vmatprep.subr.bf16.mxu0 0
    %1533 = vmatpush1.bf16.xpose.msra.mxu0 %v1530
    %1534 = vmatprep.subr.bf16.mxu0 0
    %1535 = vmatpush1.bf16.xpose.msra.mxu0 0
    %1536 = vmatprep.subr.bf16.mxu0 0
    %1537 = vmatpush1.bf16.xpose.msra.mxu0 0
    %1538 = vmatprep.subr.bf16.mxu0 0
    %1539 = vmatpush1.bf16.xpose.msra.mxu0 0
    %1540 = vmatprep.subr.bf16.mxu0 0
    %1541 = vmatpush1.bf16.xpose.msra.mxu0 0
    %1542 = vmatprep.subr.bf16.mxu0 0
    %1543 = vmatpush1.bf16.xpose.msra.mxu0 0
    %1544 = vmatprep.subr.bf16.mxu0 0
    %1545 = vmatpush1.bf16.xpose.msra.mxu0 0
    %1546 = vmatprep.subr.bf16.mxu0 0
    %1547 = vmatpush1.bf16.xpose.msra.mxu0 0
    %1548 = vmatprep.subr.bf16.mxu0 0
    %1549 = vmatpush1.bf16.xpose.msra.mxu0 0
    %1550 = vmatprep.subr.bf16.mxu0 0
    %1551 = vmatpush1.bf16.xpose.msra.mxu0 0
    %1552 = vmatprep.subr.bf16.mxu0 0
    %1553 = vmatpush1.bf16.xpose.msra.mxu0 0
    %1554 = vmatprep.subr.bf16.mxu0 0
    %1555 = vmatpush1.bf16.xpose.msra.mxu0 0
    %1556 = vmatprep.subr.bf16.mxu0 0
    %1557 = vmatpush1.bf16.xpose.msra.mxu0 0
    %1558 = vmatprep.subr.bf16.mxu0 0
    %1559 = vmatpush1.bf16.xpose.msra.mxu0 0
    %1560 = vmatprep.subr.bf16.mxu0 0
    %1561 = vmatpush1.bf16.xpose.msra.mxu0 0
    %1562 = vmatprep.subr.bf16.mxu0 0
    %1563 = vmatpush1.bf16.xpose.msra.mxu0 0
    %1564 = vmatprep.mubr.bf16.mxu0 0
    %1565 = vmatmul.mubr.bf16.gmra.mrb[0].mxu0 %v1527
    %v1566 = vpop.f32.mrb[0].mxu0
    %v1567 = vadd.f32 0.0, %v1566
    %v1568 = vpop.f32.mrb[0].mxu0
    %v1569 = vpop.f32.mrb[0].mxu0
    %v1570 = vadd.f32 0.0, %v1569
    %v1571 = vpop.f32.mrb[0].mxu0
    %1572 = vdwg.mxu0
    %1574 = vrot.lane.b32.xlu0 %v1282, 64
    %v1575 = vpop.permute.xlu0 %1574
    %1577 = vrot.lane.b32.xlu0 %v1284, 64
    %v1578 = vpop.permute.xlu0 %1577
    %v1580 = vsel %vm777, %v1575, 0
    %v1583 = vsel %vm777, %v1578, 0
    %1585 = vmatprep.subr.bf16.mxu0 0
    %1586 = vmatpush1.bf16.xpose.msra.mxu0 %v1583
    %1587 = vmatprep.subr.bf16.mxu0 0
    %1588 = vmatpush1.bf16.xpose.msra.mxu0 0
    %1589 = vmatprep.subr.bf16.mxu0 0
    %1590 = vmatpush1.bf16.xpose.msra.mxu0 0
    %1591 = vmatprep.subr.bf16.mxu0 0
    %1592 = vmatpush1.bf16.xpose.msra.mxu0 0
    %1593 = vmatprep.subr.bf16.mxu0 0
    %1594 = vmatpush1.bf16.xpose.msra.mxu0 0
    %1595 = vmatprep.subr.bf16.mxu0 0
    %1596 = vmatpush1.bf16.xpose.msra.mxu0 0
    %1597 = vmatprep.subr.bf16.mxu0 0
    %1598 = vmatpush1.bf16.xpose.msra.mxu0 0
    %1599 = vmatprep.subr.bf16.mxu0 0
    %1600 = vmatpush1.bf16.xpose.msra.mxu0 0
    %1601 = vmatprep.subr.bf16.mxu0 0
    %1602 = vmatpush1.bf16.xpose.msra.mxu0 0
    %1603 = vmatprep.subr.bf16.mxu0 0
    %1604 = vmatpush1.bf16.xpose.msra.mxu0 0
    %1605 = vmatprep.subr.bf16.mxu0 0
    %1606 = vmatpush1.bf16.xpose.msra.mxu0 0
    %1607 = vmatprep.subr.bf16.mxu0 0
    %1608 = vmatpush1.bf16.xpose.msra.mxu0 0
    %1609 = vmatprep.subr.bf16.mxu0 0
    %1610 = vmatpush1.bf16.xpose.msra.mxu0 0
    %1611 = vmatprep.subr.bf16.mxu0 0
    %1612 = vmatpush1.bf16.xpose.msra.mxu0 0
    %1613 = vmatprep.subr.bf16.mxu0 0
    %1614 = vmatpush1.bf16.xpose.msra.mxu0 0
    %1615 = vmatprep.subr.bf16.mxu0 0
    %1616 = vmatpush1.bf16.xpose.msra.mxu0 0
    %1617 = vmatprep.mubr.bf16.mxu0 0
    %1618 = vmatmul.mubr.bf16.gmra.mrb[0].mxu0 %v1580
    %v1619 = vpop.f32.mrb[0].mxu0
    %v1620 = vadd.f32 0.0, %v1619
    %v1621 = vpop.f32.mrb[0].mxu0
    %v1622 = vpop.f32.mrb[0].mxu0
    %v1623 = vadd.f32 0.0, %v1622
    %v1624 = vpop.f32.mrb[0].mxu0
    %1625 = vdwg.mxu0
    %v1626 = vmul.f32 %v1567, 0.125
    %v1627 = vmul.f32 %v1570, 0.125
    %v1628 = vmul.f32 %v1620, 0.125
    %v1629 = vmul.f32 %v1623, 0.125
    %v1630 = vsel %vm1385, %v1626, -inf
    %1631 = vmax.xlane.f32.xlu0 %v1630
    %v1632 = vpop.xlane.xlu0 %1631
    %v1633 = vsel %vm1385, %v1627, -inf
    %1634 = vmax.xlane.f32.xlu0 %v1633
    %v1635 = vpop.xlane.xlu0 %1634
    %v1636 = vsel %vm1385, %v1628, -inf
    %1637 = vmax.xlane.f32.xlu0 %v1636
    %v1638 = vpop.xlane.xlu0 %1637
    %v1639 = vsel %vm1385, %v1629, -inf
    %1640 = vmax.xlane.f32.xlu0 %v1639
    %v1641 = vpop.xlane.xlu0 %1640
    %v1642 = vsub.f32 %v1626, %v1632
    %v1643 = vsub.f32 %v1627, %v1635
    %v1644 = vsub.f32 %v1628, %v1638
    %v1645 = vsub.f32 %v1629, %v1641
    %v1646 = vmul.f32 %v1642, 1.442695
    %v1647 = vpow.pop %v1646
    %v1648 = vmul.f32 %v1643, 1.442695
    %v1649 = vpow.pop %v1648
    %v1650 = vmul.f32 %v1644, 1.442695
    %v1651 = vpow.pop %v1650
    %v1652 = vmul.f32 %v1645, 1.442695
    %v1653 = vpow.pop %v1652
    %v1654 = vsel %vm1385, %v1647, 0.0
    %1655 = vadd.xlane.f32.xlu0 %v1654
    %v1656 = vpop.xlane.xlu0 %1655
    %v1657 = vsel %vm1385, %v1649, 0.0
    %1658 = vadd.xlane.f32.xlu0 %v1657
    %v1659 = vpop.xlane.xlu0 %1658
    %v1660 = vsel %vm1385, %v1651, 0.0
    %1661 = vadd.xlane.f32.xlu0 %v1660
    %v1662 = vpop.xlane.xlu0 %1661
    %v1663 = vsel %vm1385, %v1653, 0.0
    %1664 = vadd.xlane.f32.xlu0 %v1663
    %v1665 = vpop.xlane.xlu0 %1664
    %v1666 = vrcp.pop %v1656
    %v1667 = vrcp.pop %v1659
    %v1668 = vrcp.pop %v1662
    %v1669 = vrcp.pop %v1665
    %v1670 = vmul.f32 %v1647, %v1666
    %v1671 = vmul.f32 %v1649, %v1667
    %v1672 = vmul.f32 %v1651, %v1668
    %v1673 = vmul.f32 %v1653, %v1669
    %v1674 = vpack.c.bf16 %v1671, %v1670
    %v1675 = vpack.c.bf16 %v1673, %v1672
    %1677 = vrot.lane.b32.xlu0 %v1285, 64
    %v1678 = vpop.permute.xlu0 %1677
    %v1681 = vsel %vm1385, %v1674, 0
    %1683 = vmatprep.subr.bf16.mxu0 0
    %1684 = vmatpush1.bf16.msra.mxu0 %v1678
    %1685 = vmatprep.subr.bf16.mxu0 0
    %1686 = vmatpush1.bf16.msra.mxu0 0
    %1687 = vmatprep.subr.bf16.mxu0 0
    %1688 = vmatpush1.bf16.msra.mxu0 0
    %1689 = vmatprep.subr.bf16.mxu0 0
    %1690 = vmatpush1.bf16.msra.mxu0 0
    %1691 = vmatprep.subr.bf16.mxu0 0
    %1692 = vmatpush1.bf16.msra.mxu0 0
    %1693 = vmatprep.subr.bf16.mxu0 0
    %1694 = vmatpush1.bf16.msra.mxu0 0
    %1695 = vmatprep.subr.bf16.mxu0 0
    %1696 = vmatpush1.bf16.msra.mxu0 0
    %1697 = vmatprep.subr.bf16.mxu0 0
    %1698 = vmatpush1.bf16.msra.mxu0 0
    %1699 = vmatprep.subr.bf16.mxu0 0
    %1700 = vmatpush1.bf16.msra.mxu0 0
    %1701 = vmatprep.subr.bf16.mxu0 0
    %1702 = vmatpush1.bf16.msra.mxu0 0
    %1703 = vmatprep.subr.bf16.mxu0 0
    %1704 = vmatpush1.bf16.msra.mxu0 0
    %1705 = vmatprep.subr.bf16.mxu0 0
    %1706 = vmatpush1.bf16.msra.mxu0 0
    %1707 = vmatprep.subr.bf16.mxu0 0
    %1708 = vmatpush1.bf16.msra.mxu0 0
    %1709 = vmatprep.subr.bf16.mxu0 0
    %1710 = vmatpush1.bf16.msra.mxu0 0
    %1711 = vmatprep.subr.bf16.mxu0 0
    %1712 = vmatpush1.bf16.msra.mxu0 0
    %1713 = vmatprep.subr.bf16.mxu0 0
    %1714 = vmatpush1.bf16.msra.mxu0 0
    %1715 = vmatprep.mubr.bf16.mxu0 0
    %1716 = vmatmul.mubr.bf16.gmra.mrb[0].mxu0 %v1681
    %v1717 = vpop.f32.mrb[0].mxu0
    %v1718 = vadd.f32 0.0, %v1717
    %v1719 = vpop.f32.mrb[0].mxu0
    %v1720 = vpop.f32.mrb[0].mxu0
    %v1721 = vadd.f32 0.0, %v1720
    %v1722 = vpop.f32.mrb[0].mxu0
    %1723 = vdwg.mxu0
    %1725 = vrot.lane.b32.xlu0 %v1286, 64
    %v1726 = vpop.permute.xlu0 %1725
    %v1729 = vsel %vm1385, %v1675, 0
    %1731 = vmatprep.subr.bf16.mxu0 0
    %1732 = vmatpush1.bf16.msra.mxu0 %v1726
    %1733 = vmatprep.subr.bf16.mxu0 0
    %1734 = vmatpush1.bf16.msra.mxu0 0
    %1735 = vmatprep.subr.bf16.mxu0 0
    %1736 = vmatpush1.bf16.msra.mxu0 0
    %1737 = vmatprep.subr.bf16.mxu0 0
    %1738 = vmatpush1.bf16.msra.mxu0 0
    %1739 = vmatprep.subr.bf16.mxu0 0
    %1740 = vmatpush1.bf16.msra.mxu0 0
    %1741 = vmatprep.subr.bf16.mxu0 0
    %1742 = vmatpush1.bf16.msra.mxu0 0
    %1743 = vmatprep.subr.bf16.mxu0 0
    %1744 = vmatpush1.bf16.msra.mxu0 0
    %1745 = vmatprep.subr.bf16.mxu0 0
    %1746 = vmatpush1.bf16.msra.mxu0 0
    %1747 = vmatprep.subr.bf16.mxu0 0
    %1748 = vmatpush1.bf16.msra.mxu0 0
    %1749 = vmatprep.subr.bf16.mxu0 0
    %1750 = vmatpush1.bf16.msra.mxu0 0
    %1751 = vmatprep.subr.bf16.mxu0 0
    %1752 = vmatpush1.bf16.msra.mxu0 0
    %1753 = vmatprep.subr.bf16.mxu0 0
    %1754 = vmatpush1.bf16.msra.mxu0 0
    %1755 = vmatprep.subr.bf16.mxu0 0
    %1756 = vmatpush1.bf16.msra.mxu0 0
    %1757 = vmatprep.subr.bf16.mxu0 0
    %1758 = vmatpush1.bf16.msra.mxu0 0
    %1759 = vmatprep.subr.bf16.mxu0 0
    %1760 = vmatpush1.bf16.msra.mxu0 0
    %1761 = vmatprep.subr.bf16.mxu0 0
    %1762 = vmatpush1.bf16.msra.mxu0 0
    %1763 = vmatprep.mubr.bf16.mxu0 0
    %1764 = vmatmul.mubr.bf16.gmra.mrb[0].mxu0 %v1729
    %v1765 = vpop.f32.mrb[0].mxu0
    %v1766 = vadd.f32 0.0, %v1765
    %v1767 = vpop.f32.mrb[0].mxu0
    %v1768 = vpop.f32.mrb[0].mxu0
    %v1769 = vadd.f32 0.0, %v1768
    %v1770 = vpop.f32.mrb[0].mxu0
    %1771 = vdwg.mxu0
    %1776 = vrot.lane.b32.xlu0 %v1718, 64
    %v1777 = vpop.permute.xlu0 %1776
    %1778 = vrot.lane.b32.xlu0 %v1721, 64
    %v1779 = vpop.permute.xlu0 %1778
    %1780 = vrot.lane.b32.xlu0 %v1766, 64
    %v1781 = vpop.permute.xlu0 %1780
    %1782 = vrot.lane.b32.xlu0 %v1769, 64
    %v1783 = vpop.permute.xlu0 %1782
    %v1788 = vsel %vm777, %v1470, %v1777
    %v1789 = vsel %vm777, %v1473, %v1779
    %v1790 = vsel %vm777, %v1514, %v1781
    %v1791 = vsel %vm777, %v1517, %v1783
    %v1792 = vpack.c.bf16 %v1789, %v1788
    %v1793 = vpack.c.bf16 %v1791, %v1790
    %v1794 = vld [vmem:[#allocation7] sm:$0xf]
    %v1795 = vld [vmem:[#allocation7 + $0x4] sm:$0xf]
    %v1796 = vld [vmem:[#allocation7 + $0x8] sm:$0xf]
    %v1797 = vld [vmem:[#allocation7 + $0xc] sm:$0xf]
    %v1798 = vld [vmem:[#allocation7 + $0x10] sm:$0xf]
    %v1799 = vld [vmem:[#allocation7 + $0x14] sm:$0xf]
    %v1800 = vld [vmem:[#allocation7 + $0x18] sm:$0xf]
    %v1801 = vld [vmem:[#allocation7 + $0x1c] sm:$0xf]
    %v1802 = vld [vmem:[#allocation7 + $0x20] sm:$0xf]
    %v1803 = vld [vmem:[#allocation7 + $0x24] sm:$0xf]
    %v1804 = vld [vmem:[#allocation7 + $0x28] sm:$0xf]
    %v1805 = vld [vmem:[#allocation7 + $0x2c] sm:$0xf]
    %v1806 = vld [vmem:[#allocation7 + $0x30] sm:$0xf]
    %v1807 = vld [vmem:[#allocation7 + $0x34] sm:$0xf]
    %v1808 = vld [vmem:[#allocation7 + $0x38] sm:$0xf]
    %v1809 = vld [vmem:[#allocation7 + $0x3c] sm:$0xf]
    %v1810 = vld [vmem:[#allocation2 + $0x18] ss:$0 sm:$0xff]
    %v1827 = vunpack.c.l.b16 %v1794
    %v1828 = vunpack.c.l.b16 %v1795
    %v1829 = vunpack.c.l.b16 %v1796
    %v1830 = vunpack.c.l.b16 %v1797
    %v1831 = vunpack.c.l.b16 %v1798
    %v1832 = vunpack.c.l.b16 %v1799
    %v1833 = vunpack.c.l.b16 %v1800
    %v1834 = vunpack.c.l.b16 %v1801
    %v1835 = vunpack.c.l.b16 %v1802
    %v1836 = vunpack.c.l.b16 %v1803
    %v1837 = vunpack.c.l.b16 %v1804
    %v1838 = vunpack.c.l.b16 %v1805
    %v1839 = vunpack.c.l.b16 %v1806
    %v1840 = vunpack.c.l.b16 %v1807
    %v1841 = vunpack.c.l.b16 %v1808
    %v1842 = vunpack.c.l.b16 %v1809
    %v1843 = vpack.c.b16 %v1828, %v1827
    %v1844 = vpack.c.b16 %v1830, %v1829
    %v1845 = vpack.c.b16 %v1832, %v1831
    %v1846 = vpack.c.b16 %v1834, %v1833
    %v1847 = vpack.c.b16 %v1836, %v1835
    %v1848 = vpack.c.b16 %v1838, %v1837
    %v1849 = vpack.c.b16 %v1840, %v1839
    %v1850 = vpack.c.b16 %v1842, %v1841
    %1859 = vmatprep.subr.bf16.mxu0 0
    %1860 = vmatpush1.bf16.msra.mxu0 %v1843
    %1861 = vmatprep.subr.bf16.mxu0 0
    %1862 = vmatpush1.bf16.msra.mxu0 %v1844
    %1863 = vmatprep.subr.bf16.mxu0 0
    %1864 = vmatpush1.bf16.msra.mxu0 %v1845
    %1865 = vmatprep.subr.bf16.mxu0 0
    %1866 = vmatpush1.bf16.msra.mxu0 %v1846
    %1867 = vmatprep.subr.bf16.mxu0 0
    %1868 = vmatpush1.bf16.msra.mxu0 %v1847
    %1869 = vmatprep.subr.bf16.mxu0 0
    %1870 = vmatpush1.bf16.msra.mxu0 %v1848
    %1871 = vmatprep.subr.bf16.mxu0 0
    %1872 = vmatpush1.bf16.msra.mxu0 %v1849
    %1873 = vmatprep.subr.bf16.mxu0 0
    %1874 = vmatpush1.bf16.msra.mxu0 %v1850
    %1875 = vmatprep.subr.bf16.mxu0 0
    %1876 = vmatpush1.bf16.msra.mxu0 0
    %1877 = vmatprep.subr.bf16.mxu0 0
    %1878 = vmatpush1.bf16.msra.mxu0 0
    %1879 = vmatprep.subr.bf16.mxu0 0
    %1880 = vmatpush1.bf16.msra.mxu0 0
    %1881 = vmatprep.subr.bf16.mxu0 0
    %1882 = vmatpush1.bf16.msra.mxu0 0
    %1883 = vmatprep.subr.bf16.mxu0 0
    %1884 = vmatpush1.bf16.msra.mxu0 0
    %1885 = vmatprep.subr.bf16.mxu0 0
    %1886 = vmatpush1.bf16.msra.mxu0 0
    %1887 = vmatprep.subr.bf16.mxu0 0
    %1888 = vmatpush1.bf16.msra.mxu0 0
    %1889 = vmatprep.subr.bf16.mxu0 0
    %1890 = vmatpush1.bf16.msra.mxu0 0
    %1891 = vmatprep.mubr.bf16.mxu0 0
    %1892 = vmatmul.mubr.bf16.gmra.mrb[0].mxu0 %v1792
    %v1893 = vpop.f32.mrb[0].mxu0
    %v1894 = vadd.f32 %v1810, %v1893
    %v1895 = vpop.f32.mrb[0].mxu0
    %v1896 = vpop.f32.mrb[0].mxu0
    %v1897 = vadd.f32 %v1810, %v1896
    %v1898 = vpop.f32.mrb[0].mxu0
    %1899 = vmatprep.mubr.bf16.mxu0 0
    %1900 = vmatmul.mubr.bf16.gmra.mrb[0].mxu0 %v1793
    %v1901 = vpop.f32.mrb[0].mxu0
    %v1902 = vadd.f32 %v1810, %v1901
    %v1903 = vpop.f32.mrb[0].mxu0
    %v1904 = vpop.f32.mrb[0].mxu0
    %v1905 = vadd.f32 %v1810, %v1904
    %v1906 = vpop.f32.mrb[0].mxu0
    %1907 = vdwg.mxu0
    %v1908 = vadd.f32 %v1894, %v995
    %v1909 = vadd.f32 %v1897, %v996
    %v1910 = vadd.f32 %v1902, %v997
    %v1911 = vadd.f32 %v1905, %v998
    %v1912 = vld [vmem:[#allocation2 + $0x18] sm:$0x6]
    %1913 = vadd.xlane.f32.xlu0 %v1908
    %v1914 = vpop.xlane.xlu0 %1913
    %1915 = vadd.xlane.f32.xlu0 %v1909
    %v1916 = vpop.xlane.xlu0 %1915
    %1917 = vadd.xlane.f32.xlu0 %v1910
    %v1918 = vpop.xlane.xlu0 %1917
    %1919 = vadd.xlane.f32.xlu0 %v1911
    %v1920 = vpop.xlane.xlu0 %1919
    %v1921 = vmul.f32 %v1914, %v946
    %v1922 = vmul.f32 %v1916, %v946
    %v1923 = vmul.f32 %v1918, %v946
    %v1924 = vmul.f32 %v1920, %v946
    %v1925 = vsub.f32 %v1908, %v1921
    %v1926 = vsub.f32 %v1909, %v1922
    %v1927 = vsub.f32 %v1910, %v1923
    %v1928 = vsub.f32 %v1911, %v1924
    %v1929 = vmul.f32 %v1925, %v1925
    %v1930 = vmul.f32 %v1926, %v1926
    %v1931 = vmul.f32 %v1927, %v1927
    %v1932 = vmul.f32 %v1928, %v1928
    %1933 = vadd.xlane.f32.xlu0 %v1929
    %v1934 = vpop.xlane.xlu0 %1933
    %1935 = vadd.xlane.f32.xlu0 %v1930
    %v1936 = vpop.xlane.xlu0 %1935
    %1937 = vadd.xlane.f32.xlu0 %v1931
    %v1938 = vpop.xlane.xlu0 %1937
    %1939 = vadd.xlane.f32.xlu0 %v1932
    %v1940 = vpop.xlane.xlu0 %1939
    %v1941 = vmul.f32 %v1934, %v946
    %v1942 = vmul.f32 %v1936, %v946
    %v1943 = vmul.f32 %v1938, %v946
    %v1944 = vmul.f32 %v1940, %v946
    %v1945 = vadd.f32 %v1941, 1e-05
    %v1946 = vadd.f32 %v1942, 1e-05
    %v1947 = vadd.f32 %v1943, 1e-05
    %v1948 = vadd.f32 %v1944, 1e-05
    %v1949 = vrsqrt.pop %v1945
    %v1950 = vrsqrt.pop %v1946
    %v1951 = vrsqrt.pop %v1947
    %v1952 = vrsqrt.pop %v1948
    %v1953 = vmul.f32 %v1925, %v1949
    %v1954 = vmul.f32 %v1926, %v1950
    %v1955 = vmul.f32 %v1927, %v1951
    %v1956 = vmul.f32 %v1928, %v1952
    %v1957 = vlaneseq
    %v1958 = vshrl.u32 %v1957, 7
    %v1959 = vsub.s32 1, %v1958
    %v1960 = vrot.slane %v1912, %v1959
    %v1961 = vmul.f32 %v1953, %v1960
    %v1962 = vmul.f32 %v1954, %v1960
    %v1963 = vmul.f32 %v1955, %v1960
    %v1964 = vmul.f32 %v1956, %v1960
    %v1965 = vlaneseq
    %v1966 = vshrl.u32 %v1965, 7
    %v1967 = vsub.s32 2, %v1966
    %v1968 = vrot.slane %v1912, %v1967
    %v1969 = vadd.f32 %v1961, %v1968
    %v1970 = vadd.f32 %v1962, %v1968
    %v1971 = vadd.f32 %v1963, %v1968
    %v1972 = vadd.f32 %v1964, %v1968
    %v1973 = vpack.c.bf16 %v1970, %v1969
    %v1974 = vpack.c.bf16 %v1972, %v1971
    %v1975 = vld [vmem:[#allocation8] sm:$0xff]
    %v1976 = vld [vmem:[#allocation8 + $0x8] sm:$0xff]
    %v1977 = vld [vmem:[#allocation8 + $0x10] sm:$0xff]
    %v1978 = vld [vmem:[#allocation8 + $0x18] sm:$0xff]
    %v1979 = vld [vmem:[#allocation8 + $0x20] sm:$0xff]
    %v1980 = vld [vmem:[#allocation8 + $0x28] sm:$0xff]
    %v1981 = vld [vmem:[#allocation8 + $0x30] sm:$0xff]
    %v1982 = vld [vmem:[#allocation8 + $0x38] sm:$0xff]
    %v1983 = vld [vmem:[#allocation8 + $0x40] sm:$0xff]
    %v1984 = vld [vmem:[#allocation8 + $0x48] sm:$0xff]
    %v1985 = vld [vmem:[#allocation8 + $0x50] sm:$0xff]
    %v1986 = vld [vmem:[#allocation8 + $0x58] sm:$0xff]
    %v1987 = vld [vmem:[#allocation8 + $0x60] sm:$0xff]
    %v1988 = vld [vmem:[#allocation8 + $0x68] sm:$0xff]
    %v1989 = vld [vmem:[#allocation8 + $0x70] sm:$0xff]
    %v1990 = vld [vmem:[#allocation8 + $0x78] sm:$0xff]
    %s1991 = scalar_lea.vmem [#allocation2], 27
    %v1992 = vld [vmem:[%s1991] ss:$8 sm:$0x3]
    %v1994 = vlaneseq
    %v1995 = vshrl.u32 %v1994, 7
    %v1996 = vsub.s32 0, %v1995
    %v1997 = vrot.slane %v1992, %v1996
    %v1998 = vlaneseq
    %v1999 = vshrl.u32 %v1998, 7
    %v2000 = vsub.s32 1, %v1999
    %v2001 = vrot.slane %v1992, %v2000
    %v2020 = vunpack.c.l.b16 %v1975
    %v2021 = vunpack.c.h.b16 %v1975
    %v2022 = vunpack.c.l.b16 %v1976
    %v2023 = vunpack.c.h.b16 %v1976
    %v2024 = vunpack.c.l.b16 %v1977
    %v2025 = vunpack.c.h.b16 %v1977
    %v2026 = vunpack.c.l.b16 %v1978
    %v2027 = vunpack.c.h.b16 %v1978
    %v2028 = vunpack.c.l.b16 %v1979
    %v2029 = vunpack.c.h.b16 %v1979
    %v2030 = vunpack.c.l.b16 %v1980
    %v2031 = vunpack.c.h.b16 %v1980
    %v2032 = vunpack.c.l.b16 %v1981
    %v2033 = vunpack.c.h.b16 %v1981
    %v2034 = vunpack.c.l.b16 %v1982
    %v2035 = vunpack.c.h.b16 %v1982
    %v2036 = vunpack.c.l.b16 %v1983
    %v2037 = vunpack.c.h.b16 %v1983
    %v2038 = vunpack.c.l.b16 %v1984
    %v2039 = vunpack.c.h.b16 %v1984
    %v2040 = vunpack.c.l.b16 %v1985
    %v2041 = vunpack.c.h.b16 %v1985
    %v2042 = vunpack.c.l.b16 %v1986
    %v2043 = vunpack.c.h.b16 %v1986
    %v2044 = vunpack.c.l.b16 %v1987
    %v2045 = vunpack.c.h.b16 %v1987
    %v2046 = vunpack.c.l.b16 %v1988
    %v2047 = vunpack.c.h.b16 %v1988
    %v2048 = vunpack.c.l.b16 %v1989
    %v2049 = vunpack.c.h.b16 %v1989
    %v2050 = vunpack.c.l.b16 %v1990
    %v2051 = vunpack.c.h.b16 %v1990
    %v2052 = vpack.c.b16 %v2022, %v2020
    %v2053 = vpack.c.b16 %v2023, %v2021
    %v2054 = vpack.c.b16 %v2026, %v2024
    %v2055 = vpack.c.b16 %v2027, %v2025
    %v2056 = vpack.c.b16 %v2030, %v2028
    %v2057 = vpack.c.b16 %v2031, %v2029
    %v2058 = vpack.c.b16 %v2034, %v2032
    %v2059 = vpack.c.b16 %v2035, %v2033
    %v2060 = vpack.c.b16 %v2038, %v2036
    %v2061 = vpack.c.b16 %v2039, %v2037
    %v2062 = vpack.c.b16 %v2042, %v2040
    %v2063 = vpack.c.b16 %v2043, %v2041
    %v2064 = vpack.c.b16 %v2046, %v2044
    %v2065 = vpack.c.b16 %v2047, %v2045
    %v2066 = vpack.c.b16 %v2050, %v2048
    %v2067 = vpack.c.b16 %v2051, %v2049
    %2084 = vmatprep.subr.bf16.mxu0 %v2053
    %2085 = vmatpush1.bf16.msra.mxu0 %v2052
    %2086 = vmatprep.subr.bf16.mxu0 %v2055
    %2087 = vmatpush1.bf16.msra.mxu0 %v2054
    %2088 = vmatprep.subr.bf16.mxu0 %v2057
    %2089 = vmatpush1.bf16.msra.mxu0 %v2056
    %2090 = vmatprep.subr.bf16.mxu0 %v2059
    %2091 = vmatpush1.bf16.msra.mxu0 %v2058
    %2092 = vmatprep.subr.bf16.mxu0 %v2061
    %2093 = vmatpush1.bf16.msra.mxu0 %v2060
    %2094 = vmatprep.subr.bf16.mxu0 %v2063
    %2095 = vmatpush1.bf16.msra.mxu0 %v2062
    %2096 = vmatprep.subr.bf16.mxu0 %v2065
    %2097 = vmatpush1.bf16.msra.mxu0 %v2064
    %2098 = vmatprep.subr.bf16.mxu0 %v2067
    %2099 = vmatpush1.bf16.msra.mxu0 %v2066
    %2100 = vmatprep.subr.bf16.mxu0 0
    %2101 = vmatpush1.bf16.msra.mxu0 0
    %2102 = vmatprep.subr.bf16.mxu0 0
    %2103 = vmatpush1.bf16.msra.mxu0 0
    %2104 = vmatprep.subr.bf16.mxu0 0
    %2105 = vmatpush1.bf16.msra.mxu0 0
    %2106 = vmatprep.subr.bf16.mxu0 0
    %2107 = vmatpush1.bf16.msra.mxu0 0
    %2108 = vmatprep.subr.bf16.mxu0 0
    %2109 = vmatpush1.bf16.msra.mxu0 0
    %2110 = vmatprep.subr.bf16.mxu0 0
    %2111 = vmatpush1.bf16.msra.mxu0 0
    %2112 = vmatprep.subr.bf16.mxu0 0
    %2113 = vmatpush1.bf16.msra.mxu0 0
    %2114 = vmatprep.subr.bf16.mxu0 0
    %2115 = vmatpush1.bf16.msra.mxu0 0
    %2116 = vmatprep.mubr.bf16.mxu0 0
    %2117 = vmatmul.mubr.bf16.gmra.mrb[0].mxu0 %v1973
    %v2118 = vpop.f32.mrb[0].mxu0
    %v2119 = vadd.f32 %v1997, %v2118
    %v2120 = vpop.f32.mrb[0].mxu0
    %v2121 = vadd.f32 %v2001, %v2120
    %v2122 = vpop.f32.mrb[0].mxu0
    %v2123 = vadd.f32 %v1997, %v2122
    %v2124 = vpop.f32.mrb[0].mxu0
    %v2125 = vadd.f32 %v2001, %v2124
    %2126 = vmatprep.mubr.bf16.mxu0 0
    %2127 = vmatmul.mubr.bf16.gmra.mrb[0].mxu0 %v1974
    %v2128 = vpop.f32.mrb[0].mxu0
    %v2129 = vadd.f32 %v1997, %v2128
    %v2130 = vpop.f32.mrb[0].mxu0
    %v2131 = vadd.f32 %v2001, %v2130
    %v2132 = vpop.f32.mrb[0].mxu0
    %v2133 = vadd.f32 %v1997, %v2132
    %v2134 = vpop.f32.mrb[0].mxu0
    %v2135 = vadd.f32 %v2001, %v2134
    %2136 = vdwg.mxu0
    %v2137 = vmul.f32 %v2119, %v2119
    %v2138 = vmul.f32 %v2121, %v2121
    %v2139 = vmul.f32 %v2123, %v2123
    %v2140 = vmul.f32 %v2125, %v2125
    %v2141 = vmul.f32 %v2129, %v2129
    %v2142 = vmul.f32 %v2131, %v2131
    %v2143 = vmul.f32 %v2133, %v2133
    %v2144 = vmul.f32 %v2135, %v2135
    %v2145 = vmul.f32 %v2119, %v2137
    %v2146 = vmul.f32 %v2121, %v2138
    %v2147 = vmul.f32 %v2123, %v2139
    %v2148 = vmul.f32 %v2125, %v2140
    %v2149 = vmul.f32 %v2129, %v2141
    %v2150 = vmul.f32 %v2131, %v2142
    %v2151 = vmul.f32 %v2133, %v2143
    %v2152 = vmul.f32 %v2135, %v2144
    %v2153 = vmul.f32 %v2145, 0.044715
    %v2154 = vmul.f32 %v2146, 0.044715
    %v2155 = vmul.f32 %v2147, 0.044715
    %v2156 = vmul.f32 %v2148, 0.044715
    %v2157 = vmul.f32 %v2149, 0.044715
    %v2158 = vmul.f32 %v2150, 0.044715
    %v2159 = vmul.f32 %v2151, 0.044715
    %v2160 = vmul.f32 %v2152, 0.044715
    %v2161 = vadd.f32 %v2119, %v2153
    %v2162 = vadd.f32 %v2121, %v2154
    %v2163 = vadd.f32 %v2123, %v2155
    %v2164 = vadd.f32 %v2125, %v2156
    %v2165 = vadd.f32 %v2129, %v2157
    %v2166 = vadd.f32 %v2131, %v2158
    %v2167 = vadd.f32 %v2133, %v2159
    %v2168 = vadd.f32 %v2135, %v2160
    %v2169 = vmul.f32 %v2161, 0.7978846
    %v2170 = vmul.f32 %v2162, 0.7978846
    %v2171 = vmul.f32 %v2163, 0.7978846
    %v2172 = vmul.f32 %v2164, 0.7978846
    %v2173 = vmul.f32 %v2165, 0.7978846
    %v2174 = vmul.f32 %v2166, 0.7978846
    %v2175 = vmul.f32 %v2167, 0.7978846
    %v2176 = vmul.f32 %v2168, 0.7978846
    %v2177 = vtanh.pop %v2169
    %v2178 = vtanh.pop %v2170
    %v2179 = vtanh.pop %v2171
    %v2180 = vtanh.pop %v2172
    %v2181 = vtanh.pop %v2173
    %v2182 = vtanh.pop %v2174
    %v2183 = vtanh.pop %v2175
    %v2184 = vtanh.pop %v2176
    %v2185 = vadd.f32 %v2177, 1.0
    %v2186 = vadd.f32 %v2178, 1.0
    %v2187 = vadd.f32 %v2179, 1.0
    %v2188 = vadd.f32 %v2180, 1.0
    %v2189 = vadd.f32 %v2181, 1.0
    %v2190 = vadd.f32 %v2182, 1.0
    %v2191 = vadd.f32 %v2183, 1.0
    %v2192 = vadd.f32 %v2184, 1.0
    %v2193 = vmul.f32 %v2185, 0.5
    %v2194 = vmul.f32 %v2186, 0.5
    %v2195 = vmul.f32 %v2187, 0.5
    %v2196 = vmul.f32 %v2188, 0.5
    %v2197 = vmul.f32 %v2189, 0.5
    %v2198 = vmul.f32 %v2190, 0.5
    %v2199 = vmul.f32 %v2191, 0.5
    %v2200 = vmul.f32 %v2192, 0.5
    %v2201 = vmul.f32 %v2119, %v2193
    %v2202 = vmul.f32 %v2121, %v2194
    %v2203 = vmul.f32 %v2123, %v2195
    %v2204 = vmul.f32 %v2125, %v2196
    %v2205 = vmul.f32 %v2129, %v2197
    %v2206 = vmul.f32 %v2131, %v2198
    %v2207 = vmul.f32 %v2133, %v2199
    %v2208 = vmul.f32 %v2135, %v2200
    %v2209 = vpack.c.bf16 %v2203, %v2201
    %v2210 = vpack.c.bf16 %v2204, %v2202
    %v2211 = vpack.c.bf16 %v2207, %v2205
    %v2212 = vpack.c.bf16 %v2208, %v2206
    %v2213 = vld [vmem:[#allocation10] sm:$0xf]
    %v2214 = vld [vmem:[#allocation10 + $0x4] sm:$0xf]
    %v2215 = vld [vmem:[#allocation10 + $0x8] sm:$0xf]
    %v2216 = vld [vmem:[#allocation10 + $0xc] sm:$0xf]
    %v2217 = vld [vmem:[#allocation10 + $0x10] sm:$0xf]
    %v2218 = vld [vmem:[#allocation10 + $0x14] sm:$0xf]
    %v2219 = vld [vmem:[#allocation10 + $0x18] sm:$0xf]
    %v2220 = vld [vmem:[#allocation10 + $0x1c] sm:$0xf]
    %v2221 = vld [vmem:[#allocation10 + $0x20] sm:$0xf]
    %v2222 = vld [vmem:[#allocation10 + $0x24] sm:$0xf]
    %v2223 = vld [vmem:[#allocation10 + $0x28] sm:$0xf]
    %v2224 = vld [vmem:[#allocation10 + $0x2c] sm:$0xf]
    %v2225 = vld [vmem:[#allocation10 + $0x30] sm:$0xf]
    %v2226 = vld [vmem:[#allocation10 + $0x34] sm:$0xf]
    %v2227 = vld [vmem:[#allocation10 + $0x38] sm:$0xf]
    %v2228 = vld [vmem:[#allocation10 + $0x3c] sm:$0xf]
    %v2229 = vld [vmem:[#allocation10 + $0x40] sm:$0xf]
    %v2230 = vld [vmem:[#allocation10 + $0x44] sm:$0xf]
    %v2231 = vld [vmem:[#allocation10 + $0x48] sm:$0xf]
    %v2232 = vld [vmem:[#allocation10 + $0x4c] sm:$0xf]
    %v2233 = vld [vmem:[#allocation10 + $0x50] sm:$0xf]
    %v2234 = vld [vmem:[#allocation10 + $0x54] sm:$0xf]
    %v2235 = vld [vmem:[#allocation10 + $0x58] sm:$0xf]
    %v2236 = vld [vmem:[#allocation10 + $0x5c] sm:$0xf]
    %v2237 = vld [vmem:[#allocation10 + $0x60] sm:$0xf]
    %v2238 = vld [vmem:[#allocation10 + $0x64] sm:$0xf]
    %v2239 = vld [vmem:[#allocation10 + $0x68] sm:$0xf]
    %v2240 = vld [vmem:[#allocation10 + $0x6c] sm:$0xf]
    %v2241 = vld [vmem:[#allocation10 + $0x70] sm:$0xf]
    %v2242 = vld [vmem:[#allocation10 + $0x74] sm:$0xf]
    %v2243 = vld [vmem:[#allocation10 + $0x78] sm:$0xf]
    %v2244 = vld [vmem:[#allocation10 + $0x7c] sm:$0xf]
    %v2245 = vld [vmem:[#allocation2 + $0x1c] ss:$0 sm:$0xff]
    %v2278 = vunpack.c.l.b16 %v2213
    %v2279 = vunpack.c.l.b16 %v2214
    %v2280 = vunpack.c.l.b16 %v2215
    %v2281 = vunpack.c.l.b16 %v2216
    %v2282 = vunpack.c.l.b16 %v2217
    %v2283 = vunpack.c.l.b16 %v2218
    %v2284 = vunpack.c.l.b16 %v2219
    %v2285 = vunpack.c.l.b16 %v2220
    %v2286 = vunpack.c.l.b16 %v2221
    %v2287 = vunpack.c.l.b16 %v2222
    %v2288 = vunpack.c.l.b16 %v2223
    %v2289 = vunpack.c.l.b16 %v2224
    %v2290 = vunpack.c.l.b16 %v2225
    %v2291 = vunpack.c.l.b16 %v2226
    %v2292 = vunpack.c.l.b16 %v2227
    %v2293 = vunpack.c.l.b16 %v2228
    %v2294 = vunpack.c.l.b16 %v2229
    %v2295 = vunpack.c.l.b16 %v2230
    %v2296 = vunpack.c.l.b16 %v2231
    %v2297 = vunpack.c.l.b16 %v2232
    %v2298 = vunpack.c.l.b16 %v2233
    %v2299 = vunpack.c.l.b16 %v2234
    %v2300 = vunpack.c.l.b16 %v2235
    %v2301 = vunpack.c.l.b16 %v2236
    %v2302 = vunpack.c.l.b16 %v2237
    %v2303 = vunpack.c.l.b16 %v2238
    %v2304 = vunpack.c.l.b16 %v2239
    %v2305 = vunpack.c.l.b16 %v2240
    %v2306 = vunpack.c.l.b16 %v2241
    %v2307 = vunpack.c.l.b16 %v2242
    %v2308 = vunpack.c.l.b16 %v2243
    %v2309 = vunpack.c.l.b16 %v2244
    %v2310 = vpack.c.b16 %v2279, %v2278
    %v2311 = vpack.c.b16 %v2281, %v2280
    %v2312 = vpack.c.b16 %v2283, %v2282
    %v2313 = vpack.c.b16 %v2285, %v2284
    %v2314 = vpack.c.b16 %v2287, %v2286
    %v2315 = vpack.c.b16 %v2289, %v2288
    %v2316 = vpack.c.b16 %v2291, %v2290
    %v2317 = vpack.c.b16 %v2293, %v2292
    %v2318 = vpack.c.b16 %v2295, %v2294
    %v2319 = vpack.c.b16 %v2297, %v2296
    %v2320 = vpack.c.b16 %v2299, %v2298
    %v2321 = vpack.c.b16 %v2301, %v2300
    %v2322 = vpack.c.b16 %v2303, %v2302
    %v2323 = vpack.c.b16 %v2305, %v2304
    %v2324 = vpack.c.b16 %v2307, %v2306
    %v2325 = vpack.c.b16 %v2309, %v2308
    %2342 = vmatprep.subr.bf16.mxu0 0
    %2343 = vmatpush1.bf16.msra.mxu0 %v2310
    %2344 = vmatprep.subr.bf16.mxu0 0
    %2345 = vmatpush1.bf16.msra.mxu0 %v2311
    %2346 = vmatprep.subr.bf16.mxu0 0
    %2347 = vmatpush1.bf16.msra.mxu0 %v2312
    %2348 = vmatprep.subr.bf16.mxu0 0
    %2349 = vmatpush1.bf16.msra.mxu0 %v2313
    %2350 = vmatprep.subr.bf16.mxu0 0
    %2351 = vmatpush1.bf16.msra.mxu0 %v2314
    %2352 = vmatprep.subr.bf16.mxu0 0
    %2353 = vmatpush1.bf16.msra.mxu0 %v2315
    %2354 = vmatprep.subr.bf16.mxu0 0
    %2355 = vmatpush1.bf16.msra.mxu0 %v2316
    %2356 = vmatprep.subr.bf16.mxu0 0
    %2357 = vmatpush1.bf16.msra.mxu0 %v2317
    %2358 = vmatprep.subr.bf16.mxu0 0
    %2359 = vmatpush1.bf16.msra.mxu0 %v2318
    %2360 = vmatprep.subr.bf16.mxu0 0
    %2361 = vmatpush1.bf16.msra.mxu0 %v2319
    %2362 = vmatprep.subr.bf16.mxu0 0
    %2363 = vmatpush1.bf16.msra.mxu0 %v2320
    %2364 = vmatprep.subr.bf16.mxu0 0
    %2365 = vmatpush1.bf16.msra.mxu0 %v2321
    %2366 = vmatprep.subr.bf16.mxu0 0
    %2367 = vmatpush1.bf16.msra.mxu0 %v2322
    %2368 = vmatprep.subr.bf16.mxu0 0
    %2369 = vmatpush1.bf16.msra.mxu0 %v2323
    %2370 = vmatprep.subr.bf16.mxu0 0
    %2371 = vmatpush1.bf16.msra.mxu0 %v2324
    %2372 = vmatprep.subr.bf16.mxu0 0
    %2373 = vmatpush1.bf16.msra.mxu0 %v2325
    %2374 = vmatprep.mubr.bf16.mxu0 %v2210
    %2375 = vmatmul.mubr.bf16.gmra.mrb[0].mxu0 %v2209
    %v2376 = vpop.f32.mrb[0].mxu0
    %v2377 = vadd.f32 %v2245, %v2376
    %v2378 = vpop.f32.mrb[0].mxu0
    %v2379 = vpop.f32.mrb[0].mxu0
    %v2380 = vadd.f32 %v2245, %v2379
    %v2381 = vpop.f32.mrb[0].mxu0
    %2382 = vmatprep.mubr.bf16.mxu0 %v2212
    %2383 = vmatmul.mubr.bf16.gmra.mrb[0].mxu0 %v2211
    %v2384 = vpop.f32.mrb[0].mxu0
    %v2385 = vadd.f32 %v2245, %v2384
    %v2386 = vpop.f32.mrb[0].mxu0
    %v2387 = vpop.f32.mrb[0].mxu0
    %v2388 = vadd.f32 %v2245, %v2387
    %v2389 = vpop.f32.mrb[0].mxu0
    %2390 = vdwg.mxu0
    %v2391 = vadd.f32 %v2377, %v1969
    %v2392 = vadd.f32 %v2380, %v1970
    %v2393 = vadd.f32 %v2385, %v1971
    %v2394 = vadd.f32 %v2388, %v1972
    %v2395 = vld [vmem:[#allocation2 + $0x18] sm:$0x60]
    %2396 = vadd.xlane.f32.xlu0 %v2391
    %v2397 = vpop.xlane.xlu0 %2396
    %2398 = vadd.xlane.f32.xlu0 %v2392
    %v2399 = vpop.xlane.xlu0 %2398
    %2400 = vadd.xlane.f32.xlu0 %v2393
    %v2401 = vpop.xlane.xlu0 %2400
    %2402 = vadd.xlane.f32.xlu0 %v2394
    %v2403 = vpop.xlane.xlu0 %2402
    %v2404 = vmul.f32 %v2397, %v946
    %v2405 = vmul.f32 %v2399, %v946
    %v2406 = vmul.f32 %v2401, %v946
    %v2407 = vmul.f32 %v2403, %v946
    %v2408 = vsub.f32 %v2391, %v2404
    %v2409 = vsub.f32 %v2392, %v2405
    %v2410 = vsub.f32 %v2393, %v2406
    %v2411 = vsub.f32 %v2394, %v2407
    %v2412 = vmul.f32 %v2408, %v2408
    %v2413 = vmul.f32 %v2409, %v2409
    %v2414 = vmul.f32 %v2410, %v2410
    %v2415 = vmul.f32 %v2411, %v2411
    %2416 = vadd.xlane.f32.xlu0 %v2412
    %v2417 = vpop.xlane.xlu0 %2416
    %2418 = vadd.xlane.f32.xlu0 %v2413
    %v2419 = vpop.xlane.xlu0 %2418
    %2420 = vadd.xlane.f32.xlu0 %v2414
    %v2421 = vpop.xlane.xlu0 %2420
    %2422 = vadd.xlane.f32.xlu0 %v2415
    %v2423 = vpop.xlane.xlu0 %2422
    %v2424 = vmul.f32 %v2417, %v946
    %v2425 = vmul.f32 %v2419, %v946
    %v2426 = vmul.f32 %v2421, %v946
    %v2427 = vmul.f32 %v2423, %v946
    %v2428 = vadd.f32 %v2424, 1e-05
    %v2429 = vadd.f32 %v2425, 1e-05
    %v2430 = vadd.f32 %v2426, 1e-05
    %v2431 = vadd.f32 %v2427, 1e-05
    %v2432 = vrsqrt.pop %v2428
    %v2433 = vrsqrt.pop %v2429
    %v2434 = vrsqrt.pop %v2430
    %v2435 = vrsqrt.pop %v2431
    %v2436 = vmul.f32 %v2408, %v2432
    %v2437 = vmul.f32 %v2409, %v2433
    %v2438 = vmul.f32 %v2410, %v2434
    %v2439 = vmul.f32 %v2411, %v2435
    %v2440 = vlaneseq
    %v2441 = vshrl.u32 %v2440, 7
    %v2442 = vsub.s32 5, %v2441
    %v2443 = vrot.slane %v2395, %v2442
    %v2444 = vmul.f32 %v2436, %v2443
    %v2445 = vmul.f32 %v2437, %v2443
    %v2446 = vmul.f32 %v2438, %v2443
    %v2447 = vmul.f32 %v2439, %v2443
    %v2448 = vlaneseq
    %v2449 = vshrl.u32 %v2448, 7
    %v2450 = vsub.s32 6, %v2449
    %v2451 = vrot.slane %v2395, %v2450
    %v2452 = vadd.f32 %v2444, %v2451
    %v2453 = vadd.f32 %v2445, %v2451
    %v2454 = vadd.f32 %v2446, %v2451
    %v2455 = vadd.f32 %v2447, %v2451
    %v2456 = vpack.c.bf16 %v2453, %v2452
    %v2457 = vpack.c.bf16 %v2455, %v2454
    %s2458 = scalar_lea.vmem %s5, 192
    %v2459 = vld [vmem:[%s2458] sm:$0xff]
    %v2460 = vld [vmem:[%s2458 + $0x8] sm:$0xf]
    %v2461 = vld [vmem:[%s2458 + $0xc] sm:$0xff]
    %v2462 = vld [vmem:[%s2458 + $0x14] sm:$0xf]
    %v2463 = vld [vmem:[%s2458 + $0x18] sm:$0xff]
    %v2464 = vld [vmem:[%s2458 + $0x20] sm:$0xf]
    %v2465 = vld [vmem:[%s2458 + $0x24] sm:$0xff]
    %v2466 = vld [vmem:[%s2458 + $0x2c] sm:$0xf]
    %v2467 = vld [vmem:[%s2458 + $0x30] sm:$0xff]
    %v2468 = vld [vmem:[%s2458 + $0x38] sm:$0xf]
    %v2469 = vld [vmem:[%s2458 + $0x3c] sm:$0xff]
    %v2470 = vld [vmem:[%s2458 + $0x44] sm:$0xf]
    %v2471 = vld [vmem:[%s2458 + $0x48] sm:$0xff]
    %v2472 = vld [vmem:[%s2458 + $0x50] sm:$0xf]
    %v2473 = vld [vmem:[%s2458 + $0x54] sm:$0xff]
    %v2474 = vld [vmem:[%s2458 + $0x5c] sm:$0xf]
    %v2475 = vld [vmem:[%s2458 + $0x60] sm:$0xff]
    %v2476 = vld [vmem:[%s2458 + $0x68] sm:$0xf]
    %v2477 = vld [vmem:[%s2458 + $0x6c] sm:$0xff]
    %v2478 = vld [vmem:[%s2458 + $0x74] sm:$0xf]
    %v2479 = vld [vmem:[%s2458 + $0x78] sm:$0xff]
    %v2480 = vld [vmem:[%s2458 + $0x80] sm:$0xf]
    %v2481 = vld [vmem:[%s2458 + $0x84] sm:$0xff]
    %v2482 = vld [vmem:[%s2458 + $0x8c] sm:$0xf]
    %v2483 = vld [vmem:[%s2458 + $0x90] sm:$0xff]
    %v2484 = vld [vmem:[%s2458 + $0x98] sm:$0xf]
    %v2485 = vld [vmem:[%s2458 + $0x9c] sm:$0xff]
    %v2486 = vld [vmem:[%s2458 + $0xa4] sm:$0xf]
    %v2487 = vld [vmem:[%s2458 + $0xa8] sm:$0xff]
    %v2488 = vld [vmem:[%s2458 + $0xb0] sm:$0xf]
    %v2489 = vld [vmem:[%s2458 + $0xb4] sm:$0xff]
    %v2490 = vld [vmem:[%s2458 + $0xbc] sm:$0xf]
    %s2491 = scalar_lea.vmem [#allocation2], 31
    %v2492 = vld [vmem:[%s2491] ss:$8 sm:$0x7]
    %v2494 = vlaneseq
    %v2495 = vshrl.u32 %v2494, 7
    %v2496 = vsub.s32 0, %v2495
    %v2497 = vrot.slane %v2492, %v2496
    %v2498 = vlaneseq
    %v2499 = vshrl.u32 %v2498, 7
    %v2500 = vsub.s32 1, %v2499
    %v2501 = vrot.slane %v2492, %v2500
    %v2502 = vlaneseq
    %v2503 = vshrl.u32 %v2502, 7
    %v2504 = vsub.s32 2, %v2503
    %v2505 = vrot.slane %v2492, %v2504
    %v2541 = vunpack.c.l.b16 %v2459
    %v2542 = vunpack.c.h.b16 %v2459
    %v2543 = vunpack.c.l.b16 %v2460
    %v2544 = vunpack.c.l.b16 %v2461
    %v2545 = vunpack.c.h.b16 %v2461
    %v2546 = vunpack.c.l.b16 %v2462
    %v2547 = vunpack.c.l.b16 %v2463
    %v2548 = vunpack.c.h.b16 %v2463
    %v2549 = vunpack.c.l.b16 %v2464
    %v2550 = vunpack.c.l.b16 %v2465
    %v2551 = vunpack.c.h.b16 %v2465
    %v2552 = vunpack.c.l.b16 %v2466
    %v2553 = vunpack.c.l.b16 %v2467
    %v2554 = vunpack.c.h.b16 %v2467
    %v2555 = vunpack.c.l.b16 %v2468
    %v2556 = vunpack.c.l.b16 %v2469
    %v2557 = vunpack.c.h.b16 %v2469
    %v2558 = vunpack.c.l.b16 %v2470
    %v2559 = vunpack.c.l.b16 %v2471
    %v2560 = vunpack.c.h.b16 %v2471
    %v2561 = vunpack.c.l.b16 %v2472
    %v2562 = vunpack.c.l.b16 %v2473
    %v2563 = vunpack.c.h.b16 %v2473
    %v2564 = vunpack.c.l.b16 %v2474
    %v2565 = vunpack.c.l.b16 %v2475
    %v2566 = vunpack.c.h.b16 %v2475
    %v2567 = vunpack.c.l.b16 %v2476
    %v2568 = vunpack.c.l.b16 %v2477
    %v2569 = vunpack.c.h.b16 %v2477
    %v2570 = vunpack.c.l.b16 %v2478
    %v2571 = vunpack.c.l.b16 %v2479
    %v2572 = vunpack.c.h.b16 %v2479
    %v2573 = vunpack.c.l.b16 %v2480
    %v2574 = vunpack.c.l.b16 %v2481
    %v2575 = vunpack.c.h.b16 %v2481
    %v2576 = vunpack.c.l.b16 %v2482
    %v2577 = vunpack.c.l.b16 %v2483
    %v2578 = vunpack.c.h.b16 %v2483
    %v2579 = vunpack.c.l.b16 %v2484
    %v2580 = vunpack.c.l.b16 %v2485
    %v2581 = vunpack.c.h.b16 %v2485
    %v2582 = vunpack.c.l.b16 %v2486
    %v2583 = vunpack.c.l.b16 %v2487
    %v2584 = vunpack.c.h.b16 %v2487
    %v2585 = vunpack.c.l.b16 %v2488
    %v2586 = vunpack.c.l.b16 %v2489
    %v2587 = vunpack.c.h.b16 %v2489
    %v2588 = vunpack.c.l.b16 %v2490
    %v2589 = vpack.c.b16 %v2544, %v2541
    %v2590 = vpack.c.b16 %v2545, %v2542
    %v2591 = vpack.c.b16 %v2546, %v2543
    %v2592 = vpack.c.b16 %v2550, %v2547
    %v2593 = vpack.c.b16 %v2551, %v2548
    %v2594 = vpack.c.b16 %v2552, %v2549
    %v2595 = vpack.c.b16 %v2556, %v2553
    %v2596 = vpack.c.b16 %v2557, %v2554
    %v2597 = vpack.c.b16 %v2558, %v2555
    %v2598 = vpack.c.b16 %v2562, %v2559
    %v2599 = vpack.c.b16 %v2563, %v2560
    %v2600 = vpack.c.b16 %v2564, %v2561
    %v2601 = vpack.c.b16 %v2568, %v2565
    %v2602 = vpack.c.b16 %v2569, %v2566
    %v2603 = vpack.c.b16 %v2570, %v2567
    %v2604 = vpack.c.b16 %v2574, %v2571
    %v2605 = vpack.c.b16 %v2575, %v2572
    %v2606 = vpack.c.b16 %v2576, %v2573
    %v2607 = vpack.c.b16 %v2580, %v2577
    %v2608 = vpack.c.b16 %v2581, %v2578
    %v2609 = vpack.c.b16 %v2582, %v2579
    %v2610 = vpack.c.b16 %v2586, %v2583
    %v2611 = vpack.c.b16 %v2587, %v2584
    %v2612 = vpack.c.b16 %v2588, %v2585
    %2637 = vmatprep.subr.bf16.mxu0 %v2590
    %2638 = vmatpush1.bf16.msra.mxu0 %v2589
    %2639 = vmatprep.subr.bf16.mxu0 %v2593
    %2640 = vmatpush1.bf16.msra.mxu0 %v2592
    %2641 = vmatprep.subr.bf16.mxu0 %v2596
    %2642 = vmatpush1.bf16.msra.mxu0 %v2595
    %2643 = vmatprep.subr.bf16.mxu0 %v2599
    %2644 = vmatpush1.bf16.msra.mxu0 %v2598
    %2645 = vmatprep.subr.bf16.mxu0 %v2602
    %2646 = vmatpush1.bf16.msra.mxu0 %v2601
    %2647 = vmatprep.subr.bf16.mxu0 %v2605
    %2648 = vmatpush1.bf16.msra.mxu0 %v2604
    %2649 = vmatprep.subr.bf16.mxu0 %v2608
    %2650 = vmatpush1.bf16.msra.mxu0 %v2607
    %2651 = vmatprep.subr.bf16.mxu0 %v2611
    %2652 = vmatpush1.bf16.msra.mxu0 %v2610
    %2653 = vmatprep.subr.bf16.mxu0 0
    %2654 = vmatpush1.bf16.msra.mxu0 0
    %2655 = vmatprep.subr.bf16.mxu0 0
    %2656 = vmatpush1.bf16.msra.mxu0 0
    %2657 = vmatprep.subr.bf16.mxu0 0
    %2658 = vmatpush1.bf16.msra.mxu0 0
    %2659 = vmatprep.subr.bf16.mxu0 0
    %2660 = vmatpush1.bf16.msra.mxu0 0
    %2661 = vmatprep.subr.bf16.mxu0 0
    %2662 = vmatpush1.bf16.msra.mxu0 0
    %2663 = vmatprep.subr.bf16.mxu0 0
    %2664 = vmatpush1.bf16.msra.mxu0 0
    %2665 = vmatprep.subr.bf16.mxu0 0
    %2666 = vmatpush1.bf16.msra.mxu0 0
    %2667 = vmatprep.subr.bf16.mxu0 0
    %2668 = vmatpush1.bf16.msra.mxu0 0
    %2669 = vmatprep.mubr.bf16.mxu0 0
    %2670 = vmatmul.mubr.bf16.gmra.mrb[0].mxu0 %v2456
    %v2671 = vpop.f32.mrb[0].mxu0
    %v2672 = vadd.f32 %v2497, %v2671
    %v2673 = vpop.f32.mrb[0].mxu0
    %v2674 = vadd.f32 %v2501, %v2673
    %v2675 = vpop.f32.mrb[0].mxu0
    %v2676 = vadd.f32 %v2497, %v2675
    %v2677 = vpop.f32.mrb[0].mxu0
    %v2678 = vadd.f32 %v2501, %v2677
    %2679 = vmatprep.mubr.bf16.mxu0 0
    %2680 = vmatmul.mubr.bf16.gmra.mrb[0].mxu0 %v2457
    %v2681 = vpop.f32.mrb[0].mxu0
    %v2682 = vadd.f32 %v2497, %v2681
    %v2683 = vpop.f32.mrb[0].mxu0
    %v2684 = vadd.f32 %v2501, %v2683
    %v2685 = vpop.f32.mrb[0].mxu0
    %v2686 = vadd.f32 %v2497, %v2685
    %v2687 = vpop.f32.mrb[0].mxu0
    %v2688 = vadd.f32 %v2501, %v2687
    %2689 = vdwg.mxu0
    %2690 = vmatprep.subr.bf16.mxu0 0
    %2691 = vmatpush1.bf16.msra.mxu0 %v2591
    %2692 = vmatprep.subr.bf16.mxu0 0
    %2693 = vmatpush1.bf16.msra.mxu0 %v2594
    %2694 = vmatprep.subr.bf16.mxu0 0
    %2695 = vmatpush1.bf16.msra.mxu0 %v2597
    %2696 = vmatprep.subr.bf16.mxu0 0
    %2697 = vmatpush1.bf16.msra.mxu0 %v2600
    %2698 = vmatprep.subr.bf16.mxu0 0
    %2699 = vmatpush1.bf16.msra.mxu0 %v2603
    %2700 = vmatprep.subr.bf16.mxu0 0
    %2701 = vmatpush1.bf16.msra.mxu0 %v2606
    %2702 = vmatprep.subr.bf16.mxu0 0
    %2703 = vmatpush1.bf16.msra.mxu0 %v2609
    %2704 = vmatprep.subr.bf16.mxu0 0
    %2705 = vmatpush1.bf16.msra.mxu0 %v2612
    %2706 = vmatprep.subr.bf16.mxu0 0
    %2707 = vmatpush1.bf16.msra.mxu0 0
    %2708 = vmatprep.subr.bf16.mxu0 0
    %2709 = vmatpush1.bf16.msra.mxu0 0
    %2710 = vmatprep.subr.bf16.mxu0 0
    %2711 = vmatpush1.bf16.msra.mxu0 0
    %2712 = vmatprep.subr.bf16.mxu0 0
    %2713 = vmatpush1.bf16.msra.mxu0 0
    %2714 = vmatprep.subr.bf16.mxu0 0
    %2715 = vmatpush1.bf16.msra.mxu0 0
    %2716 = vmatprep.subr.bf16.mxu0 0
    %2717 = vmatpush1.bf16.msra.mxu0 0
    %2718 = vmatprep.subr.bf16.mxu0 0
    %2719 = vmatpush1.bf16.msra.mxu0 0
    %2720 = vmatprep.subr.bf16.mxu0 0
    %2721 = vmatpush1.bf16.msra.mxu0 0
    %2722 = vmatprep.mubr.bf16.mxu0 0
    %2723 = vmatmul.mubr.bf16.gmra.mrb[0].mxu0 %v2456
    %v2724 = vpop.f32.mrb[0].mxu0
    %v2725 = vadd.f32 %v2505, %v2724
    %v2726 = vpop.f32.mrb[0].mxu0
    %v2727 = vpop.f32.mrb[0].mxu0
    %v2728 = vadd.f32 %v2505, %v2727
    %v2729 = vpop.f32.mrb[0].mxu0
    %2730 = vmatprep.mubr.bf16.mxu0 0
    %2731 = vmatmul.mubr.bf16.gmra.mrb[0].mxu0 %v2457
    %v2732 = vpop.f32.mrb[0].mxu0
    %v2733 = vadd.f32 %v2505, %v2732
    %v2734 = vpop.f32.mrb[0].mxu0
    %v2735 = vpop.f32.mrb[0].mxu0
    %v2736 = vadd.f32 %v2505, %v2735
    %v2737 = vpop.f32.mrb[0].mxu0
    %2738 = vdwg.mxu0
    %v2739 = vpack.c.bf16 %v2676, %v2672
    %v2740 = vpack.c.bf16 %v2686, %v2682
    %v2741 = vpack.c.bf16 %v2678, %v2674
    %v2742 = vpack.c.bf16 %v2688, %v2684
    %v2743 = vpack.c.bf16 %v2728, %v2725
    %v2744 = vpack.c.bf16 %v2736, %v2733
    %v2746 = vsel %vm777, %v2739, 0
    %v2749 = vsel %vm777, %v2741, 0
    %2751 = vmatprep.subr.bf16.mxu0 0
    %2752 = vmatpush1.bf16.xpose.msra.mxu0 %v2749
    %2753 = vmatprep.subr.bf16.mxu0 0
    %2754 = vmatpush1.bf16.xpose.msra.mxu0 0
    %2755 = vmatprep.subr.bf16.mxu0 0
    %2756 = vmatpush1.bf16.xpose.msra.mxu0 0
    %2757 = vmatprep.subr.bf16.mxu0 0
    %2758 = vmatpush1.bf16.xpose.msra.mxu0 0
    %2759 = vmatprep.subr.bf16.mxu0 0
    %2760 = vmatpush1.bf16.xpose.msra.mxu0 0
    %2761 = vmatprep.subr.bf16.mxu0 0
    %2762 = vmatpush1.bf16.xpose.msra.mxu0 0
    %2763 = vmatprep.subr.bf16.mxu0 0
    %2764 = vmatpush1.bf16.xpose.msra.mxu0 0
    %2765 = vmatprep.subr.bf16.mxu0 0
    %2766 = vmatpush1.bf16.xpose.msra.mxu0 0
    %2767 = vmatprep.subr.bf16.mxu0 0
    %2768 = vmatpush1.bf16.xpose.msra.mxu0 0
    %2769 = vmatprep.subr.bf16.mxu0 0
    %2770 = vmatpush1.bf16.xpose.msra.mxu0 0
    %2771 = vmatprep.subr.bf16.mxu0 0
    %2772 = vmatpush1.bf16.xpose.msra.mxu0 0
    %2773 = vmatprep.subr.bf16.mxu0 0
    %2774 = vmatpush1.bf16.xpose.msra.mxu0 0
    %2775 = vmatprep.subr.bf16.mxu0 0
    %2776 = vmatpush1.bf16.xpose.msra.mxu0 0
    %2777 = vmatprep.subr.bf16.mxu0 0
    %2778 = vmatpush1.bf16.xpose.msra.mxu0 0
    %2779 = vmatprep.subr.bf16.mxu0 0
    %2780 = vmatpush1.bf16.xpose.msra.mxu0 0
    %2781 = vmatprep.subr.bf16.mxu0 0
    %2782 = vmatpush1.bf16.xpose.msra.mxu0 0
    %2783 = vmatprep.mubr.bf16.mxu0 0
    %2784 = vmatmul.mubr.bf16.gmra.mrb[0].mxu0 %v2746
    %v2785 = vpop.f32.mrb[0].mxu0
    %v2786 = vadd.f32 0.0, %v2785
    %v2787 = vpop.f32.mrb[0].mxu0
    %v2788 = vpop.f32.mrb[0].mxu0
    %v2789 = vadd.f32 0.0, %v2788
    %v2790 = vpop.f32.mrb[0].mxu0
    %2791 = vdwg.mxu0
    %v2793 = vsel %vm777, %v2740, 0
    %v2796 = vsel %vm777, %v2742, 0
    %2798 = vmatprep.subr.bf16.mxu0 0
    %2799 = vmatpush1.bf16.xpose.msra.mxu0 %v2796
    %2800 = vmatprep.subr.bf16.mxu0 0
    %2801 = vmatpush1.bf16.xpose.msra.mxu0 0
    %2802 = vmatprep.subr.bf16.mxu0 0
    %2803 = vmatpush1.bf16.xpose.msra.mxu0 0
    %2804 = vmatprep.subr.bf16.mxu0 0
    %2805 = vmatpush1.bf16.xpose.msra.mxu0 0
    %2806 = vmatprep.subr.bf16.mxu0 0
    %2807 = vmatpush1.bf16.xpose.msra.mxu0 0
    %2808 = vmatprep.subr.bf16.mxu0 0
    %2809 = vmatpush1.bf16.xpose.msra.mxu0 0
    %2810 = vmatprep.subr.bf16.mxu0 0
    %2811 = vmatpush1.bf16.xpose.msra.mxu0 0
    %2812 = vmatprep.subr.bf16.mxu0 0
    %2813 = vmatpush1.bf16.xpose.msra.mxu0 0
    %2814 = vmatprep.subr.bf16.mxu0 0
    %2815 = vmatpush1.bf16.xpose.msra.mxu0 0
    %2816 = vmatprep.subr.bf16.mxu0 0
    %2817 = vmatpush1.bf16.xpose.msra.mxu0 0
    %2818 = vmatprep.subr.bf16.mxu0 0
    %2819 = vmatpush1.bf16.xpose.msra.mxu0 0
    %2820 = vmatprep.subr.bf16.mxu0 0
    %2821 = vmatpush1.bf16.xpose.msra.mxu0 0
    %2822 = vmatprep.subr.bf16.mxu0 0
    %2823 = vmatpush1.bf16.xpose.msra.mxu0 0
    %2824 = vmatprep.subr.bf16.mxu0 0
    %2825 = vmatpush1.bf16.xpose.msra.mxu0 0
    %2826 = vmatprep.subr.bf16.mxu0 0
    %2827 = vmatpush1.bf16.xpose.msra.mxu0 0
    %2828 = vmatprep.subr.bf16.mxu0 0
    %2829 = vmatpush1.bf16.xpose.msra.mxu0 0
    %2830 = vmatprep.mubr.bf16.mxu0 0
    %2831 = vmatmul.mubr.bf16.gmra.mrb[0].mxu0 %v2793
    %v2832 = vpop.f32.mrb[0].mxu0
    %v2833 = vadd.f32 0.0, %v2832
    %v2834 = vpop.f32.mrb[0].mxu0
    %v2835 = vpop.f32.mrb[0].mxu0
    %v2836 = vadd.f32 0.0, %v2835
    %v2837 = vpop.f32.mrb[0].mxu0
    %2838 = vdwg.mxu0
    %v2839 = vmul.f32 %v2786, 0.125
    %v2840 = vmul.f32 %v2789, 0.125
    %v2841 = vmul.f32 %v2833, 0.125
    %v2842 = vmul.f32 %v2836, 0.125
    %v2843 = vsel %vm1385, %v2839, -inf
    %2844 = vmax.xlane.f32.xlu0 %v2843
    %v2845 = vpop.xlane.xlu0 %2844
    %v2846 = vsel %vm1385, %v2840, -inf
    %2847 = vmax.xlane.f32.xlu0 %v2846
    %v2848 = vpop.xlane.xlu0 %2847
    %v2849 = vsel %vm1385, %v2841, -inf
    %2850 = vmax.xlane.f32.xlu0 %v2849
    %v2851 = vpop.xlane.xlu0 %2850
    %v2852 = vsel %vm1385, %v2842, -inf
    %2853 = vmax.xlane.f32.xlu0 %v2852
    %v2854 = vpop.xlane.xlu0 %2853
    %v2855 = vsub.f32 %v2839, %v2845
    %v2856 = vsub.f32 %v2840, %v2848
    %v2857 = vsub.f32 %v2841, %v2851
    %v2858 = vsub.f32 %v2842, %v2854
    %v2859 = vmul.f32 %v2855, 1.442695
    %v2860 = vpow.pop %v2859
    %v2861 = vmul.f32 %v2856, 1.442695
    %v2862 = vpow.pop %v2861
    %v2863 = vmul.f32 %v2857, 1.442695
    %v2864 = vpow.pop %v2863
    %v2865 = vmul.f32 %v2858, 1.442695
    %v2866 = vpow.pop %v2865
    %v2867 = vsel %vm1385, %v2860, 0.0
    %2868 = vadd.xlane.f32.xlu0 %v2867
    %v2869 = vpop.xlane.xlu0 %2868
    %v2870 = vsel %vm1385, %v2862, 0.0
    %2871 = vadd.xlane.f32.xlu0 %v2870
    %v2872 = vpop.xlane.xlu0 %2871
    %v2873 = vsel %vm1385, %v2864, 0.0
    %2874 = vadd.xlane.f32.xlu0 %v2873
    %v2875 = vpop.xlane.xlu0 %2874
    %v2876 = vsel %vm1385, %v2866, 0.0
    %2877 = vadd.xlane.f32.xlu0 %v2876
    %v2878 = vpop.xlane.xlu0 %2877
    %v2879 = vrcp.pop %v2869
    %v2880 = vrcp.pop %v2872
    %v2881 = vrcp.pop %v2875
    %v2882 = vrcp.pop %v2878
    %v2883 = vmul.f32 %v2860, %v2879
    %v2884 = vmul.f32 %v2862, %v2880
    %v2885 = vmul.f32 %v2864, %v2881
    %v2886 = vmul.f32 %v2866, %v2882
    %v2887 = vpack.c.bf16 %v2884, %v2883
    %v2888 = vpack.c.bf16 %v2886, %v2885
    %v2890 = vsel %vm1385, %v2887, 0
    %2892 = vmatprep.subr.bf16.mxu0 0
    %2893 = vmatpush1.bf16.msra.mxu0 %v2743
    %2894 = vmatprep.subr.bf16.mxu0 0
    %2895 = vmatpush1.bf16.msra.mxu0 0
    %2896 = vmatprep.subr.bf16.mxu0 0
    %2897 = vmatpush1.bf16.msra.mxu0 0
    %2898 = vmatprep.subr.bf16.mxu0 0
    %2899 = vmatpush1.bf16.msra.mxu0 0
    %2900 = vmatprep.subr.bf16.mxu0 0
    %2901 = vmatpush1.bf16.msra.mxu0 0
    %2902 = vmatprep.subr.bf16.mxu0 0
    %2903 = vmatpush1.bf16.msra.mxu0 0
    %2904 = vmatprep.subr.bf16.mxu0 0
    %2905 = vmatpush1.bf16.msra.mxu0 0
    %2906 = vmatprep.subr.bf16.mxu0 0
    %2907 = vmatpush1.bf16.msra.mxu0 0
    %2908 = vmatprep.subr.bf16.mxu0 0
    %2909 = vmatpush1.bf16.msra.mxu0 0
    %2910 = vmatprep.subr.bf16.mxu0 0
    %2911 = vmatpush1.bf16.msra.mxu0 0
    %2912 = vmatprep.subr.bf16.mxu0 0
    %2913 = vmatpush1.bf16.msra.mxu0 0
    %2914 = vmatprep.subr.bf16.mxu0 0
    %2915 = vmatpush1.bf16.msra.mxu0 0
    %2916 = vmatprep.subr.bf16.mxu0 0
    %2917 = vmatpush1.bf16.msra.mxu0 0
    %2918 = vmatprep.subr.bf16.mxu0 0
    %2919 = vmatpush1.bf16.msra.mxu0 0
    %2920 = vmatprep.subr.bf16.mxu0 0
    %2921 = vmatpush1.bf16.msra.mxu0 0
    %2922 = vmatprep.subr.bf16.mxu0 0
    %2923 = vmatpush1.bf16.msra.mxu0 0
    %2924 = vmatprep.mubr.bf16.mxu0 0
    %2925 = vmatmul.mubr.bf16.gmra.mrb[0].mxu0 %v2890
    %v2926 = vpop.f32.mrb[0].mxu0
    %v2927 = vadd.f32 0.0, %v2926
    %v2928 = vpop.f32.mrb[0].mxu0
    %v2929 = vpop.f32.mrb[0].mxu0
    %v2930 = vadd.f32 0.0, %v2929
    %v2931 = vpop.f32.mrb[0].mxu0
    %2932 = vdwg.mxu0
    %v2934 = vsel %vm1385, %v2888, 0
    %2936 = vmatprep.subr.bf16.mxu0 0
    %2937 = vmatpush1.bf16.msra.mxu0 %v2744
    %2938 = vmatprep.subr.bf16.mxu0 0
    %2939 = vmatpush1.bf16.msra.mxu0 0
    %2940 = vmatprep.subr.bf16.mxu0 0
    %2941 = vmatpush1.bf16.msra.mxu0 0
    %2942 = vmatprep.subr.bf16.mxu0 0
    %2943 = vmatpush1.bf16.msra.mxu0 0
    %2944 = vmatprep.subr.bf16.mxu0 0
    %2945 = vmatpush1.bf16.msra.mxu0 0
    %2946 = vmatprep.subr.bf16.mxu0 0
    %2947 = vmatpush1.bf16.msra.mxu0 0
    %2948 = vmatprep.subr.bf16.mxu0 0
    %2949 = vmatpush1.bf16.msra.mxu0 0
    %2950 = vmatprep.subr.bf16.mxu0 0
    %2951 = vmatpush1.bf16.msra.mxu0 0
    %2952 = vmatprep.subr.bf16.mxu0 0
    %2953 = vmatpush1.bf16.msra.mxu0 0
    %2954 = vmatprep.subr.bf16.mxu0 0
    %2955 = vmatpush1.bf16.msra.mxu0 0
    %2956 = vmatprep.subr.bf16.mxu0 0
    %2957 = vmatpush1.bf16.msra.mxu0 0
    %2958 = vmatprep.subr.bf16.mxu0 0
    %2959 = vmatpush1.bf16.msra.mxu0 0
    %2960 = vmatprep.subr.bf16.mxu0 0
    %2961 = vmatpush1.bf16.msra.mxu0 0
    %2962 = vmatprep.subr.bf16.mxu0 0
    %2963 = vmatpush1.bf16.msra.mxu0 0
    %2964 = vmatprep.subr.bf16.mxu0 0
    %2965 = vmatpush1.bf16.msra.mxu0 0
    %2966 = vmatprep.subr.bf16.mxu0 0
    %2967 = vmatpush1.bf16.msra.mxu0 0
    %2968 = vmatprep.mubr.bf16.mxu0 0
    %2969 = vmatmul.mubr.bf16.gmra.mrb[0].mxu0 %v2934
    %v2970 = vpop.f32.mrb[0].mxu0
    %v2971 = vadd.f32 0.0, %v2970
    %v2972 = vpop.f32.mrb[0].mxu0
    %v2973 = vpop.f32.mrb[0].mxu0
    %v2974 = vadd.f32 0.0, %v2973
    %v2975 = vpop.f32.mrb[0].mxu0
    %2976 = vdwg.mxu0
    %2978 = vrot.lane.b32.xlu0 %v2739, 64
    %v2979 = vpop.permute.xlu0 %2978
    %2981 = vrot.lane.b32.xlu0 %v2741, 64
    %v2982 = vpop.permute.xlu0 %2981
    %v2984 = vsel %vm777, %v2979, 0
    %v2987 = vsel %vm777, %v2982, 0
    %2989 = vmatprep.subr.bf16.mxu0 0
    %2990 = vmatpush1.bf16.xpose.msra.mxu0 %v2987
    %2991 = vmatprep.subr.bf16.mxu0 0
    %2992 = vmatpush1.bf16.xpose.msra.mxu0 0
    %2993 = vmatprep.subr.bf16.mxu0 0
    %2994 = vmatpush1.bf16.xpose.msra.mxu0 0
    %2995 = vmatprep.subr.bf16.mxu0 0
    %2996 = vmatpush1.bf16.xpose.msra.mxu0 0
    %2997 = vmatprep.subr.bf16.mxu0 0
    %2998 = vmatpush1.bf16.xpose.msra.mxu0 0
    %2999 = vmatprep.subr.bf16.mxu0 0
    %3000 = vmatpush1.bf16.xpose.msra.mxu0 0
    %3001 = vmatprep.subr.bf16.mxu0 0
    %3002 = vmatpush1.bf16.xpose.msra.mxu0 0
    %3003 = vmatprep.subr.bf16.mxu0 0
    %3004 = vmatpush1.bf16.xpose.msra.mxu0 0
    %3005 = vmatprep.subr.bf16.mxu0 0
    %3006 = vmatpush1.bf16.xpose.msra.mxu0 0
    %3007 = vmatprep.subr.bf16.mxu0 0
    %3008 = vmatpush1.bf16.xpose.msra.mxu0 0
    %3009 = vmatprep.subr.bf16.mxu0 0
    %3010 = vmatpush1.bf16.xpose.msra.mxu0 0
    %3011 = vmatprep.subr.bf16.mxu0 0
    %3012 = vmatpush1.bf16.xpose.msra.mxu0 0
    %3013 = vmatprep.subr.bf16.mxu0 0
    %3014 = vmatpush1.bf16.xpose.msra.mxu0 0
    %3015 = vmatprep.subr.bf16.mxu0 0
    %3016 = vmatpush1.bf16.xpose.msra.mxu0 0
    %3017 = vmatprep.subr.bf16.mxu0 0
    %3018 = vmatpush1.bf16.xpose.msra.mxu0 0
    %3019 = vmatprep.subr.bf16.mxu0 0
    %3020 = vmatpush1.bf16.xpose.msra.mxu0 0
    %3021 = vmatprep.mubr.bf16.mxu0 0
    %3022 = vmatmul.mubr.bf16.gmra.mrb[0].mxu0 %v2984
    %v3023 = vpop.f32.mrb[0].mxu0
    %v3024 = vadd.f32 0.0, %v3023
    %v3025 = vpop.f32.mrb[0].mxu0
    %v3026 = vpop.f32.mrb[0].mxu0
    %v3027 = vadd.f32 0.0, %v3026
    %v3028 = vpop.f32.mrb[0].mxu0
    %3029 = vdwg.mxu0
    %3031 = vrot.lane.b32.xlu0 %v2740, 64
    %v3032 = vpop.permute.xlu0 %3031
    %3034 = vrot.lane.b32.xlu0 %v2742, 64
    %v3035 = vpop.permute.xlu0 %3034
    %v3037 = vsel %vm777, %v3032, 0
    %v3040 = vsel %vm777, %v3035, 0
    %3042 = vmatprep.subr.bf16.mxu0 0
    %3043 = vmatpush1.bf16.xpose.msra.mxu0 %v3040
    %3044 = vmatprep.subr.bf16.mxu0 0
    %3045 = vmatpush1.bf16.xpose.msra.mxu0 0
    %3046 = vmatprep.subr.bf16.mxu0 0
    %3047 = vmatpush1.bf16.xpose.msra.mxu0 0
    %3048 = vmatprep.subr.bf16.mxu0 0
    %3049 = vmatpush1.bf16.xpose.msra.mxu0 0
    %3050 = vmatprep.subr.bf16.mxu0 0
    %3051 = vmatpush1.bf16.xpose.msra.mxu0 0
    %3052 = vmatprep.subr.bf16.mxu0 0
    %3053 = vmatpush1.bf16.xpose.msra.mxu0 0
    %3054 = vmatprep.subr.bf16.mxu0 0
    %3055 = vmatpush1.bf16.xpose.msra.mxu0 0
    %3056 = vmatprep.subr.bf16.mxu0 0
    %3057 = vmatpush1.bf16.xpose.msra.mxu0 0
    %3058 = vmatprep.subr.bf16.mxu0 0
    %3059 = vmatpush1.bf16.xpose.msra.mxu0 0
    %3060 = vmatprep.subr.bf16.mxu0 0
    %3061 = vmatpush1.bf16.xpose.msra.mxu0 0
    %3062 = vmatprep.subr.bf16.mxu0 0
    %3063 = vmatpush1.bf16.xpose.msra.mxu0 0
    %3064 = vmatprep.subr.bf16.mxu0 0
    %3065 = vmatpush1.bf16.xpose.msra.mxu0 0
    %3066 = vmatprep.subr.bf16.mxu0 0
    %3067 = vmatpush1.bf16.xpose.msra.mxu0 0
    %3068 = vmatprep.subr.bf16.mxu0 0
    %3069 = vmatpush1.bf16.xpose.msra.mxu0 0
    %3070 = vmatprep.subr.bf16.mxu0 0
    %3071 = vmatpush1.bf16.xpose.msra.mxu0 0
    %3072 = vmatprep.subr.bf16.mxu0 0
    %3073 = vmatpush1.bf16.xpose.msra.mxu0 0
    %3074 = vmatprep.mubr.bf16.mxu0 0
    %3075 = vmatmul.mubr.bf16.gmra.mrb[0].mxu0 %v3037
    %v3076 = vpop.f32.mrb[0].mxu0
    %v3077 = vadd.f32 0.0, %v3076
    %v3078 = vpop.f32.mrb[0].mxu0
    %v3079 = vpop.f32.mrb[0].mxu0
    %v3080 = vadd.f32 0.0, %v3079
    %v3081 = vpop.f32.mrb[0].mxu0
    %3082 = vdwg.mxu0
    %v3083 = vmul.f32 %v3024, 0.125
    %v3084 = vmul.f32 %v3027, 0.125
    %v3085 = vmul.f32 %v3077, 0.125
    %v3086 = vmul.f32 %v3080, 0.125
    %v3087 = vsel %vm1385, %v3083, -inf
    %3088 = vmax.xlane.f32.xlu0 %v3087
    %v3089 = vpop.xlane.xlu0 %3088
    %v3090 = vsel %vm1385, %v3084, -inf
    %3091 = vmax.xlane.f32.xlu0 %v3090
    %v3092 = vpop.xlane.xlu0 %3091
    %v3093 = vsel %vm1385, %v3085, -inf
    %3094 = vmax.xlane.f32.xlu0 %v3093
    %v3095 = vpop.xlane.xlu0 %3094
    %v3096 = vsel %vm1385, %v3086, -inf
    %3097 = vmax.xlane.f32.xlu0 %v3096
    %v3098 = vpop.xlane.xlu0 %3097
    %v3099 = vsub.f32 %v3083, %v3089
    %v3100 = vsub.f32 %v3084, %v3092
    %v3101 = vsub.f32 %v3085, %v3095
    %v3102 = vsub.f32 %v3086, %v3098
    %v3103 = vmul.f32 %v3099, 1.442695
    %v3104 = vpow.pop %v3103
    %v3105 = vmul.f32 %v3100, 1.442695
    %v3106 = vpow.pop %v3105
    %v3107 = vmul.f32 %v3101, 1.442695
    %v3108 = vpow.pop %v3107
    %v3109 = vmul.f32 %v3102, 1.442695
    %v3110 = vpow.pop %v3109
    %v3111 = vsel %vm1385, %v3104, 0.0
    %3112 = vadd.xlane.f32.xlu0 %v3111
    %v3113 = vpop.xlane.xlu0 %3112
    %v3114 = vsel %vm1385, %v3106, 0.0
    %3115 = vadd.xlane.f32.xlu0 %v3114
    %v3116 = vpop.xlane.xlu0 %3115
    %v3117 = vsel %vm1385, %v3108, 0.0
    %3118 = vadd.xlane.f32.xlu0 %v3117
    %v3119 = vpop.xlane.xlu0 %3118
    %v3120 = vsel %vm1385, %v3110, 0.0
    %3121 = vadd.xlane.f32.xlu0 %v3120
    %v3122 = vpop.xlane.xlu0 %3121
    %v3123 = vrcp.pop %v3113
    %v3124 = vrcp.pop %v3116
    %v3125 = vrcp.pop %v3119
    %v3126 = vrcp.pop %v3122
    %v3127 = vmul.f32 %v3104, %v3123
    %v3128 = vmul.f32 %v3106, %v3124
    %v3129 = vmul.f32 %v3108, %v3125
    %v3130 = vmul.f32 %v3110, %v3126
    %v3131 = vpack.c.bf16 %v3128, %v3127
    %v3132 = vpack.c.bf16 %v3130, %v3129
    %3134 = vrot.lane.b32.xlu0 %v2743, 64
    %v3135 = vpop.permute.xlu0 %3134
    %v3138 = vsel %vm1385, %v3131, 0
    %3140 = vmatprep.subr.bf16.mxu0 0
    %3141 = vmatpush1.bf16.msra.mxu0 %v3135
    %3142 = vmatprep.subr.bf16.mxu0 0
    %3143 = vmatpush1.bf16.msra.mxu0 0
    %3144 = vmatprep.subr.bf16.mxu0 0
    %3145 = vmatpush1.bf16.msra.mxu0 0
    %3146 = vmatprep.subr.bf16.mxu0 0
    %3147 = vmatpush1.bf16.msra.mxu0 0
    %3148 = vmatprep.subr.bf16.mxu0 0
    %3149 = vmatpush1.bf16.msra.mxu0 0
    %3150 = vmatprep.subr.bf16.mxu0 0
    %3151 = vmatpush1.bf16.msra.mxu0 0
    %3152 = vmatprep.subr.bf16.mxu0 0
    %3153 = vmatpush1.bf16.msra.mxu0 0
    %3154 = vmatprep.subr.bf16.mxu0 0
    %3155 = vmatpush1.bf16.msra.mxu0 0
    %3156 = vmatprep.subr.bf16.mxu0 0
    %3157 = vmatpush1.bf16.msra.mxu0 0
    %3158 = vmatprep.subr.bf16.mxu0 0
    %3159 = vmatpush1.bf16.msra.mxu0 0
    %3160 = vmatprep.subr.bf16.mxu0 0
    %3161 = vmatpush1.bf16.msra.mxu0 0
    %3162 = vmatprep.subr.bf16.mxu0 0
    %3163 = vmatpush1.bf16.msra.mxu0 0
    %3164 = vmatprep.subr.bf16.mxu0 0
    %3165 = vmatpush1.bf16.msra.mxu0 0
    %3166 = vmatprep.subr.bf16.mxu0 0
    %3167 = vmatpush1.bf16.msra.mxu0 0
    %3168 = vmatprep.subr.bf16.mxu0 0
    %3169 = vmatpush1.bf16.msra.mxu0 0
    %3170 = vmatprep.subr.bf16.mxu0 0
    %3171 = vmatpush1.bf16.msra.mxu0 0
    %3172 = vmatprep.mubr.bf16.mxu0 0
    %3173 = vmatmul.mubr.bf16.gmra.mrb[0].mxu0 %v3138
    %v3174 = vpop.f32.mrb[0].mxu0
    %v3175 = vadd.f32 0.0, %v3174
    %v3176 = vpop.f32.mrb[0].mxu0
    %v3177 = vpop.f32.mrb[0].mxu0
    %v3178 = vadd.f32 0.0, %v3177
    %v3179 = vpop.f32.mrb[0].mxu0
    %3180 = vdwg.mxu0
    %3182 = vrot.lane.b32.xlu0 %v2744, 64
    %v3183 = vpop.permute.xlu0 %3182
    %v3186 = vsel %vm1385, %v3132, 0
    %3188 = vmatprep.subr.bf16.mxu0 0
    %3189 = vmatpush1.bf16.msra.mxu0 %v3183
    %3190 = vmatprep.subr.bf16.mxu0 0
    %3191 = vmatpush1.bf16.msra.mxu0 0
    %3192 = vmatprep.subr.bf16.mxu0 0
    %3193 = vmatpush1.bf16.msra.mxu0 0
    %3194 = vmatprep.subr.bf16.mxu0 0
    %3195 = vmatpush1.bf16.msra.mxu0 0
    %3196 = vmatprep.subr.bf16.mxu0 0
    %3197 = vmatpush1.bf16.msra.mxu0 0
    %3198 = vmatprep.subr.bf16.mxu0 0
    %3199 = vmatpush1.bf16.msra.mxu0 0
    %3200 = vmatprep.subr.bf16.mxu0 0
    %3201 = vmatpush1.bf16.msra.mxu0 0
    %3202 = vmatprep.subr.bf16.mxu0 0
    %3203 = vmatpush1.bf16.msra.mxu0 0
    %3204 = vmatprep.subr.bf16.mxu0 0
    %3205 = vmatpush1.bf16.msra.mxu0 0
    %3206 = vmatprep.subr.bf16.mxu0 0
    %3207 = vmatpush1.bf16.msra.mxu0 0
    %3208 = vmatprep.subr.bf16.mxu0 0
    %3209 = vmatpush1.bf16.msra.mxu0 0
    %3210 = vmatprep.subr.bf16.mxu0 0
    %3211 = vmatpush1.bf16.msra.mxu0 0
    %3212 = vmatprep.subr.bf16.mxu0 0
    %3213 = vmatpush1.bf16.msra.mxu0 0
    %3214 = vmatprep.subr.bf16.mxu0 0
    %3215 = vmatpush1.bf16.msra.mxu0 0
    %3216 = vmatprep.subr.bf16.mxu0 0
    %3217 = vmatpush1.bf16.msra.mxu0 0
    %3218 = vmatprep.subr.bf16.mxu0 0
    %3219 = vmatpush1.bf16.msra.mxu0 0
    %3220 = vmatprep.mubr.bf16.mxu0 0
    %3221 = vmatmul.mubr.bf16.gmra.mrb[0].mxu0 %v3186
    %v3222 = vpop.f32.mrb[0].mxu0
    %v3223 = vadd.f32 0.0, %v3222
    %v3224 = vpop.f32.mrb[0].mxu0
    %v3225 = vpop.f32.mrb[0].mxu0
    %v3226 = vadd.f32 0.0, %v3225
    %v3227 = vpop.f32.mrb[0].mxu0
    %3228 = vdwg.mxu0
    %3233 = vrot.lane.b32.xlu0 %v3175, 64
    %v3234 = vpop.permute.xlu0 %3233
    %3235 = vrot.lane.b32.xlu0 %v3178, 64
    %v3236 = vpop.permute.xlu0 %3235
    %3237 = vrot.lane.b32.xlu0 %v3223, 64
    %v3238 = vpop.permute.xlu0 %3237
    %3239 = vrot.lane.b32.xlu0 %v3226, 64
    %v3240 = vpop.permute.xlu0 %3239
    %v3245 = vsel %vm777, %v2927, %v3234
    %v3246 = vsel %vm777, %v2930, %v3236
    %v3247 = vsel %vm777, %v2971, %v3238
    %v3248 = vsel %vm777, %v2974, %v3240
    %v3249 = vpack.c.bf16 %v3246, %v3245
    %v3250 = vpack.c.bf16 %v3248, %v3247
    %s3251 = scalar_lea.vmem [#allocation7], 64
    %v3252 = vld [vmem:[%s3251] sm:$0xf]
    %v3253 = vld [vmem:[%s3251 + $0x4] sm:$0xf]
    %v3254 = vld [vmem:[%s3251 + $0x8] sm:$0xf]
    %v3255 = vld [vmem:[%s3251 + $0xc] sm:$0xf]
    %v3256 = vld [vmem:[%s3251 + $0x10] sm:$0xf]
    %v3257 = vld [vmem:[%s3251 + $0x14] sm:$0xf]
    %v3258 = vld [vmem:[%s3251 + $0x18] sm:$0xf]
    %v3259 = vld [vmem:[%s3251 + $0x1c] sm:$0xf]
    %v3260 = vld [vmem:[%s3251 + $0x20] sm:$0xf]
    %v3261 = vld [vmem:[%s3251 + $0x24] sm:$0xf]
    %v3262 = vld [vmem:[%s3251 + $0x28] sm:$0xf]
    %v3263 = vld [vmem:[%s3251 + $0x2c] sm:$0xf]
    %v3264 = vld [vmem:[%s3251 + $0x30] sm:$0xf]
    %v3265 = vld [vmem:[%s3251 + $0x34] sm:$0xf]
    %v3266 = vld [vmem:[%s3251 + $0x38] sm:$0xf]
    %v3267 = vld [vmem:[%s3251 + $0x3c] sm:$0xf]
    %v3268 = vld [vmem:[#allocation2 + $0x30] ss:$0 sm:$0xff]
    %v3285 = vunpack.c.l.b16 %v3252
    %v3286 = vunpack.c.l.b16 %v3253
    %v3287 = vunpack.c.l.b16 %v3254
    %v3288 = vunpack.c.l.b16 %v3255
    %v3289 = vunpack.c.l.b16 %v3256
    %v3290 = vunpack.c.l.b16 %v3257
    %v3291 = vunpack.c.l.b16 %v3258
    %v3292 = vunpack.c.l.b16 %v3259
    %v3293 = vunpack.c.l.b16 %v3260
    %v3294 = vunpack.c.l.b16 %v3261
    %v3295 = vunpack.c.l.b16 %v3262
    %v3296 = vunpack.c.l.b16 %v3263
    %v3297 = vunpack.c.l.b16 %v3264
    %v3298 = vunpack.c.l.b16 %v3265
    %v3299 = vunpack.c.l.b16 %v3266
    %v3300 = vunpack.c.l.b16 %v3267
    %v3301 = vpack.c.b16 %v3286, %v3285
    %v3302 = vpack.c.b16 %v3288, %v3287
    %v3303 = vpack.c.b16 %v3290, %v3289
    %v3304 = vpack.c.b16 %v3292, %v3291
    %v3305 = vpack.c.b16 %v3294, %v3293
    %v3306 = vpack.c.b16 %v3296, %v3295
    %v3307 = vpack.c.b16 %v3298, %v3297
    %v3308 = vpack.c.b16 %v3300, %v3299
    %3317 = vmatprep.subr.bf16.mxu0 0
    %3318 = vmatpush1.bf16.msra.mxu0 %v3301
    %3319 = vmatprep.subr.bf16.mxu0 0
    %3320 = vmatpush1.bf16.msra.mxu0 %v3302
    %3321 = vmatprep.subr.bf16.mxu0 0
    %3322 = vmatpush1.bf16.msra.mxu0 %v3303
    %3323 = vmatprep.subr.bf16.mxu0 0
    %3324 = vmatpush1.bf16.msra.mxu0 %v3304
    %3325 = vmatprep.subr.bf16.mxu0 0
    %3326 = vmatpush1.bf16.msra.mxu0 %v3305
    %3327 = vmatprep.subr.bf16.mxu0 0
    %3328 = vmatpush1.bf16.msra.mxu0 %v3306
    %3329 = vmatprep.subr.bf16.mxu0 0
    %3330 = vmatpush1.bf16.msra.mxu0 %v3307
    %3331 = vmatprep.subr.bf16.mxu0 0
    %3332 = vmatpush1.bf16.msra.mxu0 %v3308
    %3333 = vmatprep.subr.bf16.mxu0 0
    %3334 = vmatpush1.bf16.msra.mxu0 0
    %3335 = vmatprep.subr.bf16.mxu0 0
    %3336 = vmatpush1.bf16.msra.mxu0 0
    %3337 = vmatprep.subr.bf16.mxu0 0
    %3338 = vmatpush1.bf16.msra.mxu0 0
    %3339 = vmatprep.subr.bf16.mxu0 0
    %3340 = vmatpush1.bf16.msra.mxu0 0
    %3341 = vmatprep.subr.bf16.mxu0 0
    %3342 = vmatpush1.bf16.msra.mxu0 0
    %3343 = vmatprep.subr.bf16.mxu0 0
    %3344 = vmatpush1.bf16.msra.mxu0 0
    %3345 = vmatprep.subr.bf16.mxu0 0
    %3346 = vmatpush1.bf16.msra.mxu0 0
    %3347 = vmatprep.subr.bf16.mxu0 0
    %3348 = vmatpush1.bf16.msra.mxu0 0
    %3349 = vmatprep.mubr.bf16.mxu0 0
    %3350 = vmatmul.mubr.bf16.gmra.mrb[0].mxu0 %v3249
    %v3351 = vpop.f32.mrb[0].mxu0
    %v3352 = vadd.f32 %v3268, %v3351
    %v3353 = vpop.f32.mrb[0].mxu0
    %v3354 = vpop.f32.mrb[0].mxu0
    %v3355 = vadd.f32 %v3268, %v3354
    %v3356 = vpop.f32.mrb[0].mxu0
    %3357 = vmatprep.mubr.bf16.mxu0 0
    %3358 = vmatmul.mubr.bf16.gmra.mrb[0].mxu0 %v3250
    %v3359 = vpop.f32.mrb[0].mxu0
    %v3360 = vadd.f32 %v3268, %v3359
    %v3361 = vpop.f32.mrb[0].mxu0
    %v3362 = vpop.f32.mrb[0].mxu0
    %v3363 = vadd.f32 %v3268, %v3362
    %v3364 = vpop.f32.mrb[0].mxu0
    %3365 = vdwg.mxu0
    %v3366 = vadd.f32 %v3352, %v2452
    %v3367 = vadd.f32 %v3355, %v2453
    %v3368 = vadd.f32 %v3360, %v2454
    %v3369 = vadd.f32 %v3363, %v2455
    %v3370 = vld [vmem:[#allocation2 + $0x30] sm:$0x6]
    %3371 = vadd.xlane.f32.xlu0 %v3366
    %v3372 = vpop.xlane.xlu0 %3371
    %3373 = vadd.xlane.f32.xlu0 %v3367
    %v3374 = vpop.xlane.xlu0 %3373
    %3375 = vadd.xlane.f32.xlu0 %v3368
    %v3376 = vpop.xlane.xlu0 %3375
    %3377 = vadd.xlane.f32.xlu0 %v3369
    %v3378 = vpop.xlane.xlu0 %3377
    %v3379 = vmul.f32 %v3372, %v946
    %v3380 = vmul.f32 %v3374, %v946
    %v3381 = vmul.f32 %v3376, %v946
    %v3382 = vmul.f32 %v3378, %v946
    %v3383 = vsub.f32 %v3366, %v3379
    %v3384 = vsub.f32 %v3367, %v3380
    %v3385 = vsub.f32 %v3368, %v3381
    %v3386 = vsub.f32 %v3369, %v3382
    %v3387 = vmul.f32 %v3383, %v3383
    %v3388 = vmul.f32 %v3384, %v3384
    %v3389 = vmul.f32 %v3385, %v3385
    %v3390 = vmul.f32 %v3386, %v3386
    %3391 = vadd.xlane.f32.xlu0 %v3387
    %v3392 = vpop.xlane.xlu0 %3391
    %3393 = vadd.xlane.f32.xlu0 %v3388
    %v3394 = vpop.xlane.xlu0 %3393
    %3395 = vadd.xlane.f32.xlu0 %v3389
    %v3396 = vpop.xlane.xlu0 %3395
    %3397 = vadd.xlane.f32.xlu0 %v3390
    %v3398 = vpop.xlane.xlu0 %3397
    %v3399 = vmul.f32 %v3392, %v946
    %v3400 = vmul.f32 %v3394, %v946
    %v3401 = vmul.f32 %v3396, %v946
    %v3402 = vmul.f32 %v3398, %v946
    %v3403 = vadd.f32 %v3399, 1e-05
    %v3404 = vadd.f32 %v3400, 1e-05
    %v3405 = vadd.f32 %v3401, 1e-05
    %v3406 = vadd.f32 %v3402, 1e-05
    %v3407 = vrsqrt.pop %v3403
    %v3408 = vrsqrt.pop %v3404
    %v3409 = vrsqrt.pop %v3405
    %v3410 = vrsqrt.pop %v3406
    %v3411 = vmul.f32 %v3383, %v3407
    %v3412 = vmul.f32 %v3384, %v3408
    %v3413 = vmul.f32 %v3385, %v3409
    %v3414 = vmul.f32 %v3386, %v3410
    %v3415 = vlaneseq
    %v3416 = vshrl.u32 %v3415, 7
    %v3417 = vsub.s32 1, %v3416
    %v3418 = vrot.slane %v3370, %v3417
    %v3419 = vmul.f32 %v3411, %v3418
    %v3420 = vmul.f32 %v3412, %v3418
    %v3421 = vmul.f32 %v3413, %v3418
    %v3422 = vmul.f32 %v3414, %v3418
    %v3423 = vlaneseq
    %v3424 = vshrl.u32 %v3423, 7
    %v3425 = vsub.s32 2, %v3424
    %v3426 = vrot.slane %v3370, %v3425
    %v3427 = vadd.f32 %v3419, %v3426
    %v3428 = vadd.f32 %v3420, %v3426
    %v3429 = vadd.f32 %v3421, %v3426
    %v3430 = vadd.f32 %v3422, %v3426
    %v3431 = vpack.c.bf16 %v3428, %v3427
    %v3432 = vpack.c.bf16 %v3430, %v3429
    %s3433 = scalar_lea.vmem [#allocation8], 128
    %v3434 = vld [vmem:[%s3433] sm:$0xff]
    %v3435 = vld [vmem:[%s3433 + $0x8] sm:$0xff]
    %v3436 = vld [vmem:[%s3433 + $0x10] sm:$0xff]
    %v3437 = vld [vmem:[%s3433 + $0x18] sm:$0xff]
    %v3438 = vld [vmem:[%s3433 + $0x20] sm:$0xff]
    %v3439 = vld [vmem:[%s3433 + $0x28] sm:$0xff]
    %v3440 = vld [vmem:[%s3433 + $0x30] sm:$0xff]
    %v3441 = vld [vmem:[%s3433 + $0x38] sm:$0xff]
    %v3442 = vld [vmem:[%s3433 + $0x40] sm:$0xff]
    %v3443 = vld [vmem:[%s3433 + $0x48] sm:$0xff]
    %v3444 = vld [vmem:[%s3433 + $0x50] sm:$0xff]
    %v3445 = vld [vmem:[%s3433 + $0x58] sm:$0xff]
    %v3446 = vld [vmem:[%s3433 + $0x60] sm:$0xff]
    %v3447 = vld [vmem:[%s3433 + $0x68] sm:$0xff]
    %v3448 = vld [vmem:[%s3433 + $0x70] sm:$0xff]
    %v3449 = vld [vmem:[%s3433 + $0x78] sm:$0xff]
    %s3450 = scalar_lea.vmem [#allocation2], 51
    %v3451 = vld [vmem:[%s3450] ss:$8 sm:$0x3]
    %v3453 = vlaneseq
    %v3454 = vshrl.u32 %v3453, 7
    %v3455 = vsub.s32 0, %v3454
    %v3456 = vrot.slane %v3451, %v3455
    %v3457 = vlaneseq
    %v3458 = vshrl.u32 %v3457, 7
    %v3459 = vsub.s32 1, %v3458
    %v3460 = vrot.slane %v3451, %v3459
    %v3479 = vunpack.c.l.b16 %v3434
    %v3480 = vunpack.c.h.b16 %v3434
    %v3481 = vunpack.c.l.b16 %v3435
    %v3482 = vunpack.c.h.b16 %v3435
    %v3483 = vunpack.c.l.b16 %v3436
    %v3484 = vunpack.c.h.b16 %v3436
    %v3485 = vunpack.c.l.b16 %v3437
    %v3486 = vunpack.c.h.b16 %v3437
    %v3487 = vunpack.c.l.b16 %v3438
    %v3488 = vunpack.c.h.b16 %v3438
    %v3489 = vunpack.c.l.b16 %v3439
    %v3490 = vunpack.c.h.b16 %v3439
    %v3491 = vunpack.c.l.b16 %v3440
    %v3492 = vunpack.c.h.b16 %v3440
    %v3493 = vunpack.c.l.b16 %v3441
    %v3494 = vunpack.c.h.b16 %v3441
    %v3495 = vunpack.c.l.b16 %v3442
    %v3496 = vunpack.c.h.b16 %v3442
    %v3497 = vunpack.c.l.b16 %v3443
    %v3498 = vunpack.c.h.b16 %v3443
    %v3499 = vunpack.c.l.b16 %v3444
    %v3500 = vunpack.c.h.b16 %v3444
    %v3501 = vunpack.c.l.b16 %v3445
    %v3502 = vunpack.c.h.b16 %v3445
    %v3503 = vunpack.c.l.b16 %v3446
    %v3504 = vunpack.c.h.b16 %v3446
    %v3505 = vunpack.c.l.b16 %v3447
    %v3506 = vunpack.c.h.b16 %v3447
    %v3507 = vunpack.c.l.b16 %v3448
    %v3508 = vunpack.c.h.b16 %v3448
    %v3509 = vunpack.c.l.b16 %v3449
    %v3510 = vunpack.c.h.b16 %v3449
    %v3511 = vpack.c.b16 %v3481, %v3479
    %v3512 = vpack.c.b16 %v3482, %v3480
    %v3513 = vpack.c.b16 %v3485, %v3483
    %v3514 = vpack.c.b16 %v3486, %v3484
    %v3515 = vpack.c.b16 %v3489, %v3487
    %v3516 = vpack.c.b16 %v3490, %v3488
    %v3517 = vpack.c.b16 %v3493, %v3491
    %v3518 = vpack.c.b16 %v3494, %v3492
    %v3519 = vpack.c.b16 %v3497, %v3495
    %v3520 = vpack.c.b16 %v3498, %v3496
    %v3521 = vpack.c.b16 %v3501, %v3499
    %v3522 = vpack.c.b16 %v3502, %v3500
    %v3523 = vpack.c.b16 %v3505, %v3503
    %v3524 = vpack.c.b16 %v3506, %v3504
    %v3525 = vpack.c.b16 %v3509, %v3507
    %v3526 = vpack.c.b16 %v3510, %v3508
    %3543 = vmatprep.subr.bf16.mxu0 %v3512
    %3544 = vmatpush1.bf16.msra.mxu0 %v3511
    %3545 = vmatprep.subr.bf16.mxu0 %v3514
    %3546 = vmatpush1.bf16.msra.mxu0 %v3513
    %3547 = vmatprep.subr.bf16.mxu0 %v3516
    %3548 = vmatpush1.bf16.msra.mxu0 %v3515
    %3549 = vmatprep.subr.bf16.mxu0 %v3518
    %3550 = vmatpush1.bf16.msra.mxu0 %v3517
    %3551 = vmatprep.subr.bf16.mxu0 %v3520
    %3552 = vmatpush1.bf16.msra.mxu0 %v3519
    %3553 = vmatprep.subr.bf16.mxu0 %v3522
    %3554 = vmatpush1.bf16.msra.mxu0 %v3521
    %3555 = vmatprep.subr.bf16.mxu0 %v3524
    %3556 = vmatpush1.bf16.msra.mxu0 %v3523
    %3557 = vmatprep.subr.bf16.mxu0 %v3526
    %3558 = vmatpush1.bf16.msra.mxu0 %v3525
    %3559 = vmatprep.subr.bf16.mxu0 0
    %3560 = vmatpush1.bf16.msra.mxu0 0
    %3561 = vmatprep.subr.bf16.mxu0 0
    %3562 = vmatpush1.bf16.msra.mxu0 0
    %3563 = vmatprep.subr.bf16.mxu0 0
    %3564 = vmatpush1.bf16.msra.mxu0 0
    %3565 = vmatprep.subr.bf16.mxu0 0
    %3566 = vmatpush1.bf16.msra.mxu0 0
    %3567 = vmatprep.subr.bf16.mxu0 0
    %3568 = vmatpush1.bf16.msra.mxu0 0
    %3569 = vmatprep.subr.bf16.mxu0 0
    %3570 = vmatpush1.bf16.msra.mxu0 0
    %3571 = vmatprep.subr.bf16.mxu0 0
    %3572 = vmatpush1.bf16.msra.mxu0 0
    %3573 = vmatprep.subr.bf16.mxu0 0
    %3574 = vmatpush1.bf16.msra.mxu0 0
    %3575 = vmatprep.mubr.bf16.mxu0 0
    %3576 = vmatmul.mubr.bf16.gmra.mrb[0].mxu0 %v3431
    %v3577 = vpop.f32.mrb[0].mxu0
    %v3578 = vadd.f32 %v3456, %v3577
    %v3579 = vpop.f32.mrb[0].mxu0
    %v3580 = vadd.f32 %v3460, %v3579
    %v3581 = vpop.f32.mrb[0].mxu0
    %v3582 = vadd.f32 %v3456, %v3581
    %v3583 = vpop.f32.mrb[0].mxu0
    %v3584 = vadd.f32 %v3460, %v3583
    %3585 = vmatprep.mubr.bf16.mxu0 0
    %3586 = vmatmul.mubr.bf16.gmra.mrb[0].mxu0 %v3432
    %v3587 = vpop.f32.mrb[0].mxu0
    %v3588 = vadd.f32 %v3456, %v3587
    %v3589 = vpop.f32.mrb[0].mxu0
    %v3590 = vadd.f32 %v3460, %v3589
    %v3591 = vpop.f32.mrb[0].mxu0
    %v3592 = vadd.f32 %v3456, %v3591
    %v3593 = vpop.f32.mrb[0].mxu0
    %v3594 = vadd.f32 %v3460, %v3593
    %3595 = vdwg.mxu0
    %v3596 = vmul.f32 %v3578, %v3578
    %v3597 = vmul.f32 %v3580, %v3580
    %v3598 = vmul.f32 %v3582, %v3582
    %v3599 = vmul.f32 %v3584, %v3584
    %v3600 = vmul.f32 %v3588, %v3588
    %v3601 = vmul.f32 %v3590, %v3590
    %v3602 = vmul.f32 %v3592, %v3592
    %v3603 = vmul.f32 %v3594, %v3594
    %v3604 = vmul.f32 %v3578, %v3596
    %v3605 = vmul.f32 %v3580, %v3597
    %v3606 = vmul.f32 %v3582, %v3598
    %v3607 = vmul.f32 %v3584, %v3599
    %v3608 = vmul.f32 %v3588, %v3600
    %v3609 = vmul.f32 %v3590, %v3601
    %v3610 = vmul.f32 %v3592, %v3602
    %v3611 = vmul.f32 %v3594, %v3603
    %v3612 = vmul.f32 %v3604, 0.044715
    %v3613 = vmul.f32 %v3605, 0.044715
    %v3614 = vmul.f32 %v3606, 0.044715
    %v3615 = vmul.f32 %v3607, 0.044715
    %v3616 = vmul.f32 %v3608, 0.044715
    %v3617 = vmul.f32 %v3609, 0.044715
    %v3618 = vmul.f32 %v3610, 0.044715
    %v3619 = vmul.f32 %v3611, 0.044715
    %v3620 = vadd.f32 %v3578, %v3612
    %v3621 = vadd.f32 %v3580, %v3613
    %v3622 = vadd.f32 %v3582, %v3614
    %v3623 = vadd.f32 %v3584, %v3615
    %v3624 = vadd.f32 %v3588, %v3616
    %v3625 = vadd.f32 %v3590, %v3617
    %v3626 = vadd.f32 %v3592, %v3618
    %v3627 = vadd.f32 %v3594, %v3619
    %v3628 = vmul.f32 %v3620, 0.7978846
    %v3629 = vmul.f32 %v3621, 0.7978846
    %v3630 = vmul.f32 %v3622, 0.7978846
    %v3631 = vmul.f32 %v3623, 0.7978846
    %v3632 = vmul.f32 %v3624, 0.7978846
    %v3633 = vmul.f32 %v3625, 0.7978846
    %v3634 = vmul.f32 %v3626, 0.7978846
    %v3635 = vmul.f32 %v3627, 0.7978846
    %v3636 = vtanh.pop %v3628
    %v3637 = vtanh.pop %v3629
    %v3638 = vtanh.pop %v3630
    %v3639 = vtanh.pop %v3631
    %v3640 = vtanh.pop %v3632
    %v3641 = vtanh.pop %v3633
    %v3642 = vtanh.pop %v3634
    %v3643 = vtanh.pop %v3635
    %v3644 = vadd.f32 %v3636, 1.0
    %v3645 = vadd.f32 %v3637, 1.0
    %v3646 = vadd.f32 %v3638, 1.0
    %v3647 = vadd.f32 %v3639, 1.0
    %v3648 = vadd.f32 %v3640, 1.0
    %v3649 = vadd.f32 %v3641, 1.0
    %v3650 = vadd.f32 %v3642, 1.0
    %v3651 = vadd.f32 %v3643, 1.0
    %v3652 = vmul.f32 %v3644, 0.5
    %v3653 = vmul.f32 %v3645, 0.5
    %v3654 = vmul.f32 %v3646, 0.5
    %v3655 = vmul.f32 %v3647, 0.5
    %v3656 = vmul.f32 %v3648, 0.5
    %v3657 = vmul.f32 %v3649, 0.5
    %v3658 = vmul.f32 %v3650, 0.5
    %v3659 = vmul.f32 %v3651, 0.5
    %v3660 = vmul.f32 %v3578, %v3652
    %v3661 = vmul.f32 %v3580, %v3653
    %v3662 = vmul.f32 %v3582, %v3654
    %v3663 = vmul.f32 %v3584, %v3655
    %v3664 = vmul.f32 %v3588, %v3656
    %v3665 = vmul.f32 %v3590, %v3657
    %v3666 = vmul.f32 %v3592, %v3658
    %v3667 = vmul.f32 %v3594, %v3659
    %v3668 = vpack.c.bf16 %v3662, %v3660
    %v3669 = vpack.c.bf16 %v3663, %v3661
    %v3670 = vpack.c.bf16 %v3666, %v3664
    %v3671 = vpack.c.bf16 %v3667, %v3665
    %s3672 = scalar_lea.vmem [#allocation10], 128
    %v3673 = vld [vmem:[%s3672] sm:$0xf]
    %v3674 = vld [vmem:[%s3672 + $0x4] sm:$0xf]
    %v3675 = vld [vmem:[%s3672 + $0x8] sm:$0xf]
    %v3676 = vld [vmem:[%s3672 + $0xc] sm:$0xf]
    %v3677 = vld [vmem:[%s3672 + $0x10] sm:$0xf]
    %v3678 = vld [vmem:[%s3672 + $0x14] sm:$0xf]
    %v3679 = vld [vmem:[%s3672 + $0x18] sm:$0xf]
    %v3680 = vld [vmem:[%s3672 + $0x1c] sm:$0xf]
    %v3681 = vld [vmem:[%s3672 + $0x20] sm:$0xf]
    %v3682 = vld [vmem:[%s3672 + $0x24] sm:$0xf]
    %v3683 = vld [vmem:[%s3672 + $0x28] sm:$0xf]
    %v3684 = vld [vmem:[%s3672 + $0x2c] sm:$0xf]
    %v3685 = vld [vmem:[%s3672 + $0x30] sm:$0xf]
    %v3686 = vld [vmem:[%s3672 + $0x34] sm:$0xf]
    %v3687 = vld [vmem:[%s3672 + $0x38] sm:$0xf]
    %v3688 = vld [vmem:[%s3672 + $0x3c] sm:$0xf]
    %v3689 = vld [vmem:[%s3672 + $0x40] sm:$0xf]
    %v3690 = vld [vmem:[%s3672 + $0x44] sm:$0xf]
    %v3691 = vld [vmem:[%s3672 + $0x48] sm:$0xf]
    %v3692 = vld [vmem:[%s3672 + $0x4c] sm:$0xf]
    %v3693 = vld [vmem:[%s3672 + $0x50] sm:$0xf]
    %v3694 = vld [vmem:[%s3672 + $0x54] sm:$0xf]
    %v3695 = vld [vmem:[%s3672 + $0x58] sm:$0xf]
    %v3696 = vld [vmem:[%s3672 + $0x5c] sm:$0xf]
    %v3697 = vld [vmem:[%s3672 + $0x60] sm:$0xf]
    %v3698 = vld [vmem:[%s3672 + $0x64] sm:$0xf]
    %v3699 = vld [vmem:[%s3672 + $0x68] sm:$0xf]
    %v3700 = vld [vmem:[%s3672 + $0x6c] sm:$0xf]
    %v3701 = vld [vmem:[%s3672 + $0x70] sm:$0xf]
    %v3702 = vld [vmem:[%s3672 + $0x74] sm:$0xf]
    %v3703 = vld [vmem:[%s3672 + $0x78] sm:$0xf]
    %v3704 = vld [vmem:[%s3672 + $0x7c] sm:$0xf]
    %v3705 = vld [vmem:[#allocation2 + $0x34] ss:$0 sm:$0xff]
    %v3738 = vunpack.c.l.b16 %v3673
    %v3739 = vunpack.c.l.b16 %v3674
    %v3740 = vunpack.c.l.b16 %v3675
    %v3741 = vunpack.c.l.b16 %v3676
    %v3742 = vunpack.c.l.b16 %v3677
    %v3743 = vunpack.c.l.b16 %v3678
    %v3744 = vunpack.c.l.b16 %v3679
    %v3745 = vunpack.c.l.b16 %v3680
    %v3746 = vunpack.c.l.b16 %v3681
    %v3747 = vunpack.c.l.b16 %v3682
    %v3748 = vunpack.c.l.b16 %v3683
    %v3749 = vunpack.c.l.b16 %v3684
    %v3750 = vunpack.c.l.b16 %v3685
    %v3751 = vunpack.c.l.b16 %v3686
    %v3752 = vunpack.c.l.b16 %v3687
    %v3753 = vunpack.c.l.b16 %v3688
    %v3754 = vunpack.c.l.b16 %v3689
    %v3755 = vunpack.c.l.b16 %v3690
    %v3756 = vunpack.c.l.b16 %v3691
    %v3757 = vunpack.c.l.b16 %v3692
    %v3758 = vunpack.c.l.b16 %v3693
    %v3759 = vunpack.c.l.b16 %v3694
    %v3760 = vunpack.c.l.b16 %v3695
    %v3761 = vunpack.c.l.b16 %v3696
    %v3762 = vunpack.c.l.b16 %v3697
    %v3763 = vunpack.c.l.b16 %v3698
    %v3764 = vunpack.c.l.b16 %v3699
    %v3765 = vunpack.c.l.b16 %v3700
    %v3766 = vunpack.c.l.b16 %v3701
    %v3767 = vunpack.c.l.b16 %v3702
    %v3768 = vunpack.c.l.b16 %v3703
    %v3769 = vunpack.c.l.b16 %v3704
    %v3770 = vpack.c.b16 %v3739, %v3738
    %v3771 = vpack.c.b16 %v3741, %v3740
    %v3772 = vpack.c.b16 %v3743, %v3742
    %v3773 = vpack.c.b16 %v3745, %v3744
    %v3774 = vpack.c.b16 %v3747, %v3746
    %v3775 = vpack.c.b16 %v3749, %v3748
    %v3776 = vpack.c.b16 %v3751, %v3750
    %v3777 = vpack.c.b16 %v3753, %v3752
    %v3778 = vpack.c.b16 %v3755, %v3754
    %v3779 = vpack.c.b16 %v3757, %v3756
    %v3780 = vpack.c.b16 %v3759, %v3758
    %v3781 = vpack.c.b16 %v3761, %v3760
    %v3782 = vpack.c.b16 %v3763, %v3762
    %v3783 = vpack.c.b16 %v3765, %v3764
    %v3784 = vpack.c.b16 %v3767, %v3766
    %v3785 = vpack.c.b16 %v3769, %v3768
    %3802 = vmatprep.subr.bf16.mxu0 0
    %3803 = vmatpush1.bf16.msra.mxu0 %v3770
    %3804 = vmatprep.subr.bf16.mxu0 0
    %3805 = vmatpush1.bf16.msra.mxu0 %v3771
    %3806 = vmatprep.subr.bf16.mxu0 0
    %3807 = vmatpush1.bf16.msra.mxu0 %v3772
    %3808 = vmatprep.subr.bf16.mxu0 0
    %3809 = vmatpush1.bf16.msra.mxu0 %v3773
    %3810 = vmatprep.subr.bf16.mxu0 0
    %3811 = vmatpush1.bf16.msra.mxu0 %v3774
    %3812 = vmatprep.subr.bf16.mxu0 0
    %3813 = vmatpush1.bf16.msra.mxu0 %v3775
    %3814 = vmatprep.subr.bf16.mxu0 0
    %3815 = vmatpush1.bf16.msra.mxu0 %v3776
    %3816 = vmatprep.subr.bf16.mxu0 0
    %3817 = vmatpush1.bf16.msra.mxu0 %v3777
    %3818 = vmatprep.subr.bf16.mxu0 0
    %3819 = vmatpush1.bf16.msra.mxu0 %v3778
    %3820 = vmatprep.subr.bf16.mxu0 0
    %3821 = vmatpush1.bf16.msra.mxu0 %v3779
    %3822 = vmatprep.subr.bf16.mxu0 0
    %3823 = vmatpush1.bf16.msra.mxu0 %v3780
    %3824 = vmatprep.subr.bf16.mxu0 0
    %3825 = vmatpush1.bf16.msra.mxu0 %v3781
    %3826 = vmatprep.subr.bf16.mxu0 0
    %3827 = vmatpush1.bf16.msra.mxu0 %v3782
    %3828 = vmatprep.subr.bf16.mxu0 0
    %3829 = vmatpush1.bf16.msra.mxu0 %v3783
    %3830 = vmatprep.subr.bf16.mxu0 0
    %3831 = vmatpush1.bf16.msra.mxu0 %v3784
    %3832 = vmatprep.subr.bf16.mxu0 0
    %3833 = vmatpush1.bf16.msra.mxu0 %v3785
    %3834 = vmatprep.mubr.bf16.mxu0 %v3669
    %3835 = vmatmul.mubr.bf16.gmra.mrb[0].mxu0 %v3668
    %v3836 = vpop.f32.mrb[0].mxu0
    %v3837 = vadd.f32 %v3705, %v3836
    %v3838 = vpop.f32.mrb[0].mxu0
    %v3839 = vpop.f32.mrb[0].mxu0
    %v3840 = vadd.f32 %v3705, %v3839
    %v3841 = vpop.f32.mrb[0].mxu0
    %3842 = vmatprep.mubr.bf16.mxu0 %v3671
    %3843 = vmatmul.mubr.bf16.gmra.mrb[0].mxu0 %v3670
    %v3844 = vpop.f32.mrb[0].mxu0
    %v3845 = vadd.f32 %v3705, %v3844
    %v3846 = vpop.f32.mrb[0].mxu0
    %v3847 = vpop.f32.mrb[0].mxu0
    %v3848 = vadd.f32 %v3705, %v3847
    %v3849 = vpop.f32.mrb[0].mxu0
    %3850 = vdwg.mxu0
    %v3851 = vadd.f32 %v3837, %v3427
    %v3852 = vadd.f32 %v3840, %v3428
    %v3853 = vadd.f32 %v3845, %v3429
    %v3854 = vadd.f32 %v3848, %v3430
    %v3855 = vld [vmem:[#allocation2 + $0x30] sm:$0x60]
    %3856 = vadd.xlane.f32.xlu0 %v3851
    %v3857 = vpop.xlane.xlu0 %3856
    %3858 = vadd.xlane.f32.xlu0 %v3852
    %v3859 = vpop.xlane.xlu0 %3858
    %3860 = vadd.xlane.f32.xlu0 %v3853
    %v3861 = vpop.xlane.xlu0 %3860
    %3862 = vadd.xlane.f32.xlu0 %v3854
    %v3863 = vpop.xlane.xlu0 %3862
    %v3864 = vmul.f32 %v3857, %v946
    %v3865 = vmul.f32 %v3859, %v946
    %v3866 = vmul.f32 %v3861, %v946
    %v3867 = vmul.f32 %v3863, %v946
    %v3868 = vsub.f32 %v3851, %v3864
    %v3869 = vsub.f32 %v3852, %v3865
    %v3870 = vsub.f32 %v3853, %v3866
    %v3871 = vsub.f32 %v3854, %v3867
    %v3872 = vmul.f32 %v3868, %v3868
    %v3873 = vmul.f32 %v3869, %v3869
    %v3874 = vmul.f32 %v3870, %v3870
    %v3875 = vmul.f32 %v3871, %v3871
    %3876 = vadd.xlane.f32.xlu0 %v3872
    %v3877 = vpop.xlane.xlu0 %3876
    %3878 = vadd.xlane.f32.xlu0 %v3873
    %v3879 = vpop.xlane.xlu0 %3878
    %3880 = vadd.xlane.f32.xlu0 %v3874
    %v3881 = vpop.xlane.xlu0 %3880
    %3882 = vadd.xlane.f32.xlu0 %v3875
    %v3883 = vpop.xlane.xlu0 %3882
    %v3884 = vmul.f32 %v3877, %v946
    %v3885 = vmul.f32 %v3879, %v946
    %v3886 = vmul.f32 %v3881, %v946
    %v3887 = vmul.f32 %v3883, %v946
    %v3888 = vadd.f32 %v3884, 1e-05
    %v3889 = vadd.f32 %v3885, 1e-05
    %v3890 = vadd.f32 %v3886, 1e-05
    %v3891 = vadd.f32 %v3887, 1e-05
    %v3892 = vrsqrt.pop %v3888
    %v3893 = vrsqrt.pop %v3889
    %v3894 = vrsqrt.pop %v3890
    %v3895 = vrsqrt.pop %v3891
    %v3896 = vmul.f32 %v3868, %v3892
    %v3897 = vmul.f32 %v3869, %v3893
    %v3898 = vmul.f32 %v3870, %v3894
    %v3899 = vmul.f32 %v3871, %v3895
    %v3900 = vlaneseq
    %v3901 = vshrl.u32 %v3900, 7
    %v3902 = vsub.s32 5, %v3901
    %v3903 = vrot.slane %v3855, %v3902
    %v3904 = vmul.f32 %v3896, %v3903
    %v3905 = vmul.f32 %v3897, %v3903
    %v3906 = vmul.f32 %v3898, %v3903
    %v3907 = vmul.f32 %v3899, %v3903
    %v3908 = vlaneseq
    %v3909 = vshrl.u32 %v3908, 7
    %v3910 = vsub.s32 6, %v3909
    %v3911 = vrot.slane %v3855, %v3910
    %v3912 = vadd.f32 %v3904, %v3911
    %v3913 = vadd.f32 %v3905, %v3911
    %v3914 = vadd.f32 %v3906, %v3911
    %v3915 = vadd.f32 %v3907, %v3911
    %v3916 = vadd.f32 %v3912, %v3913
    %v3917 = vrot.slane %v3916, 4
    %v3918 = vadd.f32 %v3916, %v3917
    %v3919 = vrot.slane %v3918, 2
    %v3920 = vadd.f32 %v3918, %v3919
    %v3921 = vrot.slane %v3920, 1
    %v3922 = vadd.f32 %v3920, %v3921
    %v3923 = vrcp.pop 16.0
    %v3924 = vmul.f32 %v3922, %v3923
    %v3925 = vadd.f32 %v3914, %v3915
    %v3926 = vrot.slane %v3925, 4
    %v3927 = vadd.f32 %v3925, %v3926
    %v3928 = vrot.slane %v3927, 2
    %v3929 = vadd.f32 %v3927, %v3928
    %v3930 = vrot.slane %v3929, 1
    %v3931 = vadd.f32 %v3929, %v3930
    %v3932 = vmul.f32 %v3931, %v3923
    %vm3933 = vcmask 1040384
    %v3934 = vsel %vm3933, %v3924, %v3932
    %v3935 = vpack.c.bf16 %v3934, %v3934
    %v3936 = vld [vmem:[#allocation11] sm:$0xff]
    %v3937 = vld [vmem:[#allocation11 + $0x8] sm:$0xff]
    %v3938 = vld [vmem:[#allocation11 + $0x10] sm:$0xff]
    %v3939 = vld [vmem:[#allocation11 + $0x18] sm:$0xff]
    %v3940 = vld [vmem:[#allocation11 + $0x20] sm:$0xff]
    %v3941 = vld [vmem:[#allocation11 + $0x28] sm:$0xff]
    %v3942 = vld [vmem:[#allocation11 + $0x30] sm:$0xff]
    %v3943 = vld [vmem:[#allocation11 + $0x38] sm:$0xff]
    %v3944 = vld [vmem:[#allocation11 + $0x40] sm:$0xff]
    %v3945 = vld [vmem:[#allocation11 + $0x48] sm:$0xff]
    %v3946 = vld [vmem:[#allocation11 + $0x50] sm:$0xff]
    %v3947 = vld [vmem:[#allocation11 + $0x58] sm:$0xff]
    %v3948 = vld [vmem:[#allocation11 + $0x60] sm:$0xff]
    %v3949 = vld [vmem:[#allocation11 + $0x68] sm:$0xff]
    %v3950 = vld [vmem:[#allocation11 + $0x70] sm:$0xff]
    %v3951 = vld [vmem:[#allocation11 + $0x78] sm:$0xff]
    %s3952 = scalar_lea.vmem [#allocation2], 55
    %v3953 = vld [vmem:[%s3952] ss:$8 sm:$0x3]
    %v3955 = vlaneseq
    %v3956 = vshrl.u32 %v3955, 7
    %v3957 = vsub.s32 0, %v3956
    %v3958 = vrot.slane %v3953, %v3957
    %v3959 = vlaneseq
    %v3960 = vshrl.u32 %v3959, 7
    %v3961 = vsub.s32 1, %v3960
    %v3962 = vrot.slane %v3953, %v3961
    %v3981 = vunpack.c.l.b16 %v3936
    %v3982 = vunpack.c.h.b16 %v3936
    %v3983 = vunpack.c.l.b16 %v3937
    %v3984 = vunpack.c.h.b16 %v3937
    %v3985 = vunpack.c.l.b16 %v3938
    %v3986 = vunpack.c.h.b16 %v3938
    %v3987 = vunpack.c.l.b16 %v3939
    %v3988 = vunpack.c.h.b16 %v3939
    %v3989 = vunpack.c.l.b16 %v3940
    %v3990 = vunpack.c.h.b16 %v3940
    %v3991 = vunpack.c.l.b16 %v3941
    %v3992 = vunpack.c.h.b16 %v3941
    %v3993 = vunpack.c.l.b16 %v3942
    %v3994 = vunpack.c.h.b16 %v3942
    %v3995 = vunpack.c.l.b16 %v3943
    %v3996 = vunpack.c.h.b16 %v3943
    %v3997 = vunpack.c.l.b16 %v3944
    %v3998 = vunpack.c.h.b16 %v3944
    %v3999 = vunpack.c.l.b16 %v3945
    %v4000 = vunpack.c.h.b16 %v3945
    %v4001 = vunpack.c.l.b16 %v3946
    %v4002 = vunpack.c.h.b16 %v3946
    %v4003 = vunpack.c.l.b16 %v3947
    %v4004 = vunpack.c.h.b16 %v3947
    %v4005 = vunpack.c.l.b16 %v3948
    %v4006 = vunpack.c.h.b16 %v3948
    %v4007 = vunpack.c.l.b16 %v3949
    %v4008 = vunpack.c.h.b16 %v3949
    %v4009 = vunpack.c.l.b16 %v3950
    %v4010 = vunpack.c.h.b16 %v3950
    %v4011 = vunpack.c.l.b16 %v3951
    %v4012 = vunpack.c.h.b16 %v3951
    %v4013 = vpack.c.b16 %v3983, %v3981
    %v4014 = vpack.c.b16 %v3984, %v3982
    %v4015 = vpack.c.b16 %v3987, %v3985
    %v4016 = vpack.c.b16 %v3988, %v3986
    %v4017 = vpack.c.b16 %v3991, %v3989
    %v4018 = vpack.c.b16 %v3992, %v3990
    %v4019 = vpack.c.b16 %v3995, %v3993
    %v4020 = vpack.c.b16 %v3996, %v3994
    %v4021 = vpack.c.b16 %v3999, %v3997
    %v4022 = vpack.c.b16 %v4000, %v3998
    %v4023 = vpack.c.b16 %v4003, %v4001
    %v4024 = vpack.c.b16 %v4004, %v4002
    %v4025 = vpack.c.b16 %v4007, %v4005
    %v4026 = vpack.c.b16 %v4008, %v4006
    %v4027 = vpack.c.b16 %v4011, %v4009
    %v4028 = vpack.c.b16 %v4012, %v4010
    %4045 = vmatprep.subr.bf16.mxu0 %v4014
    %4046 = vmatpush1.bf16.msra.mxu0 %v4013
    %4047 = vmatprep.subr.bf16.mxu0 %v4016
    %4048 = vmatpush1.bf16.msra.mxu0 %v4015
    %4049 = vmatprep.subr.bf16.mxu0 %v4018
    %4050 = vmatpush1.bf16.msra.mxu0 %v4017
    %4051 = vmatprep.subr.bf16.mxu0 %v4020
    %4052 = vmatpush1.bf16.msra.mxu0 %v4019
    %4053 = vmatprep.subr.bf16.mxu0 %v4022
    %4054 = vmatpush1.bf16.msra.mxu0 %v4021
    %4055 = vmatprep.subr.bf16.mxu0 %v4024
    %4056 = vmatpush1.bf16.msra.mxu0 %v4023
    %4057 = vmatprep.subr.bf16.mxu0 %v4026
    %4058 = vmatpush1.bf16.msra.mxu0 %v4025
    %4059 = vmatprep.subr.bf16.mxu0 %v4028
    %4060 = vmatpush1.bf16.msra.mxu0 %v4027
    %4061 = vmatprep.subr.bf16.mxu0 0
    %4062 = vmatpush1.bf16.msra.mxu0 0
    %4063 = vmatprep.subr.bf16.mxu0 0
    %4064 = vmatpush1.bf16.msra.mxu0 0
    %4065 = vmatprep.subr.bf16.mxu0 0
    %4066 = vmatpush1.bf16.msra.mxu0 0
    %4067 = vmatprep.subr.bf16.mxu0 0
    %4068 = vmatpush1.bf16.msra.mxu0 0
    %4069 = vmatprep.subr.bf16.mxu0 0
    %4070 = vmatpush1.bf16.msra.mxu0 0
    %4071 = vmatprep.subr.bf16.mxu0 0
    %4072 = vmatpush1.bf16.msra.mxu0 0
    %4073 = vmatprep.subr.bf16.mxu0 0
    %4074 = vmatpush1.bf16.msra.mxu0 0
    %4075 = vmatprep.subr.bf16.mxu0 0
    %4076 = vmatpush1.bf16.msra.mxu0 0
    %4077 = vmatprep.mubr.bf16.mxu0 0
    %4078 = vmatmul.mubr.bf16.gmra.mrb[0].mxu0 %v3935
    %v4079 = vpop.f32.mrb[0].mxu0
    %v4080 = vadd.f32 %v3958, %v4079
    %v4081 = vpop.f32.mrb[0].mxu0
    %v4082 = vadd.f32 %v3962, %v4081
    %v4083 = vpop.f32.mrb[0].mxu0
    %v4084 = vpop.f32.mrb[0].mxu0
    %4085 = vdwg.mxu0
    %v4086 = vld [vmem:[#allocation2 + $0x48] sm:$0x3]
    %v4087 = vld [vmem:[#allocation2 + $0x50] sm:$0x3]
    %v4088 = vsel %vm186, %v4080, 0.0
    %v4089 = vsel %vm186, %v4082, 0.0
    %v4090 = vadd.f32 %v4088, %v4089
    %4091 = vadd.xlane.f32.xlu0 %v4090
    %v4092 = vpop.xlane.xlu0 %4091
    %v4093 = vrcp.pop 256.0
    %v4094 = vmul.f32 %v4092, %v4093
    %v4095 = vsub.f32 %v4080, %v4094
    %v4096 = vsub.f32 %v4082, %v4094
    %v4097 = vmul.f32 %v4095, %v4095
    %v4098 = vmul.f32 %v4096, %v4096
    %v4099 = vsel %vm186, %v4097, 0.0
    %v4100 = vsel %vm186, %v4098, 0.0
    %v4101 = vadd.f32 %v4099, %v4100
    %4102 = vadd.xlane.f32.xlu0 %v4101
    %v4103 = vpop.xlane.xlu0 %4102
    %v4104 = vmul.f32 %v4103, %v4093
    %v4105 = vadd.f32 %v4104, 1e-05
    %v4106 = vrsqrt.pop %v4105
    %v4107 = vmul.f32 %v4095, %v4106
    %v4108 = vmul.f32 %v4096, %v4106
    %v4109 = vlaneseq
    %v4110 = vshrl.u32 %v4109, 7
    %v4111 = vsub.s32 0, %v4110
    %v4112 = vrot.slane %v4086, %v4111
    %v4113 = vlaneseq
    %v4114 = vshrl.u32 %v4113, 7
    %v4115 = vsub.s32 0, %v4114
    %v4116 = vrot.slane %v4087, %v4115
    %v4117 = vmul.f32 %v4107, %v4112
    %v4118 = vmul.f32 %v4108, %v4116
    %v4119 = vlaneseq
    %v4120 = vshrl.u32 %v4119, 7
    %v4121 = vsub.s32 1, %v4120
    %v4122 = vrot.slane %v4086, %v4121
    %v4123 = vlaneseq
    %v4124 = vshrl.u32 %v4123, 7
    %v4125 = vsub.s32 1, %v4124
    %v4126 = vrot.slane %v4087, %v4125
    %v4127 = vadd.f32 %v4117, %v4122
    %v4128 = vadd.f32 %v4118, %v4126
    %v4129 = vmax.f32 %v4127, 0.0
    %v4130 = vmax.f32 %v4128, 0.0
    %v4131 = vpack.c.bf16 %v4129, %v4129
    %v4132 = vpack.c.bf16 %v4130, %v4130
    %v4133 = vld [vmem:[#allocation13] sm:$0xff]
    %v4134 = vld [vmem:[#allocation13 + $0x8] sm:$0xff]
    %v4135 = vld [vmem:[#allocation13 + $0x10] sm:$0xff]
    %v4136 = vld [vmem:[#allocation13 + $0x18] sm:$0xff]
    %v4137 = vld [vmem:[#allocation13 + $0x20] sm:$0xff]
    %v4138 = vld [vmem:[#allocation13 + $0x28] sm:$0xff]
    %v4139 = vld [vmem:[#allocation13 + $0x30] sm:$0xff]
    %v4140 = vld [vmem:[#allocation13 + $0x38] sm:$0xff]
    %v4141 = vld [vmem:[#allocation13 + $0x40] sm:$0xff]
    %v4142 = vld [vmem:[#allocation13 + $0x48] sm:$0xff]
    %v4143 = vld [vmem:[#allocation13 + $0x50] sm:$0xff]
    %v4144 = vld [vmem:[#allocation13 + $0x58] sm:$0xff]
    %v4145 = vld [vmem:[#allocation13 + $0x60] sm:$0xff]
    %v4146 = vld [vmem:[#allocation13 + $0x68] sm:$0xff]
    %v4147 = vld [vmem:[#allocation13 + $0x70] sm:$0xff]
    %v4148 = vld [vmem:[#allocation13 + $0x78] sm:$0xff]
    %v4149 = vld [vmem:[#allocation13 + $0x80] sm:$0xff]
    %v4150 = vld [vmem:[#allocation13 + $0x88] sm:$0xff]
    %v4151 = vld [vmem:[#allocation13 + $0x90] sm:$0xff]
    %v4152 = vld [vmem:[#allocation13 + $0x98] sm:$0xff]
    %v4153 = vld [vmem:[#allocation13 + $0xa0] sm:$0xff]
    %v4154 = vld [vmem:[#allocation13 + $0xa8] sm:$0xff]
    %v4155 = vld [vmem:[#allocation13 + $0xb0] sm:$0xff]
    %v4156 = vld [vmem:[#allocation13 + $0xb8] sm:$0xff]
    %v4157 = vld [vmem:[#allocation13 + $0xc0] sm:$0xff]
    %v4158 = vld [vmem:[#allocation13 + $0xc8] sm:$0xff]
    %v4159 = vld [vmem:[#allocation13 + $0xd0] sm:$0xff]
    %v4160 = vld [vmem:[#allocation13 + $0xd8] sm:$0xff]
    %v4161 = vld [vmem:[#allocation13 + $0xe0] sm:$0xff]
    %v4162 = vld [vmem:[#allocation13 + $0xe8] sm:$0xff]
    %v4163 = vld [vmem:[#allocation13 + $0xf0] sm:$0xff]
    %v4164 = vld [vmem:[#allocation13 + $0xf8] sm:$0xff]
    %s4165 = scalar_lea.vmem [#allocation2], 74
    %v4166 = vld [vmem:[%s4165] ss:$8 sm:$0x3]
    %v4168 = vlaneseq
    %v4169 = vshrl.u32 %v4168, 7
    %v4170 = vsub.s32 0, %v4169
    %v4171 = vrot.slane %v4166, %v4170
    %v4172 = vlaneseq
    %v4173 = vshrl.u32 %v4172, 7
    %v4174 = vsub.s32 1, %v4173
    %v4175 = vrot.slane %v4166, %v4174
    %v4210 = vunpack.c.l.b16 %v4133
    %v4211 = vunpack.c.h.b16 %v4133
    %v4212 = vunpack.c.l.b16 %v4134
    %v4213 = vunpack.c.h.b16 %v4134
    %v4214 = vunpack.c.l.b16 %v4135
    %v4215 = vunpack.c.h.b16 %v4135
    %v4216 = vunpack.c.l.b16 %v4136
    %v4217 = vunpack.c.h.b16 %v4136
    %v4218 = vunpack.c.l.b16 %v4137
    %v4219 = vunpack.c.h.b16 %v4137
    %v4220 = vunpack.c.l.b16 %v4138
    %v4221 = vunpack.c.h.b16 %v4138
    %v4222 = vunpack.c.l.b16 %v4139
    %v4223 = vunpack.c.h.b16 %v4139
    %v4224 = vunpack.c.l.b16 %v4140
    %v4225 = vunpack.c.h.b16 %v4140
    %v4226 = vunpack.c.l.b16 %v4141
    %v4227 = vunpack.c.h.b16 %v4141
    %v4228 = vunpack.c.l.b16 %v4142
    %v4229 = vunpack.c.h.b16 %v4142
    %v4230 = vunpack.c.l.b16 %v4143
    %v4231 = vunpack.c.h.b16 %v4143
    %v4232 = vunpack.c.l.b16 %v4144
    %v4233 = vunpack.c.h.b16 %v4144
    %v4234 = vunpack.c.l.b16 %v4145
    %v4235 = vunpack.c.h.b16 %v4145
    %v4236 = vunpack.c.l.b16 %v4146
    %v4237 = vunpack.c.h.b16 %v4146
    %v4238 = vunpack.c.l.b16 %v4147
    %v4239 = vunpack.c.h.b16 %v4147
    %v4240 = vunpack.c.l.b16 %v4148
    %v4241 = vunpack.c.h.b16 %v4148
    %v4242 = vunpack.c.l.b16 %v4149
    %v4243 = vunpack.c.h.b16 %v4149
    %v4244 = vunpack.c.l.b16 %v4150
    %v4245 = vunpack.c.h.b16 %v4150
    %v4246 = vunpack.c.l.b16 %v4151
    %v4247 = vunpack.c.h.b16 %v4151
    %v4248 = vunpack.c.l.b16 %v4152
    %v4249 = vunpack.c.h.b16 %v4152
    %v4250 = vunpack.c.l.b16 %v4153
    %v4251 = vunpack.c.h.b16 %v4153
    %v4252 = vunpack.c.l.b16 %v4154
    %v4253 = vunpack.c.h.b16 %v4154
    %v4254 = vunpack.c.l.b16 %v4155
    %v4255 = vunpack.c.h.b16 %v4155
    %v4256 = vunpack.c.l.b16 %v4156
    %v4257 = vunpack.c.h.b16 %v4156
    %v4258 = vunpack.c.l.b16 %v4157
    %v4259 = vunpack.c.h.b16 %v4157
    %v4260 = vunpack.c.l.b16 %v4158
    %v4261 = vunpack.c.h.b16 %v4158
    %v4262 = vunpack.c.l.b16 %v4159
    %v4263 = vunpack.c.h.b16 %v4159
    %v4264 = vunpack.c.l.b16 %v4160
    %v4265 = vunpack.c.h.b16 %v4160
    %v4266 = vunpack.c.l.b16 %v4161
    %v4267 = vunpack.c.h.b16 %v4161
    %v4268 = vunpack.c.l.b16 %v4162
    %v4269 = vunpack.c.h.b16 %v4162
    %v4270 = vunpack.c.l.b16 %v4163
    %v4271 = vunpack.c.h.b16 %v4163
    %v4272 = vunpack.c.l.b16 %v4164
    %v4273 = vunpack.c.h.b16 %v4164
    %v4274 = vpack.c.b16 %v4212, %v4210
    %v4275 = vpack.c.b16 %v4213, %v4211
    %v4276 = vpack.c.b16 %v4216, %v4214
    %v4277 = vpack.c.b16 %v4217, %v4215
    %v4278 = vpack.c.b16 %v4220, %v4218
    %v4279 = vpack.c.b16 %v4221, %v4219
    %v4280 = vpack.c.b16 %v4224, %v4222
    %v4281 = vpack.c.b16 %v4225, %v4223
    %v4282 = vpack.c.b16 %v4228, %v4226
    %v4283 = vpack.c.b16 %v4229, %v4227
    %v4284 = vpack.c.b16 %v4232, %v4230
    %v4285 = vpack.c.b16 %v4233, %v4231
    %v4286 = vpack.c.b16 %v4236, %v4234
    %v4287 = vpack.c.b16 %v4237, %v4235
    %v4288 = vpack.c.b16 %v4240, %v4238
    %v4289 = vpack.c.b16 %v4241, %v4239
    %v4290 = vpack.c.b16 %v4244, %v4242
    %v4291 = vpack.c.b16 %v4245, %v4243
    %v4292 = vpack.c.b16 %v4248, %v4246
    %v4293 = vpack.c.b16 %v4249, %v4247
    %v4294 = vpack.c.b16 %v4252, %v4250
    %v4295 = vpack.c.b16 %v4253, %v4251
    %v4296 = vpack.c.b16 %v4256, %v4254
    %v4297 = vpack.c.b16 %v4257, %v4255
    %v4298 = vpack.c.b16 %v4260, %v4258
    %v4299 = vpack.c.b16 %v4261, %v4259
    %v4300 = vpack.c.b16 %v4264, %v4262
    %v4301 = vpack.c.b16 %v4265, %v4263
    %v4302 = vpack.c.b16 %v4268, %v4266
    %v4303 = vpack.c.b16 %v4269, %v4267
    %v4304 = vpack.c.b16 %v4272, %v4270
    %v4305 = vpack.c.b16 %v4273, %v4271
    %4338 = vmatprep.subr.bf16.mxu0 %v4275
    %4339 = vmatpush1.bf16.msra.mxu0 %v4274
    %4340 = vmatprep.subr.bf16.mxu0 %v4277
    %4341 = vmatpush1.bf16.msra.mxu0 %v4276
    %4342 = vmatprep.subr.bf16.mxu0 %v4279
    %4343 = vmatpush1.bf16.msra.mxu0 %v4278
    %4344 = vmatprep.subr.bf16.mxu0 %v4281
    %4345 = vmatpush1.bf16.msra.mxu0 %v4280
    %4346 = vmatprep.subr.bf16.mxu0 %v4283
    %4347 = vmatpush1.bf16.msra.mxu0 %v4282
    %4348 = vmatprep.subr.bf16.mxu0 %v4285
    %4349 = vmatpush1.bf16.msra.mxu0 %v4284
    %4350 = vmatprep.subr.bf16.mxu0 %v4287
    %4351 = vmatpush1.bf16.msra.mxu0 %v4286
    %4352 = vmatprep.subr.bf16.mxu0 %v4289
    %4353 = vmatpush1.bf16.msra.mxu0 %v4288
    %4354 = vmatprep.subr.bf16.mxu0 %v4291
    %4355 = vmatpush1.bf16.msra.mxu0 %v4290
    %4356 = vmatprep.subr.bf16.mxu0 %v4293
    %4357 = vmatpush1.bf16.msra.mxu0 %v4292
    %4358 = vmatprep.subr.bf16.mxu0 %v4295
    %4359 = vmatpush1.bf16.msra.mxu0 %v4294
    %4360 = vmatprep.subr.bf16.mxu0 %v4297
    %4361 = vmatpush1.bf16.msra.mxu0 %v4296
    %4362 = vmatprep.subr.bf16.mxu0 %v4299
    %4363 = vmatpush1.bf16.msra.mxu0 %v4298
    %4364 = vmatprep.subr.bf16.mxu0 %v4301
    %4365 = vmatpush1.bf16.msra.mxu0 %v4300
    %4366 = vmatprep.subr.bf16.mxu0 %v4303
    %4367 = vmatpush1.bf16.msra.mxu0 %v4302
    %4368 = vmatprep.subr.bf16.mxu0 %v4305
    %4369 = vmatpush1.bf16.msra.mxu0 %v4304
    %4370 = vmatprep.mubr.bf16.mxu0 %v4132
    %4371 = vmatmul.mubr.bf16.gmra.mrb[0].mxu0 %v4131
    %v4372 = vpop.f32.mrb[0].mxu0
    %v4373 = vadd.f32 %v4171, %v4372
    %v4374 = vpop.f32.mrb[0].mxu0
    %v4375 = vadd.f32 %v4175, %v4374
    %v4376 = vpop.f32.mrb[0].mxu0
    %v4377 = vpop.f32.mrb[0].mxu0
    %4378 = vdwg.mxu0
    %v4381 = vcombine.low %v4373, %v4375
    %v4383 = vunpack.c.l.s4 1983009808
    %v4384 = vunpack.c.0.s8 %v4383
    %v4385 = vlaneseq
    %v4386 = vshrl.u32 %v4385, 7
    %v4387 = vsub.s32 %v4384, %v4386
    %v4388 = vrot.slane %v4381, %v4387
    %4390 = vst [vmem:[#allocation14] sm:$0xf] %v4388
    // Predicated region
    $region74: #{hubert_module_forward.1} parent=1 // pred_check
      _
    $region75: #{hubert_module_forward.1} parent=1 // pred_check_branch
      %4392 = sbr.rel (0) target = $region77
    $region76: #{hubert_module_forward.1} parent=1 // pred_region
      %s4394 = ssub.s32 64, 64
      %4395 = vsyncadd [#allocation4], %s4394
      %s4397 = sshll.u32 [#allocation14], 4
      %s4398 = int_to_ptr.vmem [resolvable:$true] %s4397
      %4400 = dma.vmem_to_hbm [thread:$0]  %s4398, 64, %s11, [#allocation4]
    $region77: #{hubert_module_forward.1} parent=1 // pred_fallthru
      _
    // Predicated region
    $region78: #{hubert_module_forward.1} parent=1 // pred_check
      _
    $region79: #{hubert_module_forward.1} parent=1 // pred_check_branch
      %4402 = sbr.rel (0) target = $region81
    $region80: #{hubert_module_forward.1} parent=1 // pred_region
      %4403 = dma.done [#allocation4], 64
    $region81: #{hubert_module_forward.1} parent=1 // pred_fallthru
      _
    %4404 = vsyncpa [#allocation3], 1
    %4405 = vsyncpa [#allocation6], 1
    %4406 = vsyncpa [#allocation9], 1
    %4407 = vsyncpa [#allocation12], 1
    %4408 = vsyncpa [#allocation4], 1

</llo_original>
